<compile_context>
chip_gen: v5e
topology: v5e:2x2
jax: 0.10.0
libtpu: 0.0.40
codegen_flags: <defaults>
</compile_context>

<pallas_src>
import numpy as np
import jax
import jax.numpy as jnp
from jax.experimental import pallas as pl
from jax.experimental.pallas import tpu as pltpu

EPS_BN = 1e-5   # torch.nn.BatchNorm1d default eps
EPS_Z = 1e-6    # denominator eps in MultiHeadAttentionLayer


def _vmem_spec():
    return pl.BlockSpec(memory_space=pltpu.MemorySpace.VMEM)


def _batch_norm(h, g, b):
    # BatchNorm1d training-mode batch statistics (biased variance).
    # Two-pass (centered) variance for numerical stability.
    mean = jnp.mean(h, axis=0, keepdims=True)
    c = h - mean
    var = jnp.mean(c * c, axis=0, keepdims=True)
    return c * jax.lax.rsqrt(var + EPS_BN) * g + b


# ----------------------------------------------------------------------------
# Fused forward kernel: encoder -> 4 GT layers -> node head, all in VMEM.
# ----------------------------------------------------------------------------
def make_forward_kernel(n_layers, num_heads, head_dim, width):
    H, D, W = num_heads, head_dim, width

    def kernel(xe_ref, adj_ref,
               wenc_ref, benc_ref,
               wqkvh_ref, woh_ref, bo_ref, bn1w_ref, bn1b_ref,
               w1_ref, b1_ref, w2_ref, b2_ref, bn2w_ref, bn2b_ref,
               wh_ref, bh_ref,
               o_ref):
        n = xe_ref.shape[0]

        # ---- InputEncoder, fused: [x | EigVecs] @ [wa; wc] + (ba + bc) ----
        h = (jnp.dot(xe_ref[...], wenc_ref[...], preferred_element_type=jnp.float32)
             + benc_ref[...])

        # De-duplicated int8 adjacency -> f32 once, reused by all layers.
        adj_all = adj_ref[...].astype(jnp.float32)                        # [2, N, N]

        # ---- GT layers (static unrolled loop; ~150 KB of weights stay VMEM-resident) ----
        for l in range(n_layers):
            adj = adj_all[l // 2]                      # layers 0,1: spatial; 2,3: temporal

            # Head-batched Q|K|V projection -> [H, N, 3D]
            # (E(edge_attr=1) and 1/sqrt(d) folded into the Q columns offline.)
            hb = jnp.broadcast_to(h, (H, n, W))
            qkv = jnp.einsum('hnw,hcw->hnc', hb, wqkvh_ref[l],
                             preferred_element_type=jnp.float32)
            q = qkv[:, :, 0 * D:1 * D]
            k = qkv[:, :, 1 * D:2 * D]
            v = qkv[:, :, 2 * D:3 * D]

            # s[h, j, i] = q_h[j] . k_h[i] * E / sqrt(d)   (dest j, src i), all heads at once.
            s = jnp.einsum('hjd,hid->hji', q, k, preferred_element_type=jnp.float32)
            s = jnp.exp(jnp.clip(s, -5.0, 5.0)) * adj[None, :, :]          # masked exp score
            wv = jnp.einsum('hji,hid->hjd', s, v, preferred_element_type=jnp.float32)
            z = jnp.sum(s, axis=-1, keepdims=True)                         # [H, N, 1]
            # approx reciprocal runs on the (otherwise idle) EUP slot; rel err ~1e-4 vs
            # exact 1/(z+eps).  z == 0 (no in-edges) still gives exactly 0: wv == 0 there.
            attn = wv * pl.reciprocal(z + EPS_Z, approx=True)              # [H, N, D]

            # O projection with the head-concat folded in:  sum_h attn_h @ wo_h  (+ bias)
            ho = jnp.einsum('hjd,hdw->hjw', attn, woh_ref[l],
                            preferred_element_type=jnp.float32)
            h1 = _batch_norm(h + jnp.sum(ho, axis=0) + bo_ref[l],
                             bn1w_ref[l], bn1b_ref[l])

            # FFN + residual + BatchNorm1d  (dropout p=0.0 -> no-op)
            f = jnp.dot(h1, w1_ref[l], preferred_element_type=jnp.float32) + b1_ref[l]
            f = jnp.maximum(f, 0.0)
            f = jnp.dot(f, w2_ref[l], preferred_element_type=jnp.float32) + b2_ref[l]
            h = _batch_norm(h1 + f, bn2w_ref[l], bn2b_ref[l])

        # ---- GNNInductiveNodeHead (n_layers=1): single Linear ----
        o_ref[...] = (jnp.dot(h, wh_ref[...], preferred_element_type=jnp.float32)
                      + bh_ref[...])

    return kernel


# ----------------------------------------------------------------------------
# Offline parameter preprocessing (one-time, not per-forward):
#   * fold evec * 1/sqrt(d) into wq
#   * repack Q/K/V into head-batched, contraction-last layout  wqkvh[H, 3D, W]
#   * repack the O projection as woh[H, D, W] (head-concat folded into the matmul)
#   * fuse the InputEncoder into a single weight/bias
#   * stack per-layer weights on a leading axis
# ----------------------------------------------------------------------------
def prepare_device_params(params, num_heads):
    width = params["layers"][0]["wq"].shape[0]
    H = num_heads
    D = width // H
    inv_sqrt_d = 1.0 / np.sqrt(D)

    lists = {k: [] for k in ("wqkvh", "woh", "bo", "bn1w", "bn1b",
                             "w1", "b1", "w2", "b2", "bn2w", "bn2b")}
    for p in params["layers"]:
        # column c of wq corresponds to head c//D, within-head dim c%D
        scale = (p["evec"].reshape(1, width) * inv_sqrt_d).astype(jnp.float32)
        wq_s = p["wq"] * scale
        wq_h = jnp.transpose(wq_s).reshape(H, D, width)          # [H, D, W]  (contract W last)
        wk_h = jnp.transpose(p["wk"]).reshape(H, D, width)
        wv_h = jnp.transpose(p["wv"]).reshape(H, D, width)
        lists["wqkvh"].append(jnp.concatenate([wq_h, wk_h, wv_h], axis=1))   # [H, 3D, W]
        lists["woh"].append(p["wo"].reshape(H, D, width))                    # [H, D, W]
        for name in ("bo", "bn1w", "bn1b", "w1", "b1", "w2", "b2", "bn2w", "bn2b"):
            lists[name].append(p[name])

    stacked = {k: jnp.stack(v, axis=0) for k, v in lists.items()}
    # Fused InputEncoder: one [input_dim + dim_pe, W] weight, one bias.
    wenc = jnp.concatenate([params["enc"]["wa"], params["enc"]["wc"]], axis=0)
    benc = params["enc"]["ba"] + params["enc"]["bc"]
    return dict(wenc=wenc, benc=benc,
                wh=params["head"]["w"], bh=params["head"]["b"], **stacked)


# ----------------------------------------------------------------------------
# Wrapper: single pallas_call for the whole forward.
# ----------------------------------------------------------------------------
def graph_transformer_forward(dparams, x, eigvecs, adj_spatial, adj_temporal,
                              num_heads, n_layers=4):
    assert n_layers == 4, "layers 0,1 use spatial edges; 2,3 use temporal edges"
    n = x.shape[0]
    width = dparams["wenc"].shape[1]
    head_dim = width // num_heads
    output_dim = dparams["wh"].shape[1]

    # fused encoder input + de-duplicated int8 {0,1} adjacency [spatial, temporal]
    xe = jnp.concatenate([x, eigvecs], axis=1)
    adj_stack = jnp.stack([adj_spatial, adj_temporal], axis=0).astype(jnp.int8)

    kern = make_forward_kernel(n_layers, num_heads, head_dim, width)
    args = (xe, adj_stack,
            dparams["wenc"], dparams["benc"],
            dparams["wqkvh"], dparams["woh"], dparams["bo"],
            dparams["bn1w"], dparams["bn1b"],
            dparams["w1"], dparams["b1"], dparams["w2"], dparams["b2"],
            dparams["bn2w"], dparams["bn2b"],
            dparams["wh"], dparams["bh"])

    return pl.pallas_call(
        kern,
        out_shape=jax.ShapeDtypeStruct((n, output_dim), jnp.float32),
        in_specs=[_vmem_spec() for _ in args],
        out_specs=_vmem_spec(),
        # 32 MiB is plenty here and stays under the v7x scoped-VMEM guidance (<= ~48 MiB);
        # raise toward ~96 MiB only on v5e/v6e for much larger graphs.
        compiler_params=pltpu.CompilerParams(vmem_limit_bytes=32 * 1024 * 1024),
    )(*args)


# ----------------------------------------------------------------------------
# Pure-JAX reference (same math, raw/unfused params) for sanity checking.
# ----------------------------------------------------------------------------
def _ref_bn(h, g, b):
    mean = jnp.mean(h, axis=0, keepdims=True)
    var = jnp.mean((h - mean) ** 2, axis=0, keepdims=True)
    return (h - mean) / jnp.sqrt(var + EPS_BN) * g + b


def _ref_gt_layer(x, adj, p, num_heads):
    n, w = x.shape
    d = w // num_heads
    q = (x @ p["wq"]).reshape(n, num_heads, d)
    k = (x @ p["wk"]).reshape(n, num_heads, d)
    v = (x @ p["wv"]).reshape(n, num_heads, d)
    e = p["evec"]                                          # [H, d]
    s = jnp.einsum("jhd,hd,ihd->hji", q, e, k) / np.sqrt(d)
    s = jnp.exp(jnp.clip(s, -5.0, 5.0)) * adj[None, :, :]
    wv = jnp.einsum("hji,ihd->jhd", s, v)
    z = jnp.sum(s, axis=-1).transpose(1, 0)[:, :, None]
    attn = (wv / (z + EPS_Z)).reshape(n, w)
    h1 = x + (attn @ p["wo"] + p["bo"])
    h1 = _ref_bn(h1, p["bn1w"], p["bn1b"])
    f = jnp.maximum(h1 @ p["w1"] + p["b1"], 0.0)
    f = f @ p["w2"] + p["b2"]
    return _ref_bn(h1 + f, p["bn2w"], p["bn2b"])


def _ref_forward(params, x, eigvecs, adj_s, adj_t, num_heads):
    pe = params["enc"]
    h = x @ pe["wa"] + pe["ba"] + eigvecs @ pe["wc"] + pe["bc"]
    h = _ref_gt_layer(h, adj_s, params["layers"][0], num_heads)
    h = _ref_gt_layer(h, adj_s, params["layers"][1], num_heads)
    h = _ref_gt_layer(h, adj_t, params["layers"][2], num_heads)
    h = _ref_gt_layer(h, adj_t, params["layers"][3], num_heads)
    return h @ params["head"]["w"] + params["head"]["b"]


# ----------------------------------------------------------------------------
# Deterministic parameter construction (raw, torch-layout-equivalent params).
# ----------------------------------------------------------------------------
def make_params(key, input_dim, width, num_heads, dim_pe, output_dim, n_layers=4):
    ks = iter(jax.random.split(key, 8 + 16 * n_layers))

    def w(shape, scale=0.1):
        return (scale * jax.random.normal(next(ks), shape)).astype(jnp.float32)

    enc = dict(
        wa=w((input_dim, width)), ba=w((1, width)),
        wc=w((dim_pe, width)), bc=w((1, width)),
    )
    layers = []
    for _ in range(n_layers):
        layers.append(dict(
            wq=w((width, width)), wk=w((width, width)), wv=w((width, width)),
            evec=w((num_heads, width // num_heads)),          # E(edge_attr=1), no bias
            wo=w((width, width)), bo=w((1, width)),
            bn1w=jnp.ones((1, width), jnp.float32), bn1b=jnp.zeros((1, width), jnp.float32),
            w1=w((width, 2 * width)), b1=w((1, 2 * width)),
            w2=w((2 * width, width)), b2=w((1, width)),
            bn2w=jnp.ones((1, width), jnp.float32), bn2b=jnp.zeros((1, width), jnp.float32),
        ))
    head = dict(w=w((width, output_dim)), b=w((1, output_dim)))
    return dict(enc=enc, layers=layers, head=head)


# ----------------------------------------------------------------------------
if __name__ == "__main__":
    # Small shapes consistent with the module: 16 graph nodes, input_dim=12,
    # LapPE dim=10, hidden widths=[32,32,32,32] (4 GT layers), 4 heads, output_dim=3.
    N, INPUT_DIM, DIM_PE, WIDTH, NUM_HEADS, OUTPUT_DIM = 16, 12, 10, 32, 4, 3

    root = jax.random.PRNGKey(0)
    k_x, k_ev, k_as, k_at, k_p = jax.random.split(root, 5)

    x = jax.random.normal(k_x, (N, INPUT_DIM), dtype=jnp.float32)
    eigvecs = jax.random.normal(k_ev, (N, DIM_PE), dtype=jnp.float32)
    # dense 0/1 adjacency for the 'spatial' and 'temporal' edge sets
    # (unique edges; edge_attr is all-ones as in the reference forward)
    adj_spatial = jax.random.bernoulli(k_as, 0.3, (N, N)).astype(jnp.float32)
    adj_temporal = jax.random.bernoulli(k_at, 0.3, (N, N)).astype(jnp.float32)

    params = make_params(k_p, INPUT_DIM, WIDTH, NUM_HEADS, DIM_PE, OUTPUT_DIM)
    dparams = prepare_device_params(params, NUM_HEADS)   # one-time offline preprocessing

    out = graph_transformer_forward(dparams, x, eigvecs, adj_spatial, adj_temporal, NUM_HEADS)
    out = jax.block_until_ready(out)

    ref = jax.block_until_ready(
        _ref_forward(params, x, eigvecs, adj_spatial, adj_temporal, NUM_HEADS))

    assert out.shape == (N, OUTPUT_DIM), out.shape
    assert bool(jnp.all(jnp.isfinite(out)))
    np.testing.assert_allclose(np.asarray(out), np.asarray(ref), rtol=5e-2, atol=5e-2)

    # TODO(synk): data.batch / data._slice_dict bookkeeping in the PyTorch forward does
    # not affect the output and is intentionally omitted; BatchNorm uses training-mode
    # batch statistics (no running-stat update), matching the module's training forward.
    print("KERNEL_OK")
</pallas_src>

<mosaic_0001>
module attributes {stable_mosaic.version = 11 : i64} {
  func.func @kernel(%arg0: memref<16x22xf32, #tpu.memory_space<vmem>>, %arg1: memref<2x16x16xi8, #tpu.memory_space<vmem>>, %arg2: memref<22x32xf32, #tpu.memory_space<vmem>>, %arg3: memref<1x32xf32, #tpu.memory_space<vmem>>, %arg4: memref<4x4x24x32xf32, #tpu.memory_space<vmem>>, %arg5: memref<4x4x8x32xf32, #tpu.memory_space<vmem>>, %arg6: memref<4x1x32xf32, #tpu.memory_space<vmem>>, %arg7: memref<4x1x32xf32, #tpu.memory_space<vmem>>, %arg8: memref<4x1x32xf32, #tpu.memory_space<vmem>>, %arg9: memref<4x32x64xf32, #tpu.memory_space<vmem>>, %arg10: memref<4x1x64xf32, #tpu.memory_space<vmem>>, %arg11: memref<4x64x32xf32, #tpu.memory_space<vmem>>, %arg12: memref<4x1x32xf32, #tpu.memory_space<vmem>>, %arg13: memref<4x1x32xf32, #tpu.memory_space<vmem>>, %arg14: memref<4x1x32xf32, #tpu.memory_space<vmem>>, %arg15: memref<32x3xf32, #tpu.memory_space<vmem>>, %arg16: memref<1x3xf32, #tpu.memory_space<vmem>>, %arg17: memref<16x3xf32, #tpu.memory_space<vmem>>) attributes {dimension_semantics = [], scalar_prefetch = 0 : i64, scratch_operands = 0 : i64, tpu.core_type = #tpu.core_type<tc>} {
    %c0 = arith.constant 0 : index
    %c0_0 = arith.constant 0 : index
    %0 = vector.load %arg0[%c0, %c0_0] : memref<16x22xf32, #tpu.memory_space<vmem>>, vector<16x22xf32>
    %c0_1 = arith.constant 0 : index
    %c0_2 = arith.constant 0 : index
    %1 = vector.load %arg2[%c0_1, %c0_2] : memref<22x32xf32, #tpu.memory_space<vmem>>, vector<22x32xf32>
    %cst = arith.constant dense<0.000000e+00> : vector<16x32xf32>
    %2 = tpu.matmul %0, %1, %cst {dimension_numbers = #tpu.dot_dimension_numbers<[1], [0], [0], [1], [0, 0, 1, 1], [], []>} : vector<16x22xf32>, vector<22x32xf32>, vector<16x32xf32> -> vector<16x32xf32>
    %c0_3 = arith.constant 0 : index
    %c0_4 = arith.constant 0 : index
    %3 = vector.load %arg3[%c0_3, %c0_4] : memref<1x32xf32, #tpu.memory_space<vmem>>, vector<1x32xf32>
    %4 = vector.broadcast %3 : vector<1x32xf32> to vector<16x32xf32>
    %5 = arith.addf %2, %4 : vector<16x32xf32>
    %c0_5 = arith.constant 0 : index
    %c0_6 = arith.constant 0 : index
    %c0_7 = arith.constant 0 : index
    %6 = vector.load %arg1[%c0_5, %c0_6, %c0_7] : memref<2x16x16xi8, #tpu.memory_space<vmem>>, vector<2x16x16xi8>
    %7 = arith.sitofp %6 : vector<2x16x16xi8> to vector<2x16x16xf32>
    %8 = vector.extract_strided_slice %7 {offsets = [0, 0, 0], sizes = [1, 16, 16], strides = [1, 1, 1]} : vector<2x16x16xf32> to vector<1x16x16xf32>
    %9 = vector.shape_cast %8 : vector<1x16x16xf32> to vector<16x16xf32>
    %10 = vector.shape_cast %5 : vector<16x32xf32> to vector<1x16x32xf32>
    %11 = vector.broadcast %10 : vector<1x16x32xf32> to vector<4x16x32xf32>
    %c0_8 = arith.constant 0 : index
    %c0_9 = arith.constant 0 : index
    %c0_10 = arith.constant 0 : index
    %c0_11 = arith.constant 0 : index
    %12 = vector.load %arg4[%c0_8, %c0_9, %c0_10, %c0_11] : memref<4x4x24x32xf32, #tpu.memory_space<vmem>>, vector<1x4x24x32xf32>
    %13 = vector.shape_cast %12 : vector<1x4x24x32xf32> to vector<4x24x32xf32>
    "tpu.trace_start"() <{level = 10 : i32, message = "hnw,hcw->hnc"}> : () -> ()
    %cst_12 = arith.constant dense<0.000000e+00> : vector<4x16x24xf32>
    %14 = tpu.matmul %11, %13, %cst_12 {dimension_numbers = #tpu.dot_dimension_numbers<[2], [2], [1], [1], [0, 0, 0, 1, 1, 1], [0], [0]>} : vector<4x16x32xf32>, vector<4x24x32xf32>, vector<4x16x24xf32> -> vector<4x16x24xf32>
    "tpu.trace_stop"() : () -> ()
    %15 = vector.extract_strided_slice %14 {offsets = [0, 0, 0], sizes = [4, 16, 8], strides = [1, 1, 1]} : vector<4x16x24xf32> to vector<4x16x8xf32>
    %16 = vector.extract_strided_slice %14 {offsets = [0, 0, 8], sizes = [4, 16, 8], strides = [1, 1, 1]} : vector<4x16x24xf32> to vector<4x16x8xf32>
    %17 = vector.extract_strided_slice %14 {offsets = [0, 0, 16], sizes = [4, 16, 8], strides = [1, 1, 1]} : vector<4x16x24xf32> to vector<4x16x8xf32>
    "tpu.trace_start"() <{level = 10 : i32, message = "hjd,hid->hji"}> : () -> ()
    %cst_13 = arith.constant dense<0.000000e+00> : vector<4x16x16xf32>
    %18 = tpu.matmul %15, %16, %cst_13 {dimension_numbers = #tpu.dot_dimension_numbers<[2], [2], [1], [1], [0, 0, 0, 1, 1, 1], [0], [0]>} : vector<4x16x8xf32>, vector<4x16x8xf32>, vector<4x16x16xf32> -> vector<4x16x16xf32>
    %cst_14 = arith.constant -5.000000e+00 : f32
    %cst_15 = arith.constant 5.000000e+00 : f32
    "tpu.trace_stop"() : () -> ()
    %19 = vector.broadcast %cst_14 : f32 to vector<4x16x16xf32>
    %20 = arith.maximumf %19, %18 : vector<4x16x16xf32>
    %21 = vector.broadcast %cst_15 : f32 to vector<4x16x16xf32>
    %22 = arith.minimumf %21, %20 : vector<4x16x16xf32>
    %23 = math.exp %22 : vector<4x16x16xf32>
    %24 = vector.shape_cast %9 : vector<16x16xf32> to vector<1x16x16xf32>
    %25 = vector.broadcast %24 : vector<1x16x16xf32> to vector<4x16x16xf32>
    %26 = arith.mulf %23, %25 : vector<4x16x16xf32>
    "tpu.trace_start"() <{level = 10 : i32, message = "hji,hid->hjd"}> : () -> ()
    %cst_16 = arith.constant dense<0.000000e+00> : vector<4x16x8xf32>
    %27 = tpu.matmul %26, %17, %cst_16 {dimension_numbers = #tpu.dot_dimension_numbers<[2], [1], [1], [2], [0, 0, 0, 1, 1, 2], [0], [0]>} : vector<4x16x16xf32>, vector<4x16x8xf32>, vector<4x16x8xf32> -> vector<4x16x8xf32>
    "tpu.trace_stop"() : () -> ()
    %cst_17 = arith.constant dense<0.000000e+00> : vector<4x16xf32>
    %28 = vector.multi_reduction <add>, %26, %cst_17 [2] : vector<4x16x16xf32> to vector<4x16xf32>
    %29 = vector.shape_cast %28 : vector<4x16xf32> to vector<4x16x1xf32>
    %cst_18 = arith.constant 9.99999997E-7 : f32
    %30 = vector.broadcast %cst_18 : f32 to vector<4x16x1xf32>
    %31 = arith.addf %29, %30 : vector<4x16x1xf32>
    %32 = tpu.reciprocal %31 {approx = true} : vector<4x16x1xf32> -> vector<4x16x1xf32>
    %33 = vector.broadcast %32 : vector<4x16x1xf32> to vector<4x16x8xf32>
    %34 = arith.mulf %27, %33 : vector<4x16x8xf32>
    %c0_19 = arith.constant 0 : index
    %c0_20 = arith.constant 0 : index
    %c0_21 = arith.constant 0 : index
    %c0_22 = arith.constant 0 : index
    %35 = vector.load %arg5[%c0_19, %c0_20, %c0_21, %c0_22] : memref<4x4x8x32xf32, #tpu.memory_space<vmem>>, vector<1x4x8x32xf32>
    %36 = vector.shape_cast %35 : vector<1x4x8x32xf32> to vector<4x8x32xf32>
    "tpu.trace_start"() <{level = 10 : i32, message = "hjd,hdw->hjw"}> : () -> ()
    %cst_23 = arith.constant dense<0.000000e+00> : vector<4x16x32xf32>
    %37 = tpu.matmul %34, %36, %cst_23 {dimension_numbers = #tpu.dot_dimension_numbers<[2], [1], [1], [2], [0, 0, 0, 1, 1, 2], [0], [0]>} : vector<4x16x8xf32>, vector<4x8x32xf32>, vector<4x16x32xf32> -> vector<4x16x32xf32>
    "tpu.trace_stop"() : () -> ()
    %cst_24 = arith.constant dense<0.000000e+00> : vector<16x32xf32>
    %38 = vector.multi_reduction <add>, %37, %cst_24 [0] : vector<4x16x32xf32> to vector<16x32xf32>
    %39 = arith.addf %5, %38 : vector<16x32xf32>
    %c0_25 = arith.constant 0 : index
    %c0_26 = arith.constant 0 : index
    %c0_27 = arith.constant 0 : index
    %40 = vector.load %arg6[%c0_25, %c0_26, %c0_27] : memref<4x1x32xf32, #tpu.memory_space<vmem>>, vector<1x1x32xf32>
    %41 = vector.shape_cast %40 : vector<1x1x32xf32> to vector<1x32xf32>
    %42 = vector.broadcast %41 : vector<1x32xf32> to vector<16x32xf32>
    %43 = arith.addf %39, %42 : vector<16x32xf32>
    %c0_28 = arith.constant 0 : index
    %c0_29 = arith.constant 0 : index
    %c0_30 = arith.constant 0 : index
    %44 = vector.load %arg7[%c0_28, %c0_29, %c0_30] : memref<4x1x32xf32, #tpu.memory_space<vmem>>, vector<1x1x32xf32>
    %45 = vector.shape_cast %44 : vector<1x1x32xf32> to vector<1x32xf32>
    %c0_31 = arith.constant 0 : index
    %c0_32 = arith.constant 0 : index
    %c0_33 = arith.constant 0 : index
    %46 = vector.load %arg8[%c0_31, %c0_32, %c0_33] : memref<4x1x32xf32, #tpu.memory_space<vmem>>, vector<1x1x32xf32>
    %47 = vector.shape_cast %46 : vector<1x1x32xf32> to vector<1x32xf32>
    %cst_34 = arith.constant dense<0.000000e+00> : vector<32xf32>
    %48 = vector.multi_reduction <add>, %43, %cst_34 [0] : vector<16x32xf32> to vector<32xf32>
    %49 = vector.shape_cast %48 : vector<32xf32> to vector<1x32xf32>
    %cst_35 = arith.constant 1.600000e+01 : f32
    %50 = vector.broadcast %cst_35 : f32 to vector<1x32xf32>
    %51 = arith.divf %49, %50 : vector<1x32xf32>
    %52 = vector.broadcast %51 : vector<1x32xf32> to vector<16x32xf32>
    %53 = arith.subf %43, %52 : vector<16x32xf32>
    %54 = arith.mulf %53, %53 : vector<16x32xf32>
    %cst_36 = arith.constant dense<0.000000e+00> : vector<32xf32>
    %55 = vector.multi_reduction <add>, %54, %cst_36 [0] : vector<16x32xf32> to vector<32xf32>
    %56 = vector.shape_cast %55 : vector<32xf32> to vector<1x32xf32>
    %cst_37 = arith.constant 1.600000e+01 : f32
    %57 = vector.broadcast %cst_37 : f32 to vector<1x32xf32>
    %58 = arith.divf %56, %57 : vector<1x32xf32>
    %cst_38 = arith.constant 9.99999974E-6 : f32
    %59 = vector.broadcast %cst_38 : f32 to vector<1x32xf32>
    %60 = arith.addf %58, %59 : vector<1x32xf32>
    %61 = math.rsqrt %60 : vector<1x32xf32>
    %62 = vector.broadcast %61 : vector<1x32xf32> to vector<16x32xf32>
    %63 = arith.mulf %53, %62 : vector<16x32xf32>
    %64 = vector.broadcast %45 : vector<1x32xf32> to vector<16x32xf32>
    %65 = arith.mulf %63, %64 : vector<16x32xf32>
    %66 = vector.broadcast %47 : vector<1x32xf32> to vector<16x32xf32>
    %67 = arith.addf %65, %66 : vector<16x32xf32>
    %c0_39 = arith.constant 0 : index
    %c0_40 = arith.constant 0 : index
    %c0_41 = arith.constant 0 : index
    %68 = vector.load %arg9[%c0_39, %c0_40, %c0_41] : memref<4x32x64xf32, #tpu.memory_space<vmem>>, vector<1x32x64xf32>
    %69 = vector.shape_cast %68 : vector<1x32x64xf32> to vector<32x64xf32>
    %cst_42 = arith.constant dense<0.000000e+00> : vector<16x64xf32>
    %70 = tpu.matmul %67, %69, %cst_42 {dimension_numbers = #tpu.dot_dimension_numbers<[1], [0], [0], [1], [0, 0, 1, 1], [], []>} : vector<16x32xf32>, vector<32x64xf32>, vector<16x64xf32> -> vector<16x64xf32>
    %c0_43 = arith.constant 0 : index
    %c0_44 = arith.constant 0 : index
    %c0_45 = arith.constant 0 : index
    %71 = vector.load %arg10[%c0_43, %c0_44, %c0_45] : memref<4x1x64xf32, #tpu.memory_space<vmem>>, vector<1x1x64xf32>
    %72 = vector.shape_cast %71 : vector<1x1x64xf32> to vector<1x64xf32>
    %73 = vector.broadcast %72 : vector<1x64xf32> to vector<16x64xf32>
    %74 = arith.addf %70, %73 : vector<16x64xf32>
    %cst_46 = arith.constant 0.000000e+00 : f32
    %75 = vector.broadcast %cst_46 : f32 to vector<16x64xf32>
    %76 = arith.maximumf %74, %75 : vector<16x64xf32>
    %c0_47 = arith.constant 0 : index
    %c0_48 = arith.constant 0 : index
    %c0_49 = arith.constant 0 : index
    %77 = vector.load %arg11[%c0_47, %c0_48, %c0_49] : memref<4x64x32xf32, #tpu.memory_space<vmem>>, vector<1x64x32xf32>
    %78 = vector.shape_cast %77 : vector<1x64x32xf32> to vector<64x32xf32>
    %cst_50 = arith.constant dense<0.000000e+00> : vector<16x32xf32>
    %79 = tpu.matmul %76, %78, %cst_50 {dimension_numbers = #tpu.dot_dimension_numbers<[1], [0], [0], [1], [0, 0, 1, 1], [], []>} : vector<16x64xf32>, vector<64x32xf32>, vector<16x32xf32> -> vector<16x32xf32>
    %c0_51 = arith.constant 0 : index
    %c0_52 = arith.constant 0 : index
    %c0_53 = arith.constant 0 : index
    %80 = vector.load %arg12[%c0_51, %c0_52, %c0_53] : memref<4x1x32xf32, #tpu.memory_space<vmem>>, vector<1x1x32xf32>
    %81 = vector.shape_cast %80 : vector<1x1x32xf32> to vector<1x32xf32>
    %82 = vector.broadcast %81 : vector<1x32xf32> to vector<16x32xf32>
    %83 = arith.addf %79, %82 : vector<16x32xf32>
    %84 = arith.addf %67, %83 : vector<16x32xf32>
    %c0_54 = arith.constant 0 : index
    %c0_55 = arith.constant 0 : index
    %c0_56 = arith.constant 0 : index
    %85 = vector.load %arg13[%c0_54, %c0_55, %c0_56] : memref<4x1x32xf32, #tpu.memory_space<vmem>>, vector<1x1x32xf32>
    %86 = vector.shape_cast %85 : vector<1x1x32xf32> to vector<1x32xf32>
    %c0_57 = arith.constant 0 : index
    %c0_58 = arith.constant 0 : index
    %c0_59 = arith.constant 0 : index
    %87 = vector.load %arg14[%c0_57, %c0_58, %c0_59] : memref<4x1x32xf32, #tpu.memory_space<vmem>>, vector<1x1x32xf32>
    %88 = vector.shape_cast %87 : vector<1x1x32xf32> to vector<1x32xf32>
    %cst_60 = arith.constant dense<0.000000e+00> : vector<32xf32>
    %89 = vector.multi_reduction <add>, %84, %cst_60 [0] : vector<16x32xf32> to vector<32xf32>
    %90 = vector.shape_cast %89 : vector<32xf32> to vector<1x32xf32>
    %cst_61 = arith.constant 1.600000e+01 : f32
    %91 = vector.broadcast %cst_61 : f32 to vector<1x32xf32>
    %92 = arith.divf %90, %91 : vector<1x32xf32>
    %93 = vector.broadcast %92 : vector<1x32xf32> to vector<16x32xf32>
    %94 = arith.subf %84, %93 : vector<16x32xf32>
    %95 = arith.mulf %94, %94 : vector<16x32xf32>
    %cst_62 = arith.constant dense<0.000000e+00> : vector<32xf32>
    %96 = vector.multi_reduction <add>, %95, %cst_62 [0] : vector<16x32xf32> to vector<32xf32>
    %97 = vector.shape_cast %96 : vector<32xf32> to vector<1x32xf32>
    %cst_63 = arith.constant 1.600000e+01 : f32
    %98 = vector.broadcast %cst_63 : f32 to vector<1x32xf32>
    %99 = arith.divf %97, %98 : vector<1x32xf32>
    %cst_64 = arith.constant 9.99999974E-6 : f32
    %100 = vector.broadcast %cst_64 : f32 to vector<1x32xf32>
    %101 = arith.addf %99, %100 : vector<1x32xf32>
    %102 = math.rsqrt %101 : vector<1x32xf32>
    %103 = vector.broadcast %102 : vector<1x32xf32> to vector<16x32xf32>
    %104 = arith.mulf %94, %103 : vector<16x32xf32>
    %105 = vector.broadcast %86 : vector<1x32xf32> to vector<16x32xf32>
    %106 = arith.mulf %104, %105 : vector<16x32xf32>
    %107 = vector.broadcast %88 : vector<1x32xf32> to vector<16x32xf32>
    %108 = arith.addf %106, %107 : vector<16x32xf32>
    %109 = vector.extract_strided_slice %7 {offsets = [0, 0, 0], sizes = [1, 16, 16], strides = [1, 1, 1]} : vector<2x16x16xf32> to vector<1x16x16xf32>
    %110 = vector.shape_cast %109 : vector<1x16x16xf32> to vector<16x16xf32>
    %111 = vector.shape_cast %108 : vector<16x32xf32> to vector<1x16x32xf32>
    %112 = vector.broadcast %111 : vector<1x16x32xf32> to vector<4x16x32xf32>
    %c1 = arith.constant 1 : index
    %c0_65 = arith.constant 0 : index
    %c0_66 = arith.constant 0 : index
    %c0_67 = arith.constant 0 : index
    %113 = vector.load %arg4[%c1, %c0_65, %c0_66, %c0_67] : memref<4x4x24x32xf32, #tpu.memory_space<vmem>>, vector<1x4x24x32xf32>
    %114 = vector.shape_cast %113 : vector<1x4x24x32xf32> to vector<4x24x32xf32>
    "tpu.trace_start"() <{level = 10 : i32, message = "hnw,hcw->hnc"}> : () -> ()
    %cst_68 = arith.constant dense<0.000000e+00> : vector<4x16x24xf32>
    %115 = tpu.matmul %112, %114, %cst_68 {dimension_numbers = #tpu.dot_dimension_numbers<[2], [2], [1], [1], [0, 0, 0, 1, 1, 1], [0], [0]>} : vector<4x16x32xf32>, vector<4x24x32xf32>, vector<4x16x24xf32> -> vector<4x16x24xf32>
    "tpu.trace_stop"() : () -> ()
    %116 = vector.extract_strided_slice %115 {offsets = [0, 0, 0], sizes = [4, 16, 8], strides = [1, 1, 1]} : vector<4x16x24xf32> to vector<4x16x8xf32>
    %117 = vector.extract_strided_slice %115 {offsets = [0, 0, 8], sizes = [4, 16, 8], strides = [1, 1, 1]} : vector<4x16x24xf32> to vector<4x16x8xf32>
    %118 = vector.extract_strided_slice %115 {offsets = [0, 0, 16], sizes = [4, 16, 8], strides = [1, 1, 1]} : vector<4x16x24xf32> to vector<4x16x8xf32>
    "tpu.trace_start"() <{level = 10 : i32, message = "hjd,hid->hji"}> : () -> ()
    %cst_69 = arith.constant dense<0.000000e+00> : vector<4x16x16xf32>
    %119 = tpu.matmul %116, %117, %cst_69 {dimension_numbers = #tpu.dot_dimension_numbers<[2], [2], [1], [1], [0, 0, 0, 1, 1, 1], [0], [0]>} : vector<4x16x8xf32>, vector<4x16x8xf32>, vector<4x16x16xf32> -> vector<4x16x16xf32>
    %cst_70 = arith.constant -5.000000e+00 : f32
    %cst_71 = arith.constant 5.000000e+00 : f32
    "tpu.trace_stop"() : () -> ()
    %120 = vector.broadcast %cst_70 : f32 to vector<4x16x16xf32>
    %121 = arith.maximumf %120, %119 : vector<4x16x16xf32>
    %122 = vector.broadcast %cst_71 : f32 to vector<4x16x16xf32>
    %123 = arith.minimumf %122, %121 : vector<4x16x16xf32>
    %124 = math.exp %123 : vector<4x16x16xf32>
    %125 = vector.shape_cast %110 : vector<16x16xf32> to vector<1x16x16xf32>
    %126 = vector.broadcast %125 : vector<1x16x16xf32> to vector<4x16x16xf32>
    %127 = arith.mulf %124, %126 : vector<4x16x16xf32>
    "tpu.trace_start"() <{level = 10 : i32, message = "hji,hid->hjd"}> : () -> ()
    %cst_72 = arith.constant dense<0.000000e+00> : vector<4x16x8xf32>
    %128 = tpu.matmul %127, %118, %cst_72 {dimension_numbers = #tpu.dot_dimension_numbers<[2], [1], [1], [2], [0, 0, 0, 1, 1, 2], [0], [0]>} : vector<4x16x16xf32>, vector<4x16x8xf32>, vector<4x16x8xf32> -> vector<4x16x8xf32>
    "tpu.trace_stop"() : () -> ()
    %cst_73 = arith.constant dense<0.000000e+00> : vector<4x16xf32>
    %129 = vector.multi_reduction <add>, %127, %cst_73 [2] : vector<4x16x16xf32> to vector<4x16xf32>
    %130 = vector.shape_cast %129 : vector<4x16xf32> to vector<4x16x1xf32>
    %cst_74 = arith.constant 9.99999997E-7 : f32
    %131 = vector.broadcast %cst_74 : f32 to vector<4x16x1xf32>
    %132 = arith.addf %130, %131 : vector<4x16x1xf32>
    %133 = tpu.reciprocal %132 {approx = true} : vector<4x16x1xf32> -> vector<4x16x1xf32>
    %134 = vector.broadcast %133 : vector<4x16x1xf32> to vector<4x16x8xf32>
    %135 = arith.mulf %128, %134 : vector<4x16x8xf32>
    %c1_75 = arith.constant 1 : index
    %c0_76 = arith.constant 0 : index
    %c0_77 = arith.constant 0 : index
    %c0_78 = arith.constant 0 : index
    %136 = vector.load %arg5[%c1_75, %c0_76, %c0_77, %c0_78] : memref<4x4x8x32xf32, #tpu.memory_space<vmem>>, vector<1x4x8x32xf32>
    %137 = vector.shape_cast %136 : vector<1x4x8x32xf32> to vector<4x8x32xf32>
    "tpu.trace_start"() <{level = 10 : i32, message = "hjd,hdw->hjw"}> : () -> ()
    %cst_79 = arith.constant dense<0.000000e+00> : vector<4x16x32xf32>
    %138 = tpu.matmul %135, %137, %cst_79 {dimension_numbers = #tpu.dot_dimension_numbers<[2], [1], [1], [2], [0, 0, 0, 1, 1, 2], [0], [0]>} : vector<4x16x8xf32>, vector<4x8x32xf32>, vector<4x16x32xf32> -> vector<4x16x32xf32>
    "tpu.trace_stop"() : () -> ()
    %cst_80 = arith.constant dense<0.000000e+00> : vector<16x32xf32>
    %139 = vector.multi_reduction <add>, %138, %cst_80 [0] : vector<4x16x32xf32> to vector<16x32xf32>
    %140 = arith.addf %108, %139 : vector<16x32xf32>
    %c1_81 = arith.constant 1 : index
    %c0_82 = arith.constant 0 : index
    %c0_83 = arith.constant 0 : index
    %141 = vector.load %arg6[%c1_81, %c0_82, %c0_83] : memref<4x1x32xf32, #tpu.memory_space<vmem>>, vector<1x1x32xf32>
    %142 = vector.shape_cast %141 : vector<1x1x32xf32> to vector<1x32xf32>
    %143 = vector.broadcast %142 : vector<1x32xf32> to vector<16x32xf32>
    %144 = arith.addf %140, %143 : vector<16x32xf32>
    %c1_84 = arith.constant 1 : index
    %c0_85 = arith.constant 0 : index
    %c0_86 = arith.constant 0 : index
    %145 = vector.load %arg7[%c1_84, %c0_85, %c0_86] : memref<4x1x32xf32, #tpu.memory_space<vmem>>, vector<1x1x32xf32>
    %146 = vector.shape_cast %145 : vector<1x1x32xf32> to vector<1x32xf32>
    %c1_87 = arith.constant 1 : index
    %c0_88 = arith.constant 0 : index
    %c0_89 = arith.constant 0 : index
    %147 = vector.load %arg8[%c1_87, %c0_88, %c0_89] : memref<4x1x32xf32, #tpu.memory_space<vmem>>, vector<1x1x32xf32>
    %148 = vector.shape_cast %147 : vector<1x1x32xf32> to vector<1x32xf32>
    %cst_90 = arith.constant dense<0.000000e+00> : vector<32xf32>
    %149 = vector.multi_reduction <add>, %144, %cst_90 [0] : vector<16x32xf32> to vector<32xf32>
    %150 = vector.shape_cast %149 : vector<32xf32> to vector<1x32xf32>
    %cst_91 = arith.constant 1.600000e+01 : f32
    %151 = vector.broadcast %cst_91 : f32 to vector<1x32xf32>
    %152 = arith.divf %150, %151 : vector<1x32xf32>
    %153 = vector.broadcast %152 : vector<1x32xf32> to vector<16x32xf32>
    %154 = arith.subf %144, %153 : vector<16x32xf32>
    %155 = arith.mulf %154, %154 : vector<16x32xf32>
    %cst_92 = arith.constant dense<0.000000e+00> : vector<32xf32>
    %156 = vector.multi_reduction <add>, %155, %cst_92 [0] : vector<16x32xf32> to vector<32xf32>
    %157 = vector.shape_cast %156 : vector<32xf32> to vector<1x32xf32>
    %cst_93 = arith.constant 1.600000e+01 : f32
    %158 = vector.broadcast %cst_93 : f32 to vector<1x32xf32>
    %159 = arith.divf %157, %158 : vector<1x32xf32>
    %cst_94 = arith.constant 9.99999974E-6 : f32
    %160 = vector.broadcast %cst_94 : f32 to vector<1x32xf32>
    %161 = arith.addf %159, %160 : vector<1x32xf32>
    %162 = math.rsqrt %161 : vector<1x32xf32>
    %163 = vector.broadcast %162 : vector<1x32xf32> to vector<16x32xf32>
    %164 = arith.mulf %154, %163 : vector<16x32xf32>
    %165 = vector.broadcast %146 : vector<1x32xf32> to vector<16x32xf32>
    %166 = arith.mulf %164, %165 : vector<16x32xf32>
    %167 = vector.broadcast %148 : vector<1x32xf32> to vector<16x32xf32>
    %168 = arith.addf %166, %167 : vector<16x32xf32>
    %c1_95 = arith.constant 1 : index
    %c0_96 = arith.constant 0 : index
    %c0_97 = arith.constant 0 : index
    %169 = vector.load %arg9[%c1_95, %c0_96, %c0_97] : memref<4x32x64xf32, #tpu.memory_space<vmem>>, vector<1x32x64xf32>
    %170 = vector.shape_cast %169 : vector<1x32x64xf32> to vector<32x64xf32>
    %cst_98 = arith.constant dense<0.000000e+00> : vector<16x64xf32>
    %171 = tpu.matmul %168, %170, %cst_98 {dimension_numbers = #tpu.dot_dimension_numbers<[1], [0], [0], [1], [0, 0, 1, 1], [], []>} : vector<16x32xf32>, vector<32x64xf32>, vector<16x64xf32> -> vector<16x64xf32>
    %c1_99 = arith.constant 1 : index
    %c0_100 = arith.constant 0 : index
    %c0_101 = arith.constant 0 : index
    %172 = vector.load %arg10[%c1_99, %c0_100, %c0_101] : memref<4x1x64xf32, #tpu.memory_space<vmem>>, vector<1x1x64xf32>
    %173 = vector.shape_cast %172 : vector<1x1x64xf32> to vector<1x64xf32>
    %174 = vector.broadcast %173 : vector<1x64xf32> to vector<16x64xf32>
    %175 = arith.addf %171, %174 : vector<16x64xf32>
    %cst_102 = arith.constant 0.000000e+00 : f32
    %176 = vector.broadcast %cst_102 : f32 to vector<16x64xf32>
    %177 = arith.maximumf %175, %176 : vector<16x64xf32>
    %c1_103 = arith.constant 1 : index
    %c0_104 = arith.constant 0 : index
    %c0_105 = arith.constant 0 : index
    %178 = vector.load %arg11[%c1_103, %c0_104, %c0_105] : memref<4x64x32xf32, #tpu.memory_space<vmem>>, vector<1x64x32xf32>
    %179 = vector.shape_cast %178 : vector<1x64x32xf32> to vector<64x32xf32>
    %cst_106 = arith.constant dense<0.000000e+00> : vector<16x32xf32>
    %180 = tpu.matmul %177, %179, %cst_106 {dimension_numbers = #tpu.dot_dimension_numbers<[1], [0], [0], [1], [0, 0, 1, 1], [], []>} : vector<16x64xf32>, vector<64x32xf32>, vector<16x32xf32> -> vector<16x32xf32>
    %c1_107 = arith.constant 1 : index
    %c0_108 = arith.constant 0 : index
    %c0_109 = arith.constant 0 : index
    %181 = vector.load %arg12[%c1_107, %c0_108, %c0_109] : memref<4x1x32xf32, #tpu.memory_space<vmem>>, vector<1x1x32xf32>
    %182 = vector.shape_cast %181 : vector<1x1x32xf32> to vector<1x32xf32>
    %183 = vector.broadcast %182 : vector<1x32xf32> to vector<16x32xf32>
    %184 = arith.addf %180, %183 : vector<16x32xf32>
    %185 = arith.addf %168, %184 : vector<16x32xf32>
    %c1_110 = arith.constant 1 : index
    %c0_111 = arith.constant 0 : index
    %c0_112 = arith.constant 0 : index
    %186 = vector.load %arg13[%c1_110, %c0_111, %c0_112] : memref<4x1x32xf32, #tpu.memory_space<vmem>>, vector<1x1x32xf32>
    %187 = vector.shape_cast %186 : vector<1x1x32xf32> to vector<1x32xf32>
    %c1_113 = arith.constant 1 : index
    %c0_114 = arith.constant 0 : index
    %c0_115 = arith.constant 0 : index
    %188 = vector.load %arg14[%c1_113, %c0_114, %c0_115] : memref<4x1x32xf32, #tpu.memory_space<vmem>>, vector<1x1x32xf32>
    %189 = vector.shape_cast %188 : vector<1x1x32xf32> to vector<1x32xf32>
    %cst_116 = arith.constant dense<0.000000e+00> : vector<32xf32>
    %190 = vector.multi_reduction <add>, %185, %cst_116 [0] : vector<16x32xf32> to vector<32xf32>
    %191 = vector.shape_cast %190 : vector<32xf32> to vector<1x32xf32>
    %cst_117 = arith.constant 1.600000e+01 : f32
    %192 = vector.broadcast %cst_117 : f32 to vector<1x32xf32>
    %193 = arith.divf %191, %192 : vector<1x32xf32>
    %194 = vector.broadcast %193 : vector<1x32xf32> to vector<16x32xf32>
    %195 = arith.subf %185, %194 : vector<16x32xf32>
    %196 = arith.mulf %195, %195 : vector<16x32xf32>
    %cst_118 = arith.constant dense<0.000000e+00> : vector<32xf32>
    %197 = vector.multi_reduction <add>, %196, %cst_118 [0] : vector<16x32xf32> to vector<32xf32>
    %198 = vector.shape_cast %197 : vector<32xf32> to vector<1x32xf32>
    %cst_119 = arith.constant 1.600000e+01 : f32
    %199 = vector.broadcast %cst_119 : f32 to vector<1x32xf32>
    %200 = arith.divf %198, %199 : vector<1x32xf32>
    %cst_120 = arith.constant 9.99999974E-6 : f32
    %201 = vector.broadcast %cst_120 : f32 to vector<1x32xf32>
    %202 = arith.addf %200, %201 : vector<1x32xf32>
    %203 = math.rsqrt %202 : vector<1x32xf32>
    %204 = vector.broadcast %203 : vector<1x32xf32> to vector<16x32xf32>
    %205 = arith.mulf %195, %204 : vector<16x32xf32>
    %206 = vector.broadcast %187 : vector<1x32xf32> to vector<16x32xf32>
    %207 = arith.mulf %205, %206 : vector<16x32xf32>
    %208 = vector.broadcast %189 : vector<1x32xf32> to vector<16x32xf32>
    %209 = arith.addf %207, %208 : vector<16x32xf32>
    %210 = vector.extract_strided_slice %7 {offsets = [1, 0, 0], sizes = [1, 16, 16], strides = [1, 1, 1]} : vector<2x16x16xf32> to vector<1x16x16xf32>
    %211 = vector.shape_cast %210 : vector<1x16x16xf32> to vector<16x16xf32>
    %212 = vector.shape_cast %209 : vector<16x32xf32> to vector<1x16x32xf32>
    %213 = vector.broadcast %212 : vector<1x16x32xf32> to vector<4x16x32xf32>
    %c2 = arith.constant 2 : index
    %c0_121 = arith.constant 0 : index
    %c0_122 = arith.constant 0 : index
    %c0_123 = arith.constant 0 : index
    %214 = vector.load %arg4[%c2, %c0_121, %c0_122, %c0_123] : memref<4x4x24x32xf32, #tpu.memory_space<vmem>>, vector<1x4x24x32xf32>
    %215 = vector.shape_cast %214 : vector<1x4x24x32xf32> to vector<4x24x32xf32>
    "tpu.trace_start"() <{level = 10 : i32, message = "hnw,hcw->hnc"}> : () -> ()
    %cst_124 = arith.constant dense<0.000000e+00> : vector<4x16x24xf32>
    %216 = tpu.matmul %213, %215, %cst_124 {dimension_numbers = #tpu.dot_dimension_numbers<[2], [2], [1], [1], [0, 0, 0, 1, 1, 1], [0], [0]>} : vector<4x16x32xf32>, vector<4x24x32xf32>, vector<4x16x24xf32> -> vector<4x16x24xf32>
    "tpu.trace_stop"() : () -> ()
    %217 = vector.extract_strided_slice %216 {offsets = [0, 0, 0], sizes = [4, 16, 8], strides = [1, 1, 1]} : vector<4x16x24xf32> to vector<4x16x8xf32>
    %218 = vector.extract_strided_slice %216 {offsets = [0, 0, 8], sizes = [4, 16, 8], strides = [1, 1, 1]} : vector<4x16x24xf32> to vector<4x16x8xf32>
    %219 = vector.extract_strided_slice %216 {offsets = [0, 0, 16], sizes = [4, 16, 8], strides = [1, 1, 1]} : vector<4x16x24xf32> to vector<4x16x8xf32>
    "tpu.trace_start"() <{level = 10 : i32, message = "hjd,hid->hji"}> : () -> ()
    %cst_125 = arith.constant dense<0.000000e+00> : vector<4x16x16xf32>
    %220 = tpu.matmul %217, %218, %cst_125 {dimension_numbers = #tpu.dot_dimension_numbers<[2], [2], [1], [1], [0, 0, 0, 1, 1, 1], [0], [0]>} : vector<4x16x8xf32>, vector<4x16x8xf32>, vector<4x16x16xf32> -> vector<4x16x16xf32>
    %cst_126 = arith.constant -5.000000e+00 : f32
    %cst_127 = arith.constant 5.000000e+00 : f32
    "tpu.trace_stop"() : () -> ()
    %221 = vector.broadcast %cst_126 : f32 to vector<4x16x16xf32>
    %222 = arith.maximumf %221, %220 : vector<4x16x16xf32>
    %223 = vector.broadcast %cst_127 : f32 to vector<4x16x16xf32>
    %224 = arith.minimumf %223, %222 : vector<4x16x16xf32>
    %225 = math.exp %224 : vector<4x16x16xf32>
    %226 = vector.shape_cast %211 : vector<16x16xf32> to vector<1x16x16xf32>
    %227 = vector.broadcast %226 : vector<1x16x16xf32> to vector<4x16x16xf32>
    %228 = arith.mulf %225, %227 : vector<4x16x16xf32>
    "tpu.trace_start"() <{level = 10 : i32, message = "hji,hid->hjd"}> : () -> ()
    %cst_128 = arith.constant dense<0.000000e+00> : vector<4x16x8xf32>
    %229 = tpu.matmul %228, %219, %cst_128 {dimension_numbers = #tpu.dot_dimension_numbers<[2], [1], [1], [2], [0, 0, 0, 1, 1, 2], [0], [0]>} : vector<4x16x16xf32>, vector<4x16x8xf32>, vector<4x16x8xf32> -> vector<4x16x8xf32>
    "tpu.trace_stop"() : () -> ()
    %cst_129 = arith.constant dense<0.000000e+00> : vector<4x16xf32>
    %230 = vector.multi_reduction <add>, %228, %cst_129 [2] : vector<4x16x16xf32> to vector<4x16xf32>
    %231 = vector.shape_cast %230 : vector<4x16xf32> to vector<4x16x1xf32>
    %cst_130 = arith.constant 9.99999997E-7 : f32
    %232 = vector.broadcast %cst_130 : f32 to vector<4x16x1xf32>
    %233 = arith.addf %231, %232 : vector<4x16x1xf32>
    %234 = tpu.reciprocal %233 {approx = true} : vector<4x16x1xf32> -> vector<4x16x1xf32>
    %235 = vector.broadcast %234 : vector<4x16x1xf32> to vector<4x16x8xf32>
    %236 = arith.mulf %229, %235 : vector<4x16x8xf32>
    %c2_131 = arith.constant 2 : index
    %c0_132 = arith.constant 0 : index
    %c0_133 = arith.constant 0 : index
    %c0_134 = arith.constant 0 : index
    %237 = vector.load %arg5[%c2_131, %c0_132, %c0_133, %c0_134] : memref<4x4x8x32xf32, #tpu.memory_space<vmem>>, vector<1x4x8x32xf32>
    %238 = vector.shape_cast %237 : vector<1x4x8x32xf32> to vector<4x8x32xf32>
    "tpu.trace_start"() <{level = 10 : i32, message = "hjd,hdw->hjw"}> : () -> ()
    %cst_135 = arith.constant dense<0.000000e+00> : vector<4x16x32xf32>
    %239 = tpu.matmul %236, %238, %cst_135 {dimension_numbers = #tpu.dot_dimension_numbers<[2], [1], [1], [2], [0, 0, 0, 1, 1, 2], [0], [0]>} : vector<4x16x8xf32>, vector<4x8x32xf32>, vector<4x16x32xf32> -> vector<4x16x32xf32>
    "tpu.trace_stop"() : () -> ()
    %cst_136 = arith.constant dense<0.000000e+00> : vector<16x32xf32>
    %240 = vector.multi_reduction <add>, %239, %cst_136 [0] : vector<4x16x32xf32> to vector<16x32xf32>
    %241 = arith.addf %209, %240 : vector<16x32xf32>
    %c2_137 = arith.constant 2 : index
    %c0_138 = arith.constant 0 : index
    %c0_139 = arith.constant 0 : index
    %242 = vector.load %arg6[%c2_137, %c0_138, %c0_139] : memref<4x1x32xf32, #tpu.memory_space<vmem>>, vector<1x1x32xf32>
    %243 = vector.shape_cast %242 : vector<1x1x32xf32> to vector<1x32xf32>
    %244 = vector.broadcast %243 : vector<1x32xf32> to vector<16x32xf32>
    %245 = arith.addf %241, %244 : vector<16x32xf32>
    %c2_140 = arith.constant 2 : index
    %c0_141 = arith.constant 0 : index
    %c0_142 = arith.constant 0 : index
    %246 = vector.load %arg7[%c2_140, %c0_141, %c0_142] : memref<4x1x32xf32, #tpu.memory_space<vmem>>, vector<1x1x32xf32>
    %247 = vector.shape_cast %246 : vector<1x1x32xf32> to vector<1x32xf32>
    %c2_143 = arith.constant 2 : index
    %c0_144 = arith.constant 0 : index
    %c0_145 = arith.constant 0 : index
    %248 = vector.load %arg8[%c2_143, %c0_144, %c0_145] : memref<4x1x32xf32, #tpu.memory_space<vmem>>, vector<1x1x32xf32>
    %249 = vector.shape_cast %248 : vector<1x1x32xf32> to vector<1x32xf32>
    %cst_146 = arith.constant dense<0.000000e+00> : vector<32xf32>
    %250 = vector.multi_reduction <add>, %245, %cst_146 [0] : vector<16x32xf32> to vector<32xf32>
    %251 = vector.shape_cast %250 : vector<32xf32> to vector<1x32xf32>
    %cst_147 = arith.constant 1.600000e+01 : f32
    %252 = vector.broadcast %cst_147 : f32 to vector<1x32xf32>
    %253 = arith.divf %251, %252 : vector<1x32xf32>
    %254 = vector.broadcast %253 : vector<1x32xf32> to vector<16x32xf32>
    %255 = arith.subf %245, %254 : vector<16x32xf32>
    %256 = arith.mulf %255, %255 : vector<16x32xf32>
    %cst_148 = arith.constant dense<0.000000e+00> : vector<32xf32>
    %257 = vector.multi_reduction <add>, %256, %cst_148 [0] : vector<16x32xf32> to vector<32xf32>
    %258 = vector.shape_cast %257 : vector<32xf32> to vector<1x32xf32>
    %cst_149 = arith.constant 1.600000e+01 : f32
    %259 = vector.broadcast %cst_149 : f32 to vector<1x32xf32>
    %260 = arith.divf %258, %259 : vector<1x32xf32>
    %cst_150 = arith.constant 9.99999974E-6 : f32
    %261 = vector.broadcast %cst_150 : f32 to vector<1x32xf32>
    %262 = arith.addf %260, %261 : vector<1x32xf32>
    %263 = math.rsqrt %262 : vector<1x32xf32>
    %264 = vector.broadcast %263 : vector<1x32xf32> to vector<16x32xf32>
    %265 = arith.mulf %255, %264 : vector<16x32xf32>
    %266 = vector.broadcast %247 : vector<1x32xf32> to vector<16x32xf32>
    %267 = arith.mulf %265, %266 : vector<16x32xf32>
    %268 = vector.broadcast %249 : vector<1x32xf32> to vector<16x32xf32>
    %269 = arith.addf %267, %268 : vector<16x32xf32>
    %c2_151 = arith.constant 2 : index
    %c0_152 = arith.constant 0 : index
    %c0_153 = arith.constant 0 : index
    %270 = vector.load %arg9[%c2_151, %c0_152, %c0_153] : memref<4x32x64xf32, #tpu.memory_space<vmem>>, vector<1x32x64xf32>
    %271 = vector.shape_cast %270 : vector<1x32x64xf32> to vector<32x64xf32>
    %cst_154 = arith.constant dense<0.000000e+00> : vector<16x64xf32>
    %272 = tpu.matmul %269, %271, %cst_154 {dimension_numbers = #tpu.dot_dimension_numbers<[1], [0], [0], [1], [0, 0, 1, 1], [], []>} : vector<16x32xf32>, vector<32x64xf32>, vector<16x64xf32> -> vector<16x64xf32>
    %c2_155 = arith.constant 2 : index
    %c0_156 = arith.constant 0 : index
    %c0_157 = arith.constant 0 : index
    %273 = vector.load %arg10[%c2_155, %c0_156, %c0_157] : memref<4x1x64xf32, #tpu.memory_space<vmem>>, vector<1x1x64xf32>
    %274 = vector.shape_cast %273 : vector<1x1x64xf32> to vector<1x64xf32>
    %275 = vector.broadcast %274 : vector<1x64xf32> to vector<16x64xf32>
    %276 = arith.addf %272, %275 : vector<16x64xf32>
    %cst_158 = arith.constant 0.000000e+00 : f32
    %277 = vector.broadcast %cst_158 : f32 to vector<16x64xf32>
    %278 = arith.maximumf %276, %277 : vector<16x64xf32>
    %c2_159 = arith.constant 2 : index
    %c0_160 = arith.constant 0 : index
    %c0_161 = arith.constant 0 : index
    %279 = vector.load %arg11[%c2_159, %c0_160, %c0_161] : memref<4x64x32xf32, #tpu.memory_space<vmem>>, vector<1x64x32xf32>
    %280 = vector.shape_cast %279 : vector<1x64x32xf32> to vector<64x32xf32>
    %cst_162 = arith.constant dense<0.000000e+00> : vector<16x32xf32>
    %281 = tpu.matmul %278, %280, %cst_162 {dimension_numbers = #tpu.dot_dimension_numbers<[1], [0], [0], [1], [0, 0, 1, 1], [], []>} : vector<16x64xf32>, vector<64x32xf32>, vector<16x32xf32> -> vector<16x32xf32>
    %c2_163 = arith.constant 2 : index
    %c0_164 = arith.constant 0 : index
    %c0_165 = arith.constant 0 : index
    %282 = vector.load %arg12[%c2_163, %c0_164, %c0_165] : memref<4x1x32xf32, #tpu.memory_space<vmem>>, vector<1x1x32xf32>
    %283 = vector.shape_cast %282 : vector<1x1x32xf32> to vector<1x32xf32>
    %284 = vector.broadcast %283 : vector<1x32xf32> to vector<16x32xf32>
    %285 = arith.addf %281, %284 : vector<16x32xf32>
    %286 = arith.addf %269, %285 : vector<16x32xf32>
    %c2_166 = arith.constant 2 : index
    %c0_167 = arith.constant 0 : index
    %c0_168 = arith.constant 0 : index
    %287 = vector.load %arg13[%c2_166, %c0_167, %c0_168] : memref<4x1x32xf32, #tpu.memory_space<vmem>>, vector<1x1x32xf32>
    %288 = vector.shape_cast %287 : vector<1x1x32xf32> to vector<1x32xf32>
    %c2_169 = arith.constant 2 : index
    %c0_170 = arith.constant 0 : index
    %c0_171 = arith.constant 0 : index
    %289 = vector.load %arg14[%c2_169, %c0_170, %c0_171] : memref<4x1x32xf32, #tpu.memory_space<vmem>>, vector<1x1x32xf32>
    %290 = vector.shape_cast %289 : vector<1x1x32xf32> to vector<1x32xf32>
    %cst_172 = arith.constant dense<0.000000e+00> : vector<32xf32>
    %291 = vector.multi_reduction <add>, %286, %cst_172 [0] : vector<16x32xf32> to vector<32xf32>
    %292 = vector.shape_cast %291 : vector<32xf32> to vector<1x32xf32>
    %cst_173 = arith.constant 1.600000e+01 : f32
    %293 = vector.broadcast %cst_173 : f32 to vector<1x32xf32>
    %294 = arith.divf %292, %293 : vector<1x32xf32>
    %295 = vector.broadcast %294 : vector<1x32xf32> to vector<16x32xf32>
    %296 = arith.subf %286, %295 : vector<16x32xf32>
    %297 = arith.mulf %296, %296 : vector<16x32xf32>
    %cst_174 = arith.constant dense<0.000000e+00> : vector<32xf32>
    %298 = vector.multi_reduction <add>, %297, %cst_174 [0] : vector<16x32xf32> to vector<32xf32>
    %299 = vector.shape_cast %298 : vector<32xf32> to vector<1x32xf32>
    %cst_175 = arith.constant 1.600000e+01 : f32
    %300 = vector.broadcast %cst_175 : f32 to vector<1x32xf32>
    %301 = arith.divf %299, %300 : vector<1x32xf32>
    %cst_176 = arith.constant 9.99999974E-6 : f32
    %302 = vector.broadcast %cst_176 : f32 to vector<1x32xf32>
    %303 = arith.addf %301, %302 : vector<1x32xf32>
    %304 = math.rsqrt %303 : vector<1x32xf32>
    %305 = vector.broadcast %304 : vector<1x32xf32> to vector<16x32xf32>
    %306 = arith.mulf %296, %305 : vector<16x32xf32>
    %307 = vector.broadcast %288 : vector<1x32xf32> to vector<16x32xf32>
    %308 = arith.mulf %306, %307 : vector<16x32xf32>
    %309 = vector.broadcast %290 : vector<1x32xf32> to vector<16x32xf32>
    %310 = arith.addf %308, %309 : vector<16x32xf32>
    %311 = vector.extract_strided_slice %7 {offsets = [1, 0, 0], sizes = [1, 16, 16], strides = [1, 1, 1]} : vector<2x16x16xf32> to vector<1x16x16xf32>
    %312 = vector.shape_cast %311 : vector<1x16x16xf32> to vector<16x16xf32>
    %313 = vector.shape_cast %310 : vector<16x32xf32> to vector<1x16x32xf32>
    %314 = vector.broadcast %313 : vector<1x16x32xf32> to vector<4x16x32xf32>
    %c3 = arith.constant 3 : index
    %c0_177 = arith.constant 0 : index
    %c0_178 = arith.constant 0 : index
    %c0_179 = arith.constant 0 : index
    %315 = vector.load %arg4[%c3, %c0_177, %c0_178, %c0_179] : memref<4x4x24x32xf32, #tpu.memory_space<vmem>>, vector<1x4x24x32xf32>
    %316 = vector.shape_cast %315 : vector<1x4x24x32xf32> to vector<4x24x32xf32>
    "tpu.trace_start"() <{level = 10 : i32, message = "hnw,hcw->hnc"}> : () -> ()
    %cst_180 = arith.constant dense<0.000000e+00> : vector<4x16x24xf32>
    %317 = tpu.matmul %314, %316, %cst_180 {dimension_numbers = #tpu.dot_dimension_numbers<[2], [2], [1], [1], [0, 0, 0, 1, 1, 1], [0], [0]>} : vector<4x16x32xf32>, vector<4x24x32xf32>, vector<4x16x24xf32> -> vector<4x16x24xf32>
    "tpu.trace_stop"() : () -> ()
    %318 = vector.extract_strided_slice %317 {offsets = [0, 0, 0], sizes = [4, 16, 8], strides = [1, 1, 1]} : vector<4x16x24xf32> to vector<4x16x8xf32>
    %319 = vector.extract_strided_slice %317 {offsets = [0, 0, 8], sizes = [4, 16, 8], strides = [1, 1, 1]} : vector<4x16x24xf32> to vector<4x16x8xf32>
    %320 = vector.extract_strided_slice %317 {offsets = [0, 0, 16], sizes = [4, 16, 8], strides = [1, 1, 1]} : vector<4x16x24xf32> to vector<4x16x8xf32>
    "tpu.trace_start"() <{level = 10 : i32, message = "hjd,hid->hji"}> : () -> ()
    %cst_181 = arith.constant dense<0.000000e+00> : vector<4x16x16xf32>
    %321 = tpu.matmul %318, %319, %cst_181 {dimension_numbers = #tpu.dot_dimension_numbers<[2], [2], [1], [1], [0, 0, 0, 1, 1, 1], [0], [0]>} : vector<4x16x8xf32>, vector<4x16x8xf32>, vector<4x16x16xf32> -> vector<4x16x16xf32>
    %cst_182 = arith.constant -5.000000e+00 : f32
    %cst_183 = arith.constant 5.000000e+00 : f32
    "tpu.trace_stop"() : () -> ()
    %322 = vector.broadcast %cst_182 : f32 to vector<4x16x16xf32>
    %323 = arith.maximumf %322, %321 : vector<4x16x16xf32>
    %324 = vector.broadcast %cst_183 : f32 to vector<4x16x16xf32>
    %325 = arith.minimumf %324, %323 : vector<4x16x16xf32>
    %326 = math.exp %325 : vector<4x16x16xf32>
    %327 = vector.shape_cast %312 : vector<16x16xf32> to vector<1x16x16xf32>
    %328 = vector.broadcast %327 : vector<1x16x16xf32> to vector<4x16x16xf32>
    %329 = arith.mulf %326, %328 : vector<4x16x16xf32>
    "tpu.trace_start"() <{level = 10 : i32, message = "hji,hid->hjd"}> : () -> ()
    %cst_184 = arith.constant dense<0.000000e+00> : vector<4x16x8xf32>
    %330 = tpu.matmul %329, %320, %cst_184 {dimension_numbers = #tpu.dot_dimension_numbers<[2], [1], [1], [2], [0, 0, 0, 1, 1, 2], [0], [0]>} : vector<4x16x16xf32>, vector<4x16x8xf32>, vector<4x16x8xf32> -> vector<4x16x8xf32>
    "tpu.trace_stop"() : () -> ()
    %cst_185 = arith.constant dense<0.000000e+00> : vector<4x16xf32>
    %331 = vector.multi_reduction <add>, %329, %cst_185 [2] : vector<4x16x16xf32> to vector<4x16xf32>
    %332 = vector.shape_cast %331 : vector<4x16xf32> to vector<4x16x1xf32>
    %cst_186 = arith.constant 9.99999997E-7 : f32
    %333 = vector.broadcast %cst_186 : f32 to vector<4x16x1xf32>
    %334 = arith.addf %332, %333 : vector<4x16x1xf32>
    %335 = tpu.reciprocal %334 {approx = true} : vector<4x16x1xf32> -> vector<4x16x1xf32>
    %336 = vector.broadcast %335 : vector<4x16x1xf32> to vector<4x16x8xf32>
    %337 = arith.mulf %330, %336 : vector<4x16x8xf32>
    %c3_187 = arith.constant 3 : index
    %c0_188 = arith.constant 0 : index
    %c0_189 = arith.constant 0 : index
    %c0_190 = arith.constant 0 : index
    %338 = vector.load %arg5[%c3_187, %c0_188, %c0_189, %c0_190] : memref<4x4x8x32xf32, #tpu.memory_space<vmem>>, vector<1x4x8x32xf32>
    %339 = vector.shape_cast %338 : vector<1x4x8x32xf32> to vector<4x8x32xf32>
    "tpu.trace_start"() <{level = 10 : i32, message = "hjd,hdw->hjw"}> : () -> ()
    %cst_191 = arith.constant dense<0.000000e+00> : vector<4x16x32xf32>
    %340 = tpu.matmul %337, %339, %cst_191 {dimension_numbers = #tpu.dot_dimension_numbers<[2], [1], [1], [2], [0, 0, 0, 1, 1, 2], [0], [0]>} : vector<4x16x8xf32>, vector<4x8x32xf32>, vector<4x16x32xf32> -> vector<4x16x32xf32>
    "tpu.trace_stop"() : () -> ()
    %cst_192 = arith.constant dense<0.000000e+00> : vector<16x32xf32>
    %341 = vector.multi_reduction <add>, %340, %cst_192 [0] : vector<4x16x32xf32> to vector<16x32xf32>
    %342 = arith.addf %310, %341 : vector<16x32xf32>
    %c3_193 = arith.constant 3 : index
    %c0_194 = arith.constant 0 : index
    %c0_195 = arith.constant 0 : index
    %343 = vector.load %arg6[%c3_193, %c0_194, %c0_195] : memref<4x1x32xf32, #tpu.memory_space<vmem>>, vector<1x1x32xf32>
    %344 = vector.shape_cast %343 : vector<1x1x32xf32> to vector<1x32xf32>
    %345 = vector.broadcast %344 : vector<1x32xf32> to vector<16x32xf32>
    %346 = arith.addf %342, %345 : vector<16x32xf32>
    %c3_196 = arith.constant 3 : index
    %c0_197 = arith.constant 0 : index
    %c0_198 = arith.constant 0 : index
    %347 = vector.load %arg7[%c3_196, %c0_197, %c0_198] : memref<4x1x32xf32, #tpu.memory_space<vmem>>, vector<1x1x32xf32>
    %348 = vector.shape_cast %347 : vector<1x1x32xf32> to vector<1x32xf32>
    %c3_199 = arith.constant 3 : index
    %c0_200 = arith.constant 0 : index
    %c0_201 = arith.constant 0 : index
    %349 = vector.load %arg8[%c3_199, %c0_200, %c0_201] : memref<4x1x32xf32, #tpu.memory_space<vmem>>, vector<1x1x32xf32>
    %350 = vector.shape_cast %349 : vector<1x1x32xf32> to vector<1x32xf32>
    %cst_202 = arith.constant dense<0.000000e+00> : vector<32xf32>
    %351 = vector.multi_reduction <add>, %346, %cst_202 [0] : vector<16x32xf32> to vector<32xf32>
    %352 = vector.shape_cast %351 : vector<32xf32> to vector<1x32xf32>
    %cst_203 = arith.constant 1.600000e+01 : f32
    %353 = vector.broadcast %cst_203 : f32 to vector<1x32xf32>
    %354 = arith.divf %352, %353 : vector<1x32xf32>
    %355 = vector.broadcast %354 : vector<1x32xf32> to vector<16x32xf32>
    %356 = arith.subf %346, %355 : vector<16x32xf32>
    %357 = arith.mulf %356, %356 : vector<16x32xf32>
    %cst_204 = arith.constant dense<0.000000e+00> : vector<32xf32>
    %358 = vector.multi_reduction <add>, %357, %cst_204 [0] : vector<16x32xf32> to vector<32xf32>
    %359 = vector.shape_cast %358 : vector<32xf32> to vector<1x32xf32>
    %cst_205 = arith.constant 1.600000e+01 : f32
    %360 = vector.broadcast %cst_205 : f32 to vector<1x32xf32>
    %361 = arith.divf %359, %360 : vector<1x32xf32>
    %cst_206 = arith.constant 9.99999974E-6 : f32
    %362 = vector.broadcast %cst_206 : f32 to vector<1x32xf32>
    %363 = arith.addf %361, %362 : vector<1x32xf32>
    %364 = math.rsqrt %363 : vector<1x32xf32>
    %365 = vector.broadcast %364 : vector<1x32xf32> to vector<16x32xf32>
    %366 = arith.mulf %356, %365 : vector<16x32xf32>
    %367 = vector.broadcast %348 : vector<1x32xf32> to vector<16x32xf32>
    %368 = arith.mulf %366, %367 : vector<16x32xf32>
    %369 = vector.broadcast %350 : vector<1x32xf32> to vector<16x32xf32>
    %370 = arith.addf %368, %369 : vector<16x32xf32>
    %c3_207 = arith.constant 3 : index
    %c0_208 = arith.constant 0 : index
    %c0_209 = arith.constant 0 : index
    %371 = vector.load %arg9[%c3_207, %c0_208, %c0_209] : memref<4x32x64xf32, #tpu.memory_space<vmem>>, vector<1x32x64xf32>
    %372 = vector.shape_cast %371 : vector<1x32x64xf32> to vector<32x64xf32>
    %cst_210 = arith.constant dense<0.000000e+00> : vector<16x64xf32>
    %373 = tpu.matmul %370, %372, %cst_210 {dimension_numbers = #tpu.dot_dimension_numbers<[1], [0], [0], [1], [0, 0, 1, 1], [], []>} : vector<16x32xf32>, vector<32x64xf32>, vector<16x64xf32> -> vector<16x64xf32>
    %c3_211 = arith.constant 3 : index
    %c0_212 = arith.constant 0 : index
    %c0_213 = arith.constant 0 : index
    %374 = vector.load %arg10[%c3_211, %c0_212, %c0_213] : memref<4x1x64xf32, #tpu.memory_space<vmem>>, vector<1x1x64xf32>
    %375 = vector.shape_cast %374 : vector<1x1x64xf32> to vector<1x64xf32>
    %376 = vector.broadcast %375 : vector<1x64xf32> to vector<16x64xf32>
    %377 = arith.addf %373, %376 : vector<16x64xf32>
    %cst_214 = arith.constant 0.000000e+00 : f32
    %378 = vector.broadcast %cst_214 : f32 to vector<16x64xf32>
    %379 = arith.maximumf %377, %378 : vector<16x64xf32>
    %c3_215 = arith.constant 3 : index
    %c0_216 = arith.constant 0 : index
    %c0_217 = arith.constant 0 : index
    %380 = vector.load %arg11[%c3_215, %c0_216, %c0_217] : memref<4x64x32xf32, #tpu.memory_space<vmem>>, vector<1x64x32xf32>
    %381 = vector.shape_cast %380 : vector<1x64x32xf32> to vector<64x32xf32>
    %cst_218 = arith.constant dense<0.000000e+00> : vector<16x32xf32>
    %382 = tpu.matmul %379, %381, %cst_218 {dimension_numbers = #tpu.dot_dimension_numbers<[1], [0], [0], [1], [0, 0, 1, 1], [], []>} : vector<16x64xf32>, vector<64x32xf32>, vector<16x32xf32> -> vector<16x32xf32>
    %c3_219 = arith.constant 3 : index
    %c0_220 = arith.constant 0 : index
    %c0_221 = arith.constant 0 : index
    %383 = vector.load %arg12[%c3_219, %c0_220, %c0_221] : memref<4x1x32xf32, #tpu.memory_space<vmem>>, vector<1x1x32xf32>
    %384 = vector.shape_cast %383 : vector<1x1x32xf32> to vector<1x32xf32>
    %385 = vector.broadcast %384 : vector<1x32xf32> to vector<16x32xf32>
    %386 = arith.addf %382, %385 : vector<16x32xf32>
    %387 = arith.addf %370, %386 : vector<16x32xf32>
    %c3_222 = arith.constant 3 : index
    %c0_223 = arith.constant 0 : index
    %c0_224 = arith.constant 0 : index
    %388 = vector.load %arg13[%c3_222, %c0_223, %c0_224] : memref<4x1x32xf32, #tpu.memory_space<vmem>>, vector<1x1x32xf32>
    %389 = vector.shape_cast %388 : vector<1x1x32xf32> to vector<1x32xf32>
    %c3_225 = arith.constant 3 : index
    %c0_226 = arith.constant 0 : index
    %c0_227 = arith.constant 0 : index
    %390 = vector.load %arg14[%c3_225, %c0_226, %c0_227] : memref<4x1x32xf32, #tpu.memory_space<vmem>>, vector<1x1x32xf32>
    %391 = vector.shape_cast %390 : vector<1x1x32xf32> to vector<1x32xf32>
    %cst_228 = arith.constant dense<0.000000e+00> : vector<32xf32>
    %392 = vector.multi_reduction <add>, %387, %cst_228 [0] : vector<16x32xf32> to vector<32xf32>
    %393 = vector.shape_cast %392 : vector<32xf32> to vector<1x32xf32>
    %cst_229 = arith.constant 1.600000e+01 : f32
    %394 = vector.broadcast %cst_229 : f32 to vector<1x32xf32>
    %395 = arith.divf %393, %394 : vector<1x32xf32>
    %396 = vector.broadcast %395 : vector<1x32xf32> to vector<16x32xf32>
    %397 = arith.subf %387, %396 : vector<16x32xf32>
    %398 = arith.mulf %397, %397 : vector<16x32xf32>
    %cst_230 = arith.constant dense<0.000000e+00> : vector<32xf32>
    %399 = vector.multi_reduction <add>, %398, %cst_230 [0] : vector<16x32xf32> to vector<32xf32>
    %400 = vector.shape_cast %399 : vector<32xf32> to vector<1x32xf32>
    %cst_231 = arith.constant 1.600000e+01 : f32
    %401 = vector.broadcast %cst_231 : f32 to vector<1x32xf32>
    %402 = arith.divf %400, %401 : vector<1x32xf32>
    %cst_232 = arith.constant 9.99999974E-6 : f32
    %403 = vector.broadcast %cst_232 : f32 to vector<1x32xf32>
    %404 = arith.addf %402, %403 : vector<1x32xf32>
    %405 = math.rsqrt %404 : vector<1x32xf32>
    %406 = vector.broadcast %405 : vector<1x32xf32> to vector<16x32xf32>
    %407 = arith.mulf %397, %406 : vector<16x32xf32>
    %408 = vector.broadcast %389 : vector<1x32xf32> to vector<16x32xf32>
    %409 = arith.mulf %407, %408 : vector<16x32xf32>
    %410 = vector.broadcast %391 : vector<1x32xf32> to vector<16x32xf32>
    %411 = arith.addf %409, %410 : vector<16x32xf32>
    %c0_233 = arith.constant 0 : index
    %c0_234 = arith.constant 0 : index
    %412 = vector.load %arg15[%c0_233, %c0_234] : memref<32x3xf32, #tpu.memory_space<vmem>>, vector<32x3xf32>
    %cst_235 = arith.constant dense<0.000000e+00> : vector<16x3xf32>
    %413 = tpu.matmul %411, %412, %cst_235 {dimension_numbers = #tpu.dot_dimension_numbers<[1], [0], [0], [1], [0, 0, 1, 1], [], []>} : vector<16x32xf32>, vector<32x3xf32>, vector<16x3xf32> -> vector<16x3xf32>
    %c0_236 = arith.constant 0 : index
    %c0_237 = arith.constant 0 : index
    %414 = vector.load %arg16[%c0_236, %c0_237] : memref<1x3xf32, #tpu.memory_space<vmem>>, vector<1x3xf32>
    %415 = vector.broadcast %414 : vector<1x3xf32> to vector<16x3xf32>
    %416 = arith.addf %413, %415 : vector<16x3xf32>
    %c0_238 = arith.constant 0 : index
    %c0_239 = arith.constant 0 : index
    %417 = vector.load %arg17[%c0_238, %c0_239] : memref<16x3xf32, #tpu.memory_space<vmem>>, vector<16x3xf32>
    tpu.vector_store %arg17[%c0_238, %c0_239], %416 {strides = array<i32>} : memref<16x3xf32, #tpu.memory_space<vmem>>, vector<16x3xf32>,
    return
  }
}

</mosaic_0001>

<llo_original>
// kernel: tpu_custom_call.1
$region0: #{tpu_custom_call.1}
  #allocation0 [shape = 'u32[]', space=smem, size = 0x4, offset = 0x4, fixed_abs, tag = 'smem constant byte address 0x4 - core index']
  #allocation1 [shape = 'u32[72,128]{1,0:T(1,128)}', space=vmem, size = 0x9000, scoped, tag = 'internal scratch']
  %s0 = inlined_call_operand.hbm [shape: f32[16,22], index: 0, kind: input, shape index: {}]
  %s1 = inlined_call_operand.vmem [shape: s8[2,16,16], index: 1, kind: input, shape index: {}]
  %s2 = inlined_call_operand.vmem [shape: f32[22,32], index: 2, kind: input, shape index: {}]
  %s3 = inlined_call_operand.vmem [shape: f32[1,32], index: 3, kind: input, shape index: {}]
  %s4 = inlined_call_operand.vmem [shape: f32[4,4,24,32], index: 4, kind: input, shape index: {}]
  %s5 = inlined_call_operand.hbm [shape: f32[4,4,8,32], index: 5, kind: input, shape index: {}]
  %s6 = inlined_call_operand.vmem [shape: f32[4,1,32], index: 6, kind: input, shape index: {}]
  %s7 = inlined_call_operand.hbm [shape: f32[4,1,32], index: 7, kind: input, shape index: {}]
  %s8 = inlined_call_operand.hbm [shape: f32[4,1,32], index: 8, kind: input, shape index: {}]
  %s9 = inlined_call_operand.hbm [shape: f32[4,32,64], index: 9, kind: input, shape index: {}]
  %s10 = inlined_call_operand.vmem [shape: f32[4,1,64], index: 10, kind: input, shape index: {}]
  %s11 = inlined_call_operand.vmem [shape: f32[4,64,32], index: 11, kind: input, shape index: {}]
  %s12 = inlined_call_operand.hbm [shape: f32[4,1,32], index: 12, kind: input, shape index: {}]
  %s13 = inlined_call_operand.hbm [shape: f32[4,1,32], index: 13, kind: input, shape index: {}]
  %s14 = inlined_call_operand.hbm [shape: f32[4,1,32], index: 14, kind: input, shape index: {}]
  %s15 = inlined_call_operand.vmem [shape: f32[32,3], index: 15, kind: input, shape index: {}]
  %s16 = inlined_call_operand.vmem [shape: f32[1,3], index: 16, kind: input, shape index: {}]
  %s17 = inlined_call_operand.vmem [shape: f32[16,3], index: 17, kind: output, shape index: {}]
  %s18 = sld [smem:[#allocation0]]
  $region110: #{tpu_custom_call.1} parent=0
    _
  %s20 = ssub.s32 1, %s18
  %s21 = scalar_select 0, %s20, %s18
  $region1: #{tpu_custom_call.1} parent=0
    #allocation2 [shape = 'u8[8192]{0}', space=vmem, size = 0x2000, scoped, tag = 'input window, operand 0, single buffered']
    #allocation3 [shape = 's32[1]{0}', space=sflag, size = 0x4, scoped, tag = 'scoped memory for tpu_custom_call.1']
    #allocation4 [shape = 'u8[65536]{0}', space=vmem, size = 0x10000, scoped, tag = 'input window, operand 5, single buffered']
    #allocation5 [shape = 's32[1]{0}', space=sflag, size = 0x4, scoped, tag = 'scoped memory for tpu_custom_call.1']
    #allocation6 [shape = 'u8[2048]{0}', space=vmem, size = 0x800, scoped, tag = 'input window, operand 7, single buffered']
    #allocation7 [shape = 'u8[2048]{0}', space=vmem, size = 0x800, scoped, tag = 'input window, operand 8, single buffered']
    #allocation8 [shape = 's32[1]{0}', space=sflag, size = 0x4, scoped, tag = 'scoped memory for tpu_custom_call.1']
    #allocation9 [shape = 'u8[65536]{0}', space=vmem, size = 0x10000, scoped, tag = 'input window, operand 9, single buffered']
    #allocation10 [shape = 'u8[2048]{0}', space=vmem, size = 0x800, scoped, tag = 'input window, operand 12, single buffered']
    #allocation11 [shape = 's32[1]{0}', space=sflag, size = 0x4, scoped, tag = 'scoped memory for tpu_custom_call.1']
    #allocation12 [shape = 'u8[2048]{0}', space=vmem, size = 0x800, scoped, tag = 'input window, operand 13, single buffered']
    #allocation13 [shape = 'u8[2048]{0}', space=vmem, size = 0x800, scoped, tag = 'input window, operand 14, single buffered']
    #allocation14 [shape = 's32[1]{0}', space=sflag, size = 0x4, scoped, tag = 'scoped memory for tpu_custom_call.1']
    %22 = vsyncpa [#allocation3], 0
    %23 = vsyncpa [#allocation5], 0
    %24 = vsyncpa [#allocation8], 0
    %25 = vsyncpa [#allocation11], 0
    %26 = vsyncpa [#allocation14], 0
    // Predicated region
    $region2: #{tpu_custom_call.1} parent=1 // pred_check
      _
    $region3: #{tpu_custom_call.1} parent=1 // pred_check_branch
      %28 = sbr.rel (0) target = $region5
    $region4: #{tpu_custom_call.1} parent=1 // pred_region
      %30 = vsyncadd [#allocation3], 0
      %s31 = sshll.u32 %s0, 4
      %s32 = int_to_ptr.hbm [resolvable:$true] %s31
      %s33 = sshll.u32 [#allocation2], 4
      %s34 = int_to_ptr.vmem [resolvable:$true] %s33
      %39 = dma.hbm_to_vmem [thread:$0]  %s32, 256, %s34, [#allocation3], 128, 128, 8
    $region5: #{tpu_custom_call.1} parent=1 // pred_fallthru
      _
    // Predicated region
    $region6: #{tpu_custom_call.1} parent=1 // pred_check
      _
    $region7: #{tpu_custom_call.1} parent=1 // pred_check_branch
      %41 = sbr.rel (0) target = $region9
    $region8: #{tpu_custom_call.1} parent=1 // pred_region
      _
    $region9: #{tpu_custom_call.1} parent=1 // pred_fallthru
      _
    // Predicated region
    $region10: #{tpu_custom_call.1} parent=1 // pred_check
      _
    $region11: #{tpu_custom_call.1} parent=1 // pred_check_branch
      %43 = sbr.rel (0) target = $region13
    $region12: #{tpu_custom_call.1} parent=1 // pred_region
      _
    $region13: #{tpu_custom_call.1} parent=1 // pred_fallthru
      _
    // Predicated region
    $region14: #{tpu_custom_call.1} parent=1 // pred_check
      _
    $region15: #{tpu_custom_call.1} parent=1 // pred_check_branch
      %45 = sbr.rel (0) target = $region17
    $region16: #{tpu_custom_call.1} parent=1 // pred_region
      _
    $region17: #{tpu_custom_call.1} parent=1 // pred_fallthru
      _
    // Predicated region
    $region18: #{tpu_custom_call.1} parent=1 // pred_check
      _
    $region19: #{tpu_custom_call.1} parent=1 // pred_check_branch
      %47 = sbr.rel (0) target = $region21
    $region20: #{tpu_custom_call.1} parent=1 // pred_region
      _
    $region21: #{tpu_custom_call.1} parent=1 // pred_fallthru
      _
    // Predicated region
    $region22: #{tpu_custom_call.1} parent=1 // pred_check
      _
    $region23: #{tpu_custom_call.1} parent=1 // pred_check_branch
      %49 = sbr.rel (0) target = $region25
    $region24: #{tpu_custom_call.1} parent=1 // pred_region
      %51 = vsyncadd [#allocation5], 0
      %s52 = sshll.u32 %s5, 4
      %s53 = int_to_ptr.hbm [resolvable:$true] %s52
      %s54 = sshll.u32 [#allocation4], 4
      %s55 = int_to_ptr.vmem [resolvable:$true] %s54
      %60 = dma.hbm_to_vmem [thread:$0]  %s53, 2048, %s55, [#allocation5], 128, 128, 8
    $region25: #{tpu_custom_call.1} parent=1 // pred_fallthru
      _
    // Predicated region
    $region26: #{tpu_custom_call.1} parent=1 // pred_check
      _
    $region27: #{tpu_custom_call.1} parent=1 // pred_check_branch
      %62 = sbr.rel (0) target = $region29
    $region28: #{tpu_custom_call.1} parent=1 // pred_region
      _
    $region29: #{tpu_custom_call.1} parent=1 // pred_fallthru
      _
    // Predicated region
    $region30: #{tpu_custom_call.1} parent=1 // pred_check
      _
    $region31: #{tpu_custom_call.1} parent=1 // pred_check_branch
      %64 = sbr.rel (0) target = $region33
    $region32: #{tpu_custom_call.1} parent=1 // pred_region
      %66 = vsyncadd [#allocation5], 0
      %s67 = sshll.u32 %s7, 4
      %s68 = int_to_ptr.hbm [resolvable:$true] %s67
      %s69 = sshll.u32 [#allocation6], 4
      %s70 = int_to_ptr.vmem [resolvable:$true] %s69
      %75 = dma.hbm_to_vmem [thread:$0]  %s68, 64, %s70, [#allocation5], 16, 16, 1
    $region33: #{tpu_custom_call.1} parent=1 // pred_fallthru
      _
    // Predicated region
    $region34: #{tpu_custom_call.1} parent=1 // pred_check
      _
    $region35: #{tpu_custom_call.1} parent=1 // pred_check_branch
      %77 = sbr.rel (0) target = $region37
    $region36: #{tpu_custom_call.1} parent=1 // pred_region
      %79 = vsyncadd [#allocation8], 0
      %s80 = sshll.u32 %s8, 4
      %s81 = int_to_ptr.hbm [resolvable:$true] %s80
      %s82 = sshll.u32 [#allocation7], 4
      %s83 = int_to_ptr.vmem [resolvable:$true] %s82
      %88 = dma.hbm_to_vmem [thread:$0]  %s81, 64, %s83, [#allocation8], 16, 16, 1
    $region37: #{tpu_custom_call.1} parent=1 // pred_fallthru
      _
    // Predicated region
    $region38: #{tpu_custom_call.1} parent=1 // pred_check
      _
    $region39: #{tpu_custom_call.1} parent=1 // pred_check_branch
      %90 = sbr.rel (0) target = $region41
    $region40: #{tpu_custom_call.1} parent=1 // pred_region
      %92 = vsyncadd [#allocation8], 0
      %s93 = sshll.u32 %s9, 4
      %s94 = int_to_ptr.hbm [resolvable:$true] %s93
      %s95 = sshll.u32 [#allocation9], 4
      %s96 = int_to_ptr.vmem [resolvable:$true] %s95
      %101 = dma.hbm_to_vmem [thread:$0]  %s94, 2048, %s96, [#allocation8], 128, 128, 8
    $region41: #{tpu_custom_call.1} parent=1 // pred_fallthru
      _
    // Predicated region
    $region42: #{tpu_custom_call.1} parent=1 // pred_check
      _
    $region43: #{tpu_custom_call.1} parent=1 // pred_check_branch
      %103 = sbr.rel (0) target = $region45
    $region44: #{tpu_custom_call.1} parent=1 // pred_region
      _
    $region45: #{tpu_custom_call.1} parent=1 // pred_fallthru
      _
    // Predicated region
    $region46: #{tpu_custom_call.1} parent=1 // pred_check
      _
    $region47: #{tpu_custom_call.1} parent=1 // pred_check_branch
      %105 = sbr.rel (0) target = $region49
    $region48: #{tpu_custom_call.1} parent=1 // pred_region
      _
    $region49: #{tpu_custom_call.1} parent=1 // pred_fallthru
      _
    // Predicated region
    $region50: #{tpu_custom_call.1} parent=1 // pred_check
      _
    $region51: #{tpu_custom_call.1} parent=1 // pred_check_branch
      %107 = sbr.rel (0) target = $region53
    $region52: #{tpu_custom_call.1} parent=1 // pred_region
      %109 = vsyncadd [#allocation11], 0
      %s110 = sshll.u32 %s12, 4
      %s111 = int_to_ptr.hbm [resolvable:$true] %s110
      %s112 = sshll.u32 [#allocation10], 4
      %s113 = int_to_ptr.vmem [resolvable:$true] %s112
      %118 = dma.hbm_to_vmem [thread:$0]  %s111, 64, %s113, [#allocation11], 16, 16, 1
    $region53: #{tpu_custom_call.1} parent=1 // pred_fallthru
      _
    // Predicated region
    $region54: #{tpu_custom_call.1} parent=1 // pred_check
      _
    $region55: #{tpu_custom_call.1} parent=1 // pred_check_branch
      %120 = sbr.rel (0) target = $region57
    $region56: #{tpu_custom_call.1} parent=1 // pred_region
      %122 = vsyncadd [#allocation11], 0
      %s123 = sshll.u32 %s13, 4
      %s124 = int_to_ptr.hbm [resolvable:$true] %s123
      %s125 = sshll.u32 [#allocation12], 4
      %s126 = int_to_ptr.vmem [resolvable:$true] %s125
      %131 = dma.hbm_to_vmem [thread:$0]  %s124, 64, %s126, [#allocation11], 16, 16, 1
    $region57: #{tpu_custom_call.1} parent=1 // pred_fallthru
      _
    // Predicated region
    $region58: #{tpu_custom_call.1} parent=1 // pred_check
      _
    $region59: #{tpu_custom_call.1} parent=1 // pred_check_branch
      %133 = sbr.rel (0) target = $region61
    $region60: #{tpu_custom_call.1} parent=1 // pred_region
      %135 = vsyncadd [#allocation14], 0
      %s136 = sshll.u32 %s14, 4
      %s137 = int_to_ptr.hbm [resolvable:$true] %s136
      %s138 = sshll.u32 [#allocation13], 4
      %s139 = int_to_ptr.vmem [resolvable:$true] %s138
      %144 = dma.hbm_to_vmem [thread:$0]  %s137, 64, %s139, [#allocation14], 16, 16, 1
    $region61: #{tpu_custom_call.1} parent=1 // pred_fallthru
      _
    // Predicated region
    $region62: #{tpu_custom_call.1} parent=1 // pred_check
      _
    $region63: #{tpu_custom_call.1} parent=1 // pred_check_branch
      %146 = sbr.rel (0) target = $region65
    $region64: #{tpu_custom_call.1} parent=1 // pred_region
      _
    $region65: #{tpu_custom_call.1} parent=1 // pred_fallthru
      _
    // Predicated region
    $region66: #{tpu_custom_call.1} parent=1 // pred_check
      _
    $region67: #{tpu_custom_call.1} parent=1 // pred_check_branch
      %148 = sbr.rel (0) target = $region69
    $region68: #{tpu_custom_call.1} parent=1 // pred_region
      _
    $region69: #{tpu_custom_call.1} parent=1 // pred_fallthru
      _
    // Predicated region
    $region70: #{tpu_custom_call.1} parent=1 // pred_check
      _
    $region71: #{tpu_custom_call.1} parent=1 // pred_check_branch
      %150 = sbr.rel (0) target = $region73
    $region72: #{tpu_custom_call.1} parent=1 // pred_region
      %152 = dma.done [#allocation3], 256
    $region73: #{tpu_custom_call.1} parent=1 // pred_fallthru
      _
    // Predicated region
    $region74: #{tpu_custom_call.1} parent=1 // pred_check
      _
    $region75: #{tpu_custom_call.1} parent=1 // pred_check_branch
      %154 = sbr.rel (0) target = $region77
    $region76: #{tpu_custom_call.1} parent=1 // pred_region
      %156 = dma.done [#allocation5], 2048
    $region77: #{tpu_custom_call.1} parent=1 // pred_fallthru
      _
    // Predicated region
    $region78: #{tpu_custom_call.1} parent=1 // pred_check
      _
    $region79: #{tpu_custom_call.1} parent=1 // pred_check_branch
      %158 = sbr.rel (0) target = $region81
    $region80: #{tpu_custom_call.1} parent=1 // pred_region
      %160 = dma.done [#allocation5], 64
    $region81: #{tpu_custom_call.1} parent=1 // pred_fallthru
      _
    // Predicated region
    $region82: #{tpu_custom_call.1} parent=1 // pred_check
      _
    $region83: #{tpu_custom_call.1} parent=1 // pred_check_branch
      %162 = sbr.rel (0) target = $region85
    $region84: #{tpu_custom_call.1} parent=1 // pred_region
      %164 = dma.done [#allocation8], 64
    $region85: #{tpu_custom_call.1} parent=1 // pred_fallthru
      _
    // Predicated region
    $region86: #{tpu_custom_call.1} parent=1 // pred_check
      _
    $region87: #{tpu_custom_call.1} parent=1 // pred_check_branch
      %166 = sbr.rel (0) target = $region89
    $region88: #{tpu_custom_call.1} parent=1 // pred_region
      %168 = dma.done [#allocation8], 2048
    $region89: #{tpu_custom_call.1} parent=1 // pred_fallthru
      _
    // Predicated region
    $region90: #{tpu_custom_call.1} parent=1 // pred_check
      _
    $region91: #{tpu_custom_call.1} parent=1 // pred_check_branch
      %170 = sbr.rel (0) target = $region93
    $region92: #{tpu_custom_call.1} parent=1 // pred_region
      %172 = dma.done [#allocation11], 64
    $region93: #{tpu_custom_call.1} parent=1 // pred_fallthru
      _
    // Predicated region
    $region94: #{tpu_custom_call.1} parent=1 // pred_check
      _
    $region95: #{tpu_custom_call.1} parent=1 // pred_check_branch
      %174 = sbr.rel (0) target = $region97
    $region96: #{tpu_custom_call.1} parent=1 // pred_region
      %176 = dma.done [#allocation11], 64
    $region97: #{tpu_custom_call.1} parent=1 // pred_fallthru
      _
    // Predicated region
    $region98: #{tpu_custom_call.1} parent=1 // pred_check
      _
    $region99: #{tpu_custom_call.1} parent=1 // pred_check_branch
      %178 = sbr.rel (0) target = $region101
    $region100: #{tpu_custom_call.1} parent=1 // pred_region
      %180 = dma.done [#allocation14], 64
    $region101: #{tpu_custom_call.1} parent=1 // pred_fallthru
      _
    %v181 = vld [vmem:[#allocation2] sm:$0xff]
    %v182 = vld [vmem:[#allocation2 + $0x8] sm:$0xff]
    %v183 = vld [vmem:[%s2] sm:$0xff]
    %v184 = vld [vmem:[%s2 + $0x8] sm:$0xff]
    %v185 = vld [vmem:[%s2 + $0x10] sm:$0x3f]
    %v186 = vld [vmem:[%s3] sm:$0x1]
    %v188 = vperm.slane %v186, 0
    %vm190 = vcmask 179200
    %v192 = vsel %vm190, %v181, 0
    %v195 = vsel %vm190, %v182, 0
    %vm197 = vcmask 1045504
    %v199 = vsel %vm197, %v185, 0
    %201 = vmatpush.msra.mxu0 0.0
    %202 = vmatpush.msra.mxu0 0.0
    %203 = vmatpush.msra.mxu0 0.0
    %204 = vmatpush.msra.mxu0 0.0
    %205 = vmatpush.msra.mxu0 0.0
    %206 = vmatpush.msra.mxu0 0.0
    %207 = vmatpush.msra.mxu0 0.0
    %208 = vmatpush.msra.mxu0 0.0
    %209 = vmatpush.msra.mxu0 0.0
    %210 = vmatpush.msra.mxu0 0.0
    %211 = vmatpush.msra.mxu0 0.0
    %212 = vmatpush.msra.mxu0 0.0
    %213 = vmatpush.msra.mxu0 0.0
    %214 = vmatpush.msra.mxu0 %v199
    %215 = vmatpush.msra.mxu0 %v184
    %216 = vmatpush.msra.mxu0 %v183
    %217 = vmatmul.f32.gmra.mxu0 %v192
    %v218 = vpop.f32.mrf.mxu0
    %v219 = vadd.f32 %v188, %v218
    %220 = vmatmul.f32.gmra.mxu0 %v195
    %v221 = vpop.f32.mrf.mxu0
    %v222 = vadd.f32 %v188, %v221
    %223 = vdwg.mxu0
    %v224 = vld [vmem:[%s1] sm:$0x3]
    %v225 = vld [vmem:[%s1 + $0x2] sm:$0x3]
    %v226 = vld [vmem:[%s1 + $0x4] sm:$0x3]
    %v227 = vld [vmem:[%s1 + $0x6] sm:$0x3]
    %v228 = vunpack.c.0.s8 %v224
    %v229 = vunpack.c.0.s8 %v225
    %v230 = vunpack.c.0.s8 %v226
    %v231 = vunpack.c.0.s8 %v227
    %v232 = vcvt.s32.f32 %v228
    %v233 = vcvt.s32.f32 %v229
    %v234 = vcvt.s32.f32 %v230
    %v235 = vcvt.s32.f32 %v231
    %v236 = vld [vmem:[%s4] sm:$0xff]
    %v237 = vld [vmem:[%s4 + $0x8] sm:$0xff]
    %v238 = vld [vmem:[%s4 + $0x10] sm:$0xff]
    %v239 = vld [vmem:[%s4 + $0x18] sm:$0xff]
    %v240 = vld [vmem:[%s4 + $0x20] sm:$0xff]
    %v241 = vld [vmem:[%s4 + $0x28] sm:$0xff]
    %v242 = vld [vmem:[%s4 + $0x30] sm:$0xff]
    %v243 = vld [vmem:[%s4 + $0x38] sm:$0xff]
    %v244 = vld [vmem:[%s4 + $0x40] sm:$0xff]
    %v245 = vld [vmem:[%s4 + $0x48] sm:$0xff]
    %v246 = vld [vmem:[%s4 + $0x50] sm:$0xff]
    %v247 = vld [vmem:[%s4 + $0x58] sm:$0xff]
    %vm248 = vcmask 261120
    %v250 = vsel %vm248, %v219, 0
    %v253 = vsel %vm248, %v222, 0
    %v256 = vsel %vm248, %v236, 0
    %v259 = vsel %vm248, %v237, 0
    %v262 = vsel %vm248, %v238, 0
    %264 = vmatpush.xpose.msra.mxu0 0.0
    %265 = vmatpush.xpose.msra.mxu0 0.0
    %266 = vmatpush.xpose.msra.mxu0 0.0
    %267 = vmatpush.xpose.msra.mxu0 0.0
    %268 = vmatpush.xpose.msra.mxu0 0.0
    %269 = vmatpush.xpose.msra.mxu0 0.0
    %270 = vmatpush.xpose.msra.mxu0 0.0
    %271 = vmatpush.xpose.msra.mxu0 0.0
    %272 = vmatpush.xpose.msra.mxu0 0.0
    %273 = vmatpush.xpose.msra.mxu0 0.0
    %274 = vmatpush.xpose.msra.mxu0 0.0
    %275 = vmatpush.xpose.msra.mxu0 0.0
    %276 = vmatpush.xpose.msra.mxu0 0.0
    %277 = vmatpush.xpose.msra.mxu0 %v262
    %278 = vmatpush.xpose.msra.mxu0 %v259
    %279 = vmatpush.xpose.msra.mxu0 %v256
    %280 = vmatmul.f32.gmra.mxu0 %v250
    %v281 = vpop.f32.mrf.mxu0
    %v282 = vadd.f32 0.0, %v281
    %283 = vmatmul.f32.gmra.mxu0 %v253
    %v284 = vpop.f32.mrf.mxu0
    %v285 = vadd.f32 0.0, %v284
    %286 = vdwg.mxu0
    %v288 = vsel %vm248, %v239, 0
    %v291 = vsel %vm248, %v240, 0
    %v294 = vsel %vm248, %v241, 0
    %296 = vmatpush.xpose.msra.mxu0 0.0
    %297 = vmatpush.xpose.msra.mxu0 0.0
    %298 = vmatpush.xpose.msra.mxu0 0.0
    %299 = vmatpush.xpose.msra.mxu0 0.0
    %300 = vmatpush.xpose.msra.mxu0 0.0
    %301 = vmatpush.xpose.msra.mxu0 0.0
    %302 = vmatpush.xpose.msra.mxu0 0.0
    %303 = vmatpush.xpose.msra.mxu0 0.0
    %304 = vmatpush.xpose.msra.mxu0 0.0
    %305 = vmatpush.xpose.msra.mxu0 0.0
    %306 = vmatpush.xpose.msra.mxu0 0.0
    %307 = vmatpush.xpose.msra.mxu0 0.0
    %308 = vmatpush.xpose.msra.mxu0 0.0
    %309 = vmatpush.xpose.msra.mxu0 %v294
    %310 = vmatpush.xpose.msra.mxu0 %v291
    %311 = vmatpush.xpose.msra.mxu0 %v288
    %312 = vmatmul.f32.gmra.mxu0 %v250
    %v313 = vpop.f32.mrf.mxu0
    %v314 = vadd.f32 0.0, %v313
    %315 = vmatmul.f32.gmra.mxu0 %v253
    %v316 = vpop.f32.mrf.mxu0
    %v317 = vadd.f32 0.0, %v316
    %318 = vdwg.mxu0
    %v320 = vsel %vm248, %v242, 0
    %v323 = vsel %vm248, %v243, 0
    %v326 = vsel %vm248, %v244, 0
    %328 = vmatpush.xpose.msra.mxu0 0.0
    %329 = vmatpush.xpose.msra.mxu0 0.0
    %330 = vmatpush.xpose.msra.mxu0 0.0
    %331 = vmatpush.xpose.msra.mxu0 0.0
    %332 = vmatpush.xpose.msra.mxu0 0.0
    %333 = vmatpush.xpose.msra.mxu0 0.0
    %334 = vmatpush.xpose.msra.mxu0 0.0
    %335 = vmatpush.xpose.msra.mxu0 0.0
    %336 = vmatpush.xpose.msra.mxu0 0.0
    %337 = vmatpush.xpose.msra.mxu0 0.0
    %338 = vmatpush.xpose.msra.mxu0 0.0
    %339 = vmatpush.xpose.msra.mxu0 0.0
    %340 = vmatpush.xpose.msra.mxu0 0.0
    %341 = vmatpush.xpose.msra.mxu0 %v326
    %342 = vmatpush.xpose.msra.mxu0 %v323
    %343 = vmatpush.xpose.msra.mxu0 %v320
    %344 = vmatmul.f32.gmra.mxu0 %v250
    %v345 = vpop.f32.mrf.mxu0
    %v346 = vadd.f32 0.0, %v345
    %347 = vmatmul.f32.gmra.mxu0 %v253
    %v348 = vpop.f32.mrf.mxu0
    %v349 = vadd.f32 0.0, %v348
    %350 = vdwg.mxu0
    %v352 = vsel %vm248, %v245, 0
    %v355 = vsel %vm248, %v246, 0
    %v358 = vsel %vm248, %v247, 0
    %360 = vmatpush.xpose.msra.mxu0 0.0
    %361 = vmatpush.xpose.msra.mxu0 0.0
    %362 = vmatpush.xpose.msra.mxu0 0.0
    %363 = vmatpush.xpose.msra.mxu0 0.0
    %364 = vmatpush.xpose.msra.mxu0 0.0
    %365 = vmatpush.xpose.msra.mxu0 0.0
    %366 = vmatpush.xpose.msra.mxu0 0.0
    %367 = vmatpush.xpose.msra.mxu0 0.0
    %368 = vmatpush.xpose.msra.mxu0 0.0
    %369 = vmatpush.xpose.msra.mxu0 0.0
    %370 = vmatpush.xpose.msra.mxu0 0.0
    %371 = vmatpush.xpose.msra.mxu0 0.0
    %372 = vmatpush.xpose.msra.mxu0 0.0
    %373 = vmatpush.xpose.msra.mxu0 %v358
    %374 = vmatpush.xpose.msra.mxu0 %v355
    %375 = vmatpush.xpose.msra.mxu0 %v352
    %376 = vmatmul.f32.gmra.mxu0 %v250
    %v377 = vpop.f32.mrf.mxu0
    %v378 = vadd.f32 0.0, %v377
    %379 = vmatmul.f32.gmra.mxu0 %v253
    %v380 = vpop.f32.mrf.mxu0
    %v381 = vadd.f32 0.0, %v380
    %382 = vdwg.mxu0
    %385 = vrot.lane.b32.xlu0 %v282, 120
    %v386 = vpop.permute.xlu0 %385
    %387 = vrot.lane.b32.xlu0 %v285, 120
    %v388 = vpop.permute.xlu0 %387
    %vm389 = vcmask 64512
    %v390 = vsel %vm389, %v282, 0
    %v392 = vsel %vm389, %v285, 0
    %v394 = vsel %vm389, %v386, 0
    %v396 = vsel %vm389, %v388, 0
    %398 = vmatpush.xpose.msra.mxu0 0.0
    %399 = vmatpush.xpose.msra.mxu0 0.0
    %400 = vmatpush.xpose.msra.mxu0 0.0
    %401 = vmatpush.xpose.msra.mxu0 0.0
    %402 = vmatpush.xpose.msra.mxu0 0.0
    %403 = vmatpush.xpose.msra.mxu0 0.0
    %404 = vmatpush.xpose.msra.mxu0 0.0
    %405 = vmatpush.xpose.msra.mxu0 0.0
    %406 = vmatpush.xpose.msra.mxu0 0.0
    %407 = vmatpush.xpose.msra.mxu0 0.0
    %408 = vmatpush.xpose.msra.mxu0 0.0
    %409 = vmatpush.xpose.msra.mxu0 0.0
    %410 = vmatpush.xpose.msra.mxu0 0.0
    %411 = vmatpush.xpose.msra.mxu0 0.0
    %412 = vmatpush.xpose.msra.mxu0 %v396
    %413 = vmatpush.xpose.msra.mxu0 %v394
    %414 = vmatmul.f32.gmra.mxu0 %v390
    %v415 = vpop.f32.mrf.mxu0
    %v416 = vadd.f32 0.0, %v415
    %417 = vmatmul.f32.gmra.mxu0 %v392
    %v418 = vpop.f32.mrf.mxu0
    %v419 = vadd.f32 0.0, %v418
    %420 = vdwg.mxu0
    %423 = vrot.lane.b32.xlu0 %v314, 120
    %v424 = vpop.permute.xlu0 %423
    %425 = vrot.lane.b32.xlu0 %v317, 120
    %v426 = vpop.permute.xlu0 %425
    %v427 = vsel %vm389, %v314, 0
    %v429 = vsel %vm389, %v317, 0
    %v431 = vsel %vm389, %v424, 0
    %v433 = vsel %vm389, %v426, 0
    %435 = vmatpush.xpose.msra.mxu0 0.0
    %436 = vmatpush.xpose.msra.mxu0 0.0
    %437 = vmatpush.xpose.msra.mxu0 0.0
    %438 = vmatpush.xpose.msra.mxu0 0.0
    %439 = vmatpush.xpose.msra.mxu0 0.0
    %440 = vmatpush.xpose.msra.mxu0 0.0
    %441 = vmatpush.xpose.msra.mxu0 0.0
    %442 = vmatpush.xpose.msra.mxu0 0.0
    %443 = vmatpush.xpose.msra.mxu0 0.0
    %444 = vmatpush.xpose.msra.mxu0 0.0
    %445 = vmatpush.xpose.msra.mxu0 0.0
    %446 = vmatpush.xpose.msra.mxu0 0.0
    %447 = vmatpush.xpose.msra.mxu0 0.0
    %448 = vmatpush.xpose.msra.mxu0 0.0
    %449 = vmatpush.xpose.msra.mxu0 %v433
    %450 = vmatpush.xpose.msra.mxu0 %v431
    %451 = vmatmul.f32.gmra.mxu0 %v427
    %v452 = vpop.f32.mrf.mxu0
    %v453 = vadd.f32 0.0, %v452
    %454 = vmatmul.f32.gmra.mxu0 %v429
    %v455 = vpop.f32.mrf.mxu0
    %v456 = vadd.f32 0.0, %v455
    %457 = vdwg.mxu0
    %460 = vrot.lane.b32.xlu0 %v346, 120
    %v461 = vpop.permute.xlu0 %460
    %462 = vrot.lane.b32.xlu0 %v349, 120
    %v463 = vpop.permute.xlu0 %462
    %v464 = vsel %vm389, %v346, 0
    %v466 = vsel %vm389, %v349, 0
    %v468 = vsel %vm389, %v461, 0
    %v470 = vsel %vm389, %v463, 0
    %472 = vmatpush.xpose.msra.mxu0 0.0
    %473 = vmatpush.xpose.msra.mxu0 0.0
    %474 = vmatpush.xpose.msra.mxu0 0.0
    %475 = vmatpush.xpose.msra.mxu0 0.0
    %476 = vmatpush.xpose.msra.mxu0 0.0
    %477 = vmatpush.xpose.msra.mxu0 0.0
    %478 = vmatpush.xpose.msra.mxu0 0.0
    %479 = vmatpush.xpose.msra.mxu0 0.0
    %480 = vmatpush.xpose.msra.mxu0 0.0
    %481 = vmatpush.xpose.msra.mxu0 0.0
    %482 = vmatpush.xpose.msra.mxu0 0.0
    %483 = vmatpush.xpose.msra.mxu0 0.0
    %484 = vmatpush.xpose.msra.mxu0 0.0
    %485 = vmatpush.xpose.msra.mxu0 0.0
    %486 = vmatpush.xpose.msra.mxu0 %v470
    %487 = vmatpush.xpose.msra.mxu0 %v468
    %488 = vmatmul.f32.gmra.mxu0 %v464
    %v489 = vpop.f32.mrf.mxu0
    %v490 = vadd.f32 0.0, %v489
    %491 = vmatmul.f32.gmra.mxu0 %v466
    %v492 = vpop.f32.mrf.mxu0
    %v493 = vadd.f32 0.0, %v492
    %494 = vdwg.mxu0
    %497 = vrot.lane.b32.xlu0 %v378, 120
    %v498 = vpop.permute.xlu0 %497
    %499 = vrot.lane.b32.xlu0 %v381, 120
    %v500 = vpop.permute.xlu0 %499
    %v501 = vsel %vm389, %v378, 0
    %v503 = vsel %vm389, %v381, 0
    %v505 = vsel %vm389, %v498, 0
    %v507 = vsel %vm389, %v500, 0
    %509 = vmatpush.xpose.msra.mxu0 0.0
    %510 = vmatpush.xpose.msra.mxu0 0.0
    %511 = vmatpush.xpose.msra.mxu0 0.0
    %512 = vmatpush.xpose.msra.mxu0 0.0
    %513 = vmatpush.xpose.msra.mxu0 0.0
    %514 = vmatpush.xpose.msra.mxu0 0.0
    %515 = vmatpush.xpose.msra.mxu0 0.0
    %516 = vmatpush.xpose.msra.mxu0 0.0
    %517 = vmatpush.xpose.msra.mxu0 0.0
    %518 = vmatpush.xpose.msra.mxu0 0.0
    %519 = vmatpush.xpose.msra.mxu0 0.0
    %520 = vmatpush.xpose.msra.mxu0 0.0
    %521 = vmatpush.xpose.msra.mxu0 0.0
    %522 = vmatpush.xpose.msra.mxu0 0.0
    %523 = vmatpush.xpose.msra.mxu0 %v507
    %524 = vmatpush.xpose.msra.mxu0 %v505
    %525 = vmatmul.f32.gmra.mxu0 %v501
    %v526 = vpop.f32.mrf.mxu0
    %v527 = vadd.f32 0.0, %v526
    %528 = vmatmul.f32.gmra.mxu0 %v503
    %v529 = vpop.f32.mrf.mxu0
    %v530 = vadd.f32 0.0, %v529
    %531 = vdwg.mxu0
    %v532 = vmax.f32 %v416, -5.0
    %v533 = vmax.f32 %v419, -5.0
    %v534 = vmax.f32 %v453, -5.0
    %v535 = vmax.f32 %v456, -5.0
    %v536 = vmax.f32 %v490, -5.0
    %v537 = vmax.f32 %v493, -5.0
    %v538 = vmax.f32 %v527, -5.0
    %v539 = vmax.f32 %v530, -5.0
    %v540 = vmin.f32 %v532, 5.0
    %v541 = vmin.f32 %v533, 5.0
    %v542 = vmin.f32 %v534, 5.0
    %v543 = vmin.f32 %v535, 5.0
    %v544 = vmin.f32 %v536, 5.0
    %v545 = vmin.f32 %v537, 5.0
    %v546 = vmin.f32 %v538, 5.0
    %v547 = vmin.f32 %v539, 5.0
    %v548 = vmul.f32 %v540, 1.442695
    %v549 = vpow.pop %v548
    %v550 = vmul.f32 %v541, 1.442695
    %v551 = vpow.pop %v550
    %v552 = vmul.f32 %v542, 1.442695
    %v553 = vpow.pop %v552
    %v554 = vmul.f32 %v543, 1.442695
    %v555 = vpow.pop %v554
    %v556 = vmul.f32 %v544, 1.442695
    %v557 = vpow.pop %v556
    %v558 = vmul.f32 %v545, 1.442695
    %v559 = vpow.pop %v558
    %v560 = vmul.f32 %v546, 1.442695
    %v561 = vpow.pop %v560
    %v562 = vmul.f32 %v547, 1.442695
    %v563 = vpow.pop %v562
    %v564 = vmul.f32 %v549, %v232
    %v565 = vmul.f32 %v551, %v233
    %v566 = vmul.f32 %v553, %v232
    %v567 = vmul.f32 %v555, %v233
    %v568 = vmul.f32 %v557, %v232
    %v569 = vmul.f32 %v559, %v233
    %v570 = vmul.f32 %v561, %v232
    %v571 = vmul.f32 %v563, %v233
    %572 = vrot.lane.b32.xlu0 %v282, 112
    %v573 = vpop.permute.xlu0 %572
    %574 = vrot.lane.b32.xlu0 %v285, 112
    %v575 = vpop.permute.xlu0 %574
    %vm578 = vcmask 130048
    %v580 = vsel %vm578, %v564, 0
    %v583 = vsel %vm578, %v565, 0
    %585 = vmatpush.msra.mxu0 0.0
    %586 = vmatpush.msra.mxu0 0.0
    %587 = vmatpush.msra.mxu0 0.0
    %588 = vmatpush.msra.mxu0 0.0
    %589 = vmatpush.msra.mxu0 0.0
    %590 = vmatpush.msra.mxu0 0.0
    %591 = vmatpush.msra.mxu0 0.0
    %592 = vmatpush.msra.mxu0 0.0
    %593 = vmatpush.msra.mxu0 0.0
    %594 = vmatpush.msra.mxu0 0.0
    %595 = vmatpush.msra.mxu0 0.0
    %596 = vmatpush.msra.mxu0 0.0
    %597 = vmatpush.msra.mxu0 0.0
    %598 = vmatpush.msra.mxu0 0.0
    %599 = vmatpush.msra.mxu0 %v575
    %600 = vmatpush.msra.mxu0 %v573
    %601 = vmatmul.f32.gmra.mxu0 %v580
    %v602 = vpop.f32.mrf.mxu0
    %v603 = vadd.f32 0.0, %v602
    %604 = vmatmul.f32.gmra.mxu0 %v583
    %v605 = vpop.f32.mrf.mxu0
    %v606 = vadd.f32 0.0, %v605
    %607 = vdwg.mxu0
    %608 = vrot.lane.b32.xlu0 %v314, 112
    %v609 = vpop.permute.xlu0 %608
    %610 = vrot.lane.b32.xlu0 %v317, 112
    %v611 = vpop.permute.xlu0 %610
    %v615 = vsel %vm578, %v566, 0
    %v618 = vsel %vm578, %v567, 0
    %620 = vmatpush.msra.mxu0 0.0
    %621 = vmatpush.msra.mxu0 0.0
    %622 = vmatpush.msra.mxu0 0.0
    %623 = vmatpush.msra.mxu0 0.0
    %624 = vmatpush.msra.mxu0 0.0
    %625 = vmatpush.msra.mxu0 0.0
    %626 = vmatpush.msra.mxu0 0.0
    %627 = vmatpush.msra.mxu0 0.0
    %628 = vmatpush.msra.mxu0 0.0
    %629 = vmatpush.msra.mxu0 0.0
    %630 = vmatpush.msra.mxu0 0.0
    %631 = vmatpush.msra.mxu0 0.0
    %632 = vmatpush.msra.mxu0 0.0
    %633 = vmatpush.msra.mxu0 0.0
    %634 = vmatpush.msra.mxu0 %v611
    %635 = vmatpush.msra.mxu0 %v609
    %636 = vmatmul.f32.gmra.mxu0 %v615
    %v637 = vpop.f32.mrf.mxu0
    %v638 = vadd.f32 0.0, %v637
    %639 = vmatmul.f32.gmra.mxu0 %v618
    %v640 = vpop.f32.mrf.mxu0
    %v641 = vadd.f32 0.0, %v640
    %642 = vdwg.mxu0
    %643 = vrot.lane.b32.xlu0 %v346, 112
    %v644 = vpop.permute.xlu0 %643
    %645 = vrot.lane.b32.xlu0 %v349, 112
    %v646 = vpop.permute.xlu0 %645
    %v650 = vsel %vm578, %v568, 0
    %v653 = vsel %vm578, %v569, 0
    %655 = vmatpush.msra.mxu0 0.0
    %656 = vmatpush.msra.mxu0 0.0
    %657 = vmatpush.msra.mxu0 0.0
    %658 = vmatpush.msra.mxu0 0.0
    %659 = vmatpush.msra.mxu0 0.0
    %660 = vmatpush.msra.mxu0 0.0
    %661 = vmatpush.msra.mxu0 0.0
    %662 = vmatpush.msra.mxu0 0.0
    %663 = vmatpush.msra.mxu0 0.0
    %664 = vmatpush.msra.mxu0 0.0
    %665 = vmatpush.msra.mxu0 0.0
    %666 = vmatpush.msra.mxu0 0.0
    %667 = vmatpush.msra.mxu0 0.0
    %668 = vmatpush.msra.mxu0 0.0
    %669 = vmatpush.msra.mxu0 %v646
    %670 = vmatpush.msra.mxu0 %v644
    %671 = vmatmul.f32.gmra.mxu0 %v650
    %v672 = vpop.f32.mrf.mxu0
    %v673 = vadd.f32 0.0, %v672
    %674 = vmatmul.f32.gmra.mxu0 %v653
    %v675 = vpop.f32.mrf.mxu0
    %v676 = vadd.f32 0.0, %v675
    %677 = vdwg.mxu0
    %678 = vrot.lane.b32.xlu0 %v378, 112
    %v679 = vpop.permute.xlu0 %678
    %680 = vrot.lane.b32.xlu0 %v381, 112
    %v681 = vpop.permute.xlu0 %680
    %v685 = vsel %vm578, %v570, 0
    %v688 = vsel %vm578, %v571, 0
    %690 = vmatpush.msra.mxu0 0.0
    %691 = vmatpush.msra.mxu0 0.0
    %692 = vmatpush.msra.mxu0 0.0
    %693 = vmatpush.msra.mxu0 0.0
    %694 = vmatpush.msra.mxu0 0.0
    %695 = vmatpush.msra.mxu0 0.0
    %696 = vmatpush.msra.mxu0 0.0
    %697 = vmatpush.msra.mxu0 0.0
    %698 = vmatpush.msra.mxu0 0.0
    %699 = vmatpush.msra.mxu0 0.0
    %700 = vmatpush.msra.mxu0 0.0
    %701 = vmatpush.msra.mxu0 0.0
    %702 = vmatpush.msra.mxu0 0.0
    %703 = vmatpush.msra.mxu0 0.0
    %704 = vmatpush.msra.mxu0 %v681
    %705 = vmatpush.msra.mxu0 %v679
    %706 = vmatmul.f32.gmra.mxu0 %v685
    %v707 = vpop.f32.mrf.mxu0
    %v708 = vadd.f32 0.0, %v707
    %709 = vmatmul.f32.gmra.mxu0 %v688
    %v710 = vpop.f32.mrf.mxu0
    %v711 = vadd.f32 0.0, %v710
    %712 = vdwg.mxu0
    %v713 = vsel %vm578, %v564, 0.0
    %714 = vadd.xlane.f32.xlu0 %v713
    %v715 = vpop.xlane.xlu0 %714
    %v716 = vsel %vm578, %v565, 0.0
    %717 = vadd.xlane.f32.xlu0 %v716
    %v718 = vpop.xlane.xlu0 %717
    %v719 = vsel %vm578, %v566, 0.0
    %720 = vadd.xlane.f32.xlu0 %v719
    %v721 = vpop.xlane.xlu0 %720
    %v722 = vsel %vm578, %v567, 0.0
    %723 = vadd.xlane.f32.xlu0 %v722
    %v724 = vpop.xlane.xlu0 %723
    %v725 = vsel %vm578, %v568, 0.0
    %726 = vadd.xlane.f32.xlu0 %v725
    %v727 = vpop.xlane.xlu0 %726
    %v728 = vsel %vm578, %v569, 0.0
    %729 = vadd.xlane.f32.xlu0 %v728
    %v730 = vpop.xlane.xlu0 %729
    %v731 = vsel %vm578, %v570, 0.0
    %732 = vadd.xlane.f32.xlu0 %v731
    %v733 = vpop.xlane.xlu0 %732
    %v734 = vsel %vm578, %v571, 0.0
    %735 = vadd.xlane.f32.xlu0 %v734
    %v736 = vpop.xlane.xlu0 %735
    %v737 = vadd.f32 %v715, 1e-06
    %v738 = vadd.f32 %v718, 1e-06
    %v739 = vadd.f32 %v721, 1e-06
    %v740 = vadd.f32 %v724, 1e-06
    %v741 = vadd.f32 %v727, 1e-06
    %v742 = vadd.f32 %v730, 1e-06
    %v743 = vadd.f32 %v733, 1e-06
    %v744 = vadd.f32 %v736, 1e-06
    %v745 = vrcp.pop %v737
    %v746 = vrcp.pop %v738
    %v747 = vrcp.pop %v739
    %v748 = vrcp.pop %v740
    %v749 = vrcp.pop %v741
    %v750 = vrcp.pop %v742
    %v751 = vrcp.pop %v743
    %v752 = vrcp.pop %v744
    %v753 = vmul.f32 %v603, %v745
    %v754 = vmul.f32 %v606, %v746
    %v755 = vmul.f32 %v638, %v747
    %v756 = vmul.f32 %v641, %v748
    %v757 = vmul.f32 %v673, %v749
    %v758 = vmul.f32 %v676, %v750
    %v759 = vmul.f32 %v708, %v751
    %v760 = vmul.f32 %v711, %v752
    %v761 = vld [vmem:[#allocation4] sm:$0xff]
    %v762 = vld [vmem:[#allocation4 + $0x8] sm:$0xff]
    %v763 = vld [vmem:[#allocation4 + $0x10] sm:$0xff]
    %v764 = vld [vmem:[#allocation4 + $0x18] sm:$0xff]
    %v766 = vsel %vm389, %v753, 0
    %v769 = vsel %vm389, %v754, 0
    %771 = vmatpush.msra.mxu0 0.0
    %772 = vmatpush.msra.mxu0 0.0
    %773 = vmatpush.msra.mxu0 0.0
    %774 = vmatpush.msra.mxu0 0.0
    %775 = vmatpush.msra.mxu0 0.0
    %776 = vmatpush.msra.mxu0 0.0
    %777 = vmatpush.msra.mxu0 0.0
    %778 = vmatpush.msra.mxu0 0.0
    %779 = vmatpush.msra.mxu0 0.0
    %780 = vmatpush.msra.mxu0 0.0
    %781 = vmatpush.msra.mxu0 0.0
    %782 = vmatpush.msra.mxu0 0.0
    %783 = vmatpush.msra.mxu0 0.0
    %784 = vmatpush.msra.mxu0 0.0
    %785 = vmatpush.msra.mxu0 0.0
    %786 = vmatpush.msra.mxu0 %v761
    %787 = vmatmul.f32.gmra.mxu0 %v766
    %v788 = vpop.f32.mrf.mxu0
    %v789 = vadd.f32 0.0, %v788
    %790 = vmatmul.f32.gmra.mxu0 %v769
    %v791 = vpop.f32.mrf.mxu0
    %v792 = vadd.f32 0.0, %v791
    %793 = vdwg.mxu0
    %v795 = vsel %vm389, %v755, 0
    %v798 = vsel %vm389, %v756, 0
    %800 = vmatpush.msra.mxu0 0.0
    %801 = vmatpush.msra.mxu0 0.0
    %802 = vmatpush.msra.mxu0 0.0
    %803 = vmatpush.msra.mxu0 0.0
    %804 = vmatpush.msra.mxu0 0.0
    %805 = vmatpush.msra.mxu0 0.0
    %806 = vmatpush.msra.mxu0 0.0
    %807 = vmatpush.msra.mxu0 0.0
    %808 = vmatpush.msra.mxu0 0.0
    %809 = vmatpush.msra.mxu0 0.0
    %810 = vmatpush.msra.mxu0 0.0
    %811 = vmatpush.msra.mxu0 0.0
    %812 = vmatpush.msra.mxu0 0.0
    %813 = vmatpush.msra.mxu0 0.0
    %814 = vmatpush.msra.mxu0 0.0
    %815 = vmatpush.msra.mxu0 %v762
    %816 = vmatmul.f32.gmra.mxu0 %v795
    %v817 = vpop.f32.mrf.mxu0
    %v818 = vadd.f32 0.0, %v817
    %819 = vmatmul.f32.gmra.mxu0 %v798
    %v820 = vpop.f32.mrf.mxu0
    %v821 = vadd.f32 0.0, %v820
    %822 = vdwg.mxu0
    %v824 = vsel %vm389, %v757, 0
    %v827 = vsel %vm389, %v758, 0
    %829 = vmatpush.msra.mxu0 0.0
    %830 = vmatpush.msra.mxu0 0.0
    %831 = vmatpush.msra.mxu0 0.0
    %832 = vmatpush.msra.mxu0 0.0
    %833 = vmatpush.msra.mxu0 0.0
    %834 = vmatpush.msra.mxu0 0.0
    %835 = vmatpush.msra.mxu0 0.0
    %836 = vmatpush.msra.mxu0 0.0
    %837 = vmatpush.msra.mxu0 0.0
    %838 = vmatpush.msra.mxu0 0.0
    %839 = vmatpush.msra.mxu0 0.0
    %840 = vmatpush.msra.mxu0 0.0
    %841 = vmatpush.msra.mxu0 0.0
    %842 = vmatpush.msra.mxu0 0.0
    %843 = vmatpush.msra.mxu0 0.0
    %844 = vmatpush.msra.mxu0 %v763
    %845 = vmatmul.f32.gmra.mxu0 %v824
    %v846 = vpop.f32.mrf.mxu0
    %v847 = vadd.f32 0.0, %v846
    %848 = vmatmul.f32.gmra.mxu0 %v827
    %v849 = vpop.f32.mrf.mxu0
    %v850 = vadd.f32 0.0, %v849
    %851 = vdwg.mxu0
    %v853 = vsel %vm389, %v759, 0
    %v856 = vsel %vm389, %v760, 0
    %858 = vmatpush.msra.mxu0 0.0
    %859 = vmatpush.msra.mxu0 0.0
    %860 = vmatpush.msra.mxu0 0.0
    %861 = vmatpush.msra.mxu0 0.0
    %862 = vmatpush.msra.mxu0 0.0
    %863 = vmatpush.msra.mxu0 0.0
    %864 = vmatpush.msra.mxu0 0.0
    %865 = vmatpush.msra.mxu0 0.0
    %866 = vmatpush.msra.mxu0 0.0
    %867 = vmatpush.msra.mxu0 0.0
    %868 = vmatpush.msra.mxu0 0.0
    %869 = vmatpush.msra.mxu0 0.0
    %870 = vmatpush.msra.mxu0 0.0
    %871 = vmatpush.msra.mxu0 0.0
    %872 = vmatpush.msra.mxu0 0.0
    %873 = vmatpush.msra.mxu0 %v764
    %874 = vmatmul.f32.gmra.mxu0 %v853
    %v875 = vpop.f32.mrf.mxu0
    %v876 = vadd.f32 0.0, %v875
    %877 = vmatmul.f32.gmra.mxu0 %v856
    %v878 = vpop.f32.mrf.mxu0
    %v879 = vadd.f32 0.0, %v878
    %880 = vdwg.mxu0
    %v881 = vsel %vm248, %v789, 0.0
    %v882 = vsel %vm248, %v818, 0.0
    %v883 = vadd.f32 %v881, %v882
    %v884 = vsel %vm248, %v847, 0.0
    %v885 = vadd.f32 %v883, %v884
    %v886 = vsel %vm248, %v876, 0.0
    %v887 = vadd.f32 %v885, %v886
    %v888 = vsel %vm248, %v792, 0.0
    %v889 = vsel %vm248, %v821, 0.0
    %v890 = vadd.f32 %v888, %v889
    %v891 = vsel %vm248, %v850, 0.0
    %v892 = vadd.f32 %v890, %v891
    %v893 = vsel %vm248, %v879, 0.0
    %v894 = vadd.f32 %v892, %v893
    %v895 = vadd.f32 %v219, %v887
    %v896 = vadd.f32 %v222, %v894
    %v897 = vld [vmem:[%s6] sm:$0x1]
    %v899 = vperm.slane %v897, 0
    %v901 = vadd.f32 %v895, %v899
    %v902 = vadd.f32 %v896, %v899
    %v903 = vld [vmem:[#allocation6] sm:$0x1]
    %v904 = vld [vmem:[#allocation7] sm:$0x1]
    %v905 = vsel %vm248, %v901, 0.0
    %v906 = vsel %vm248, %v902, 0.0
    %v907 = vadd.f32 %v905, %v906
    %v908 = vrot.slane %v907, 4
    %v909 = vadd.f32 %v907, %v908
    %v910 = vrot.slane %v909, 2
    %v911 = vadd.f32 %v909, %v910
    %v912 = vrot.slane %v911, 1
    %v913 = vadd.f32 %v911, %v912
    %v914 = vrcp.pop 16.0
    %v915 = vmul.f32 16.0, %v914
    %v916 = vsub.f32 1.0, %v915
    %v917 = vmul.f32 %v914, %v916
    %v918 = vadd.f32 %v914, %v917
    %vm919 = vweird.f32 %v914
    %v920 = vsel %vm919, %v914, %v918
    %v921 = vmul.f32 %v913, %v920
    %v922 = vsub.f32 %v901, %v921
    %v923 = vsub.f32 %v902, %v921
    %v924 = vmul.f32 %v922, %v922
    %v925 = vmul.f32 %v923, %v923
    %v926 = vsel %vm248, %v924, 0.0
    %v927 = vsel %vm248, %v925, 0.0
    %v928 = vadd.f32 %v926, %v927
    %v929 = vrot.slane %v928, 4
    %v930 = vadd.f32 %v928, %v929
    %v931 = vrot.slane %v930, 2
    %v932 = vadd.f32 %v930, %v931
    %v933 = vrot.slane %v932, 1
    %v934 = vadd.f32 %v932, %v933
    %v935 = vmul.f32 %v934, %v920
    %v936 = vadd.f32 %v935, 1e-05
    %v937 = vrsqrt.pop %v936
    %v938 = vmul.f32 %v937, %v936
    %v939 = vmul.f32 %v938, %v937
    %v940 = vmul.f32 0.5, %v939
    %v941 = vsub.f32 1.5, %v940
    %v942 = vmul.f32 %v937, %v941
    %vm943 = vweird.f32 %v936
    %vm944 = vweird.f32 %v937
    %vm945 = vmor %vm943, %vm944
    %v946 = vsel %vm945, %v937, %v942
    %v947 = vmul.f32 %v922, %v946
    %v948 = vmul.f32 %v923, %v946
    %v950 = vperm.slane %v903, 0
    %v952 = vmul.f32 %v947, %v950
    %v953 = vmul.f32 %v948, %v950
    %v955 = vperm.slane %v904, 0
    %v957 = vadd.f32 %v952, %v955
    %v958 = vadd.f32 %v953, %v955
    %v959 = vld [vmem:[#allocation9] sm:$0xff]
    %v960 = vld [vmem:[#allocation9 + $0x8] sm:$0xff]
    %v961 = vld [vmem:[#allocation9 + $0x10] sm:$0xff]
    %v962 = vld [vmem:[#allocation9 + $0x18] sm:$0xff]
    %v963 = vld [vmem:[%s10] sm:$0x1]
    %v965 = vperm.slane %v963, 0
    %v968 = vsel %vm248, %v957, 0
    %v971 = vsel %vm248, %v958, 0
    %973 = vmatpush.msra.mxu0 0.0
    %974 = vmatpush.msra.mxu0 0.0
    %975 = vmatpush.msra.mxu0 0.0
    %976 = vmatpush.msra.mxu0 0.0
    %977 = vmatpush.msra.mxu0 0.0
    %978 = vmatpush.msra.mxu0 0.0
    %979 = vmatpush.msra.mxu0 0.0
    %980 = vmatpush.msra.mxu0 0.0
    %981 = vmatpush.msra.mxu0 0.0
    %982 = vmatpush.msra.mxu0 0.0
    %983 = vmatpush.msra.mxu0 0.0
    %984 = vmatpush.msra.mxu0 0.0
    %985 = vmatpush.msra.mxu0 %v962
    %986 = vmatpush.msra.mxu0 %v961
    %987 = vmatpush.msra.mxu0 %v960
    %988 = vmatpush.msra.mxu0 %v959
    %989 = vmatmul.f32.gmra.mxu0 %v968
    %v990 = vpop.f32.mrf.mxu0
    %v991 = vadd.f32 %v965, %v990
    %992 = vmatmul.f32.gmra.mxu0 %v971
    %v993 = vpop.f32.mrf.mxu0
    %v994 = vadd.f32 %v965, %v993
    %995 = vdwg.mxu0
    %v996 = vmax.f32 %v991, 0.0
    %v997 = vmax.f32 %v994, 0.0
    %v998 = vld [vmem:[%s11] sm:$0xff]
    %v999 = vld [vmem:[%s11 + $0x8] sm:$0xff]
    %v1000 = vld [vmem:[%s11 + $0x10] sm:$0xff]
    %v1001 = vld [vmem:[%s11 + $0x18] sm:$0xff]
    %v1002 = vld [vmem:[%s11 + $0x20] sm:$0xff]
    %v1003 = vld [vmem:[%s11 + $0x28] sm:$0xff]
    %v1004 = vld [vmem:[%s11 + $0x30] sm:$0xff]
    %v1005 = vld [vmem:[%s11 + $0x38] sm:$0xff]
    %v1006 = vld [vmem:[#allocation10] sm:$0x1]
    %v1008 = vperm.slane %v1006, 0
    %vm1010 = vcmask 523264
    %v1012 = vsel %vm1010, %v996, 0
    %v1015 = vsel %vm1010, %v997, 0
    %1017 = vmatpush.msra.mxu0 0.0
    %1018 = vmatpush.msra.mxu0 0.0
    %1019 = vmatpush.msra.mxu0 0.0
    %1020 = vmatpush.msra.mxu0 0.0
    %1021 = vmatpush.msra.mxu0 0.0
    %1022 = vmatpush.msra.mxu0 0.0
    %1023 = vmatpush.msra.mxu0 0.0
    %1024 = vmatpush.msra.mxu0 0.0
    %1025 = vmatpush.msra.mxu0 %v1005
    %1026 = vmatpush.msra.mxu0 %v1004
    %1027 = vmatpush.msra.mxu0 %v1003
    %1028 = vmatpush.msra.mxu0 %v1002
    %1029 = vmatpush.msra.mxu0 %v1001
    %1030 = vmatpush.msra.mxu0 %v1000
    %1031 = vmatpush.msra.mxu0 %v999
    %1032 = vmatpush.msra.mxu0 %v998
    %1033 = vmatmul.f32.gmra.mxu0 %v1012
    %v1034 = vpop.f32.mrf.mxu0
    %v1035 = vadd.f32 %v1008, %v1034
    %1036 = vmatmul.f32.gmra.mxu0 %v1015
    %v1037 = vpop.f32.mrf.mxu0
    %v1038 = vadd.f32 %v1008, %v1037
    %1039 = vdwg.mxu0
    %v1040 = vadd.f32 %v957, %v1035
    %v1041 = vadd.f32 %v958, %v1038
    %v1042 = vld [vmem:[#allocation12] sm:$0x1]
    %v1043 = vld [vmem:[#allocation13] sm:$0x1]
    %v1044 = vsel %vm248, %v1040, 0.0
    %v1045 = vsel %vm248, %v1041, 0.0
    %v1046 = vadd.f32 %v1044, %v1045
    %v1047 = vrot.slane %v1046, 4
    %v1048 = vadd.f32 %v1046, %v1047
    %v1049 = vrot.slane %v1048, 2
    %v1050 = vadd.f32 %v1048, %v1049
    %v1051 = vrot.slane %v1050, 1
    %v1052 = vadd.f32 %v1050, %v1051
    %v1053 = vmul.f32 %v1052, %v920
    %v1054 = vsub.f32 %v1040, %v1053
    %v1055 = vsub.f32 %v1041, %v1053
    %v1056 = vmul.f32 %v1054, %v1054
    %v1057 = vmul.f32 %v1055, %v1055
    %v1058 = vsel %vm248, %v1056, 0.0
    %v1059 = vsel %vm248, %v1057, 0.0
    %v1060 = vadd.f32 %v1058, %v1059
    %v1061 = vrot.slane %v1060, 4
    %v1062 = vadd.f32 %v1060, %v1061
    %v1063 = vrot.slane %v1062, 2
    %v1064 = vadd.f32 %v1062, %v1063
    %v1065 = vrot.slane %v1064, 1
    %v1066 = vadd.f32 %v1064, %v1065
    %v1067 = vmul.f32 %v1066, %v920
    %v1068 = vadd.f32 %v1067, 1e-05
    %v1069 = vrsqrt.pop %v1068
    %v1070 = vmul.f32 %v1069, %v1068
    %v1071 = vmul.f32 %v1070, %v1069
    %v1072 = vmul.f32 0.5, %v1071
    %v1073 = vsub.f32 1.5, %v1072
    %v1074 = vmul.f32 %v1069, %v1073
    %vm1075 = vweird.f32 %v1068
    %vm1076 = vweird.f32 %v1069
    %vm1077 = vmor %vm1075, %vm1076
    %v1078 = vsel %vm1077, %v1069, %v1074
    %v1079 = vmul.f32 %v1054, %v1078
    %v1080 = vmul.f32 %v1055, %v1078
    %v1082 = vperm.slane %v1042, 0
    %v1084 = vmul.f32 %v1079, %v1082
    %v1085 = vmul.f32 %v1080, %v1082
    %v1087 = vperm.slane %v1043, 0
    %v1089 = vadd.f32 %v1084, %v1087
    %v1090 = vadd.f32 %v1085, %v1087
    %s1091 = scalar_lea.vmem %s4, 96
    %v1092 = vld [vmem:[%s1091] sm:$0xff]
    %v1093 = vld [vmem:[%s1091 + $0x8] sm:$0xff]
    %v1094 = vld [vmem:[%s1091 + $0x10] sm:$0xff]
    %v1095 = vld [vmem:[%s1091 + $0x18] sm:$0xff]
    %v1096 = vld [vmem:[%s1091 + $0x20] sm:$0xff]
    %v1097 = vld [vmem:[%s1091 + $0x28] sm:$0xff]
    %v1098 = vld [vmem:[%s1091 + $0x30] sm:$0xff]
    %v1099 = vld [vmem:[%s1091 + $0x38] sm:$0xff]
    %v1100 = vld [vmem:[%s1091 + $0x40] sm:$0xff]
    %v1101 = vld [vmem:[%s1091 + $0x48] sm:$0xff]
    %v1102 = vld [vmem:[%s1091 + $0x50] sm:$0xff]
    %v1103 = vld [vmem:[%s1091 + $0x58] sm:$0xff]
    %v1105 = vsel %vm248, %v1089, 0
    %v1108 = vsel %vm248, %v1090, 0
    %v1111 = vsel %vm248, %v1092, 0
    %v1114 = vsel %vm248, %v1093, 0
    %v1117 = vsel %vm248, %v1094, 0
    %1119 = vmatpush.xpose.msra.mxu0 0.0
    %1120 = vmatpush.xpose.msra.mxu0 0.0
    %1121 = vmatpush.xpose.msra.mxu0 0.0
    %1122 = vmatpush.xpose.msra.mxu0 0.0
    %1123 = vmatpush.xpose.msra.mxu0 0.0
    %1124 = vmatpush.xpose.msra.mxu0 0.0
    %1125 = vmatpush.xpose.msra.mxu0 0.0
    %1126 = vmatpush.xpose.msra.mxu0 0.0
    %1127 = vmatpush.xpose.msra.mxu0 0.0
    %1128 = vmatpush.xpose.msra.mxu0 0.0
    %1129 = vmatpush.xpose.msra.mxu0 0.0
    %1130 = vmatpush.xpose.msra.mxu0 0.0
    %1131 = vmatpush.xpose.msra.mxu0 0.0
    %1132 = vmatpush.xpose.msra.mxu0 %v1117
    %1133 = vmatpush.xpose.msra.mxu0 %v1114
    %1134 = vmatpush.xpose.msra.mxu0 %v1111
    %1135 = vmatmul.f32.gmra.mxu0 %v1105
    %v1136 = vpop.f32.mrf.mxu0
    %v1137 = vadd.f32 0.0, %v1136
    %1138 = vmatmul.f32.gmra.mxu0 %v1108
    %v1139 = vpop.f32.mrf.mxu0
    %v1140 = vadd.f32 0.0, %v1139
    %1141 = vdwg.mxu0
    %v1143 = vsel %vm248, %v1095, 0
    %v1146 = vsel %vm248, %v1096, 0
    %v1149 = vsel %vm248, %v1097, 0
    %1151 = vmatpush.xpose.msra.mxu0 0.0
    %1152 = vmatpush.xpose.msra.mxu0 0.0
    %1153 = vmatpush.xpose.msra.mxu0 0.0
    %1154 = vmatpush.xpose.msra.mxu0 0.0
    %1155 = vmatpush.xpose.msra.mxu0 0.0
    %1156 = vmatpush.xpose.msra.mxu0 0.0
    %1157 = vmatpush.xpose.msra.mxu0 0.0
    %1158 = vmatpush.xpose.msra.mxu0 0.0
    %1159 = vmatpush.xpose.msra.mxu0 0.0
    %1160 = vmatpush.xpose.msra.mxu0 0.0
    %1161 = vmatpush.xpose.msra.mxu0 0.0
    %1162 = vmatpush.xpose.msra.mxu0 0.0
    %1163 = vmatpush.xpose.msra.mxu0 0.0
    %1164 = vmatpush.xpose.msra.mxu0 %v1149
    %1165 = vmatpush.xpose.msra.mxu0 %v1146
    %1166 = vmatpush.xpose.msra.mxu0 %v1143
    %1167 = vmatmul.f32.gmra.mxu0 %v1105
    %v1168 = vpop.f32.mrf.mxu0
    %v1169 = vadd.f32 0.0, %v1168
    %1170 = vmatmul.f32.gmra.mxu0 %v1108
    %v1171 = vpop.f32.mrf.mxu0
    %v1172 = vadd.f32 0.0, %v1171
    %1173 = vdwg.mxu0
    %v1175 = vsel %vm248, %v1098, 0
    %v1178 = vsel %vm248, %v1099, 0
    %v1181 = vsel %vm248, %v1100, 0
    %1183 = vmatpush.xpose.msra.mxu0 0.0
    %1184 = vmatpush.xpose.msra.mxu0 0.0
    %1185 = vmatpush.xpose.msra.mxu0 0.0
    %1186 = vmatpush.xpose.msra.mxu0 0.0
    %1187 = vmatpush.xpose.msra.mxu0 0.0
    %1188 = vmatpush.xpose.msra.mxu0 0.0
    %1189 = vmatpush.xpose.msra.mxu0 0.0
    %1190 = vmatpush.xpose.msra.mxu0 0.0
    %1191 = vmatpush.xpose.msra.mxu0 0.0
    %1192 = vmatpush.xpose.msra.mxu0 0.0
    %1193 = vmatpush.xpose.msra.mxu0 0.0
    %1194 = vmatpush.xpose.msra.mxu0 0.0
    %1195 = vmatpush.xpose.msra.mxu0 0.0
    %1196 = vmatpush.xpose.msra.mxu0 %v1181
    %1197 = vmatpush.xpose.msra.mxu0 %v1178
    %1198 = vmatpush.xpose.msra.mxu0 %v1175
    %1199 = vmatmul.f32.gmra.mxu0 %v1105
    %v1200 = vpop.f32.mrf.mxu0
    %v1201 = vadd.f32 0.0, %v1200
    %1202 = vmatmul.f32.gmra.mxu0 %v1108
    %v1203 = vpop.f32.mrf.mxu0
    %v1204 = vadd.f32 0.0, %v1203
    %1205 = vdwg.mxu0
    %v1207 = vsel %vm248, %v1101, 0
    %v1210 = vsel %vm248, %v1102, 0
    %v1213 = vsel %vm248, %v1103, 0
    %1215 = vmatpush.xpose.msra.mxu0 0.0
    %1216 = vmatpush.xpose.msra.mxu0 0.0
    %1217 = vmatpush.xpose.msra.mxu0 0.0
    %1218 = vmatpush.xpose.msra.mxu0 0.0
    %1219 = vmatpush.xpose.msra.mxu0 0.0
    %1220 = vmatpush.xpose.msra.mxu0 0.0
    %1221 = vmatpush.xpose.msra.mxu0 0.0
    %1222 = vmatpush.xpose.msra.mxu0 0.0
    %1223 = vmatpush.xpose.msra.mxu0 0.0
    %1224 = vmatpush.xpose.msra.mxu0 0.0
    %1225 = vmatpush.xpose.msra.mxu0 0.0
    %1226 = vmatpush.xpose.msra.mxu0 0.0
    %1227 = vmatpush.xpose.msra.mxu0 0.0
    %1228 = vmatpush.xpose.msra.mxu0 %v1213
    %1229 = vmatpush.xpose.msra.mxu0 %v1210
    %1230 = vmatpush.xpose.msra.mxu0 %v1207
    %1231 = vmatmul.f32.gmra.mxu0 %v1105
    %v1232 = vpop.f32.mrf.mxu0
    %v1233 = vadd.f32 0.0, %v1232
    %1234 = vmatmul.f32.gmra.mxu0 %v1108
    %v1235 = vpop.f32.mrf.mxu0
    %v1236 = vadd.f32 0.0, %v1235
    %1237 = vdwg.mxu0
    %1240 = vrot.lane.b32.xlu0 %v1137, 120
    %v1241 = vpop.permute.xlu0 %1240
    %1242 = vrot.lane.b32.xlu0 %v1140, 120
    %v1243 = vpop.permute.xlu0 %1242
    %v1244 = vsel %vm389, %v1137, 0
    %v1246 = vsel %vm389, %v1140, 0
    %v1248 = vsel %vm389, %v1241, 0
    %v1250 = vsel %vm389, %v1243, 0
    %1252 = vmatpush.xpose.msra.mxu0 0.0
    %1253 = vmatpush.xpose.msra.mxu0 0.0
    %1254 = vmatpush.xpose.msra.mxu0 0.0
    %1255 = vmatpush.xpose.msra.mxu0 0.0
    %1256 = vmatpush.xpose.msra.mxu0 0.0
    %1257 = vmatpush.xpose.msra.mxu0 0.0
    %1258 = vmatpush.xpose.msra.mxu0 0.0
    %1259 = vmatpush.xpose.msra.mxu0 0.0
    %1260 = vmatpush.xpose.msra.mxu0 0.0
    %1261 = vmatpush.xpose.msra.mxu0 0.0
    %1262 = vmatpush.xpose.msra.mxu0 0.0
    %1263 = vmatpush.xpose.msra.mxu0 0.0
    %1264 = vmatpush.xpose.msra.mxu0 0.0
    %1265 = vmatpush.xpose.msra.mxu0 0.0
    %1266 = vmatpush.xpose.msra.mxu0 %v1250
    %1267 = vmatpush.xpose.msra.mxu0 %v1248
    %1268 = vmatmul.f32.gmra.mxu0 %v1244
    %v1269 = vpop.f32.mrf.mxu0
    %v1270 = vadd.f32 0.0, %v1269
    %1271 = vmatmul.f32.gmra.mxu0 %v1246
    %v1272 = vpop.f32.mrf.mxu0
    %v1273 = vadd.f32 0.0, %v1272
    %1274 = vdwg.mxu0
    %1277 = vrot.lane.b32.xlu0 %v1169, 120
    %v1278 = vpop.permute.xlu0 %1277
    %1279 = vrot.lane.b32.xlu0 %v1172, 120
    %v1280 = vpop.permute.xlu0 %1279
    %v1281 = vsel %vm389, %v1169, 0
    %v1283 = vsel %vm389, %v1172, 0
    %v1285 = vsel %vm389, %v1278, 0
    %v1287 = vsel %vm389, %v1280, 0
    %1289 = vmatpush.xpose.msra.mxu0 0.0
    %1290 = vmatpush.xpose.msra.mxu0 0.0
    %1291 = vmatpush.xpose.msra.mxu0 0.0
    %1292 = vmatpush.xpose.msra.mxu0 0.0
    %1293 = vmatpush.xpose.msra.mxu0 0.0
    %1294 = vmatpush.xpose.msra.mxu0 0.0
    %1295 = vmatpush.xpose.msra.mxu0 0.0
    %1296 = vmatpush.xpose.msra.mxu0 0.0
    %1297 = vmatpush.xpose.msra.mxu0 0.0
    %1298 = vmatpush.xpose.msra.mxu0 0.0
    %1299 = vmatpush.xpose.msra.mxu0 0.0
    %1300 = vmatpush.xpose.msra.mxu0 0.0
    %1301 = vmatpush.xpose.msra.mxu0 0.0
    %1302 = vmatpush.xpose.msra.mxu0 0.0
    %1303 = vmatpush.xpose.msra.mxu0 %v1287
    %1304 = vmatpush.xpose.msra.mxu0 %v1285
    %1305 = vmatmul.f32.gmra.mxu0 %v1281
    %v1306 = vpop.f32.mrf.mxu0
    %v1307 = vadd.f32 0.0, %v1306
    %1308 = vmatmul.f32.gmra.mxu0 %v1283
    %v1309 = vpop.f32.mrf.mxu0
    %v1310 = vadd.f32 0.0, %v1309
    %1311 = vdwg.mxu0
    %1314 = vrot.lane.b32.xlu0 %v1201, 120
    %v1315 = vpop.permute.xlu0 %1314
    %1316 = vrot.lane.b32.xlu0 %v1204, 120
    %v1317 = vpop.permute.xlu0 %1316
    %v1318 = vsel %vm389, %v1201, 0
    %v1320 = vsel %vm389, %v1204, 0
    %v1322 = vsel %vm389, %v1315, 0
    %v1324 = vsel %vm389, %v1317, 0
    %1326 = vmatpush.xpose.msra.mxu0 0.0
    %1327 = vmatpush.xpose.msra.mxu0 0.0
    %1328 = vmatpush.xpose.msra.mxu0 0.0
    %1329 = vmatpush.xpose.msra.mxu0 0.0
    %1330 = vmatpush.xpose.msra.mxu0 0.0
    %1331 = vmatpush.xpose.msra.mxu0 0.0
    %1332 = vmatpush.xpose.msra.mxu0 0.0
    %1333 = vmatpush.xpose.msra.mxu0 0.0
    %1334 = vmatpush.xpose.msra.mxu0 0.0
    %1335 = vmatpush.xpose.msra.mxu0 0.0
    %1336 = vmatpush.xpose.msra.mxu0 0.0
    %1337 = vmatpush.xpose.msra.mxu0 0.0
    %1338 = vmatpush.xpose.msra.mxu0 0.0
    %1339 = vmatpush.xpose.msra.mxu0 0.0
    %1340 = vmatpush.xpose.msra.mxu0 %v1324
    %1341 = vmatpush.xpose.msra.mxu0 %v1322
    %1342 = vmatmul.f32.gmra.mxu0 %v1318
    %v1343 = vpop.f32.mrf.mxu0
    %v1344 = vadd.f32 0.0, %v1343
    %1345 = vmatmul.f32.gmra.mxu0 %v1320
    %v1346 = vpop.f32.mrf.mxu0
    %v1347 = vadd.f32 0.0, %v1346
    %1348 = vdwg.mxu0
    %1351 = vrot.lane.b32.xlu0 %v1233, 120
    %v1352 = vpop.permute.xlu0 %1351
    %1353 = vrot.lane.b32.xlu0 %v1236, 120
    %v1354 = vpop.permute.xlu0 %1353
    %v1355 = vsel %vm389, %v1233, 0
    %v1357 = vsel %vm389, %v1236, 0
    %v1359 = vsel %vm389, %v1352, 0
    %v1361 = vsel %vm389, %v1354, 0
    %1363 = vmatpush.xpose.msra.mxu0 0.0
    %1364 = vmatpush.xpose.msra.mxu0 0.0
    %1365 = vmatpush.xpose.msra.mxu0 0.0
    %1366 = vmatpush.xpose.msra.mxu0 0.0
    %1367 = vmatpush.xpose.msra.mxu0 0.0
    %1368 = vmatpush.xpose.msra.mxu0 0.0
    %1369 = vmatpush.xpose.msra.mxu0 0.0
    %1370 = vmatpush.xpose.msra.mxu0 0.0
    %1371 = vmatpush.xpose.msra.mxu0 0.0
    %1372 = vmatpush.xpose.msra.mxu0 0.0
    %1373 = vmatpush.xpose.msra.mxu0 0.0
    %1374 = vmatpush.xpose.msra.mxu0 0.0
    %1375 = vmatpush.xpose.msra.mxu0 0.0
    %1376 = vmatpush.xpose.msra.mxu0 0.0
    %1377 = vmatpush.xpose.msra.mxu0 %v1361
    %1378 = vmatpush.xpose.msra.mxu0 %v1359
    %1379 = vmatmul.f32.gmra.mxu0 %v1355
    %v1380 = vpop.f32.mrf.mxu0
    %v1381 = vadd.f32 0.0, %v1380
    %1382 = vmatmul.f32.gmra.mxu0 %v1357
    %v1383 = vpop.f32.mrf.mxu0
    %v1384 = vadd.f32 0.0, %v1383
    %1385 = vdwg.mxu0
    %v1386 = vmax.f32 %v1270, -5.0
    %v1387 = vmax.f32 %v1273, -5.0
    %v1388 = vmax.f32 %v1307, -5.0
    %v1389 = vmax.f32 %v1310, -5.0
    %v1390 = vmax.f32 %v1344, -5.0
    %v1391 = vmax.f32 %v1347, -5.0
    %v1392 = vmax.f32 %v1381, -5.0
    %v1393 = vmax.f32 %v1384, -5.0
    %v1394 = vmin.f32 %v1386, 5.0
    %v1395 = vmin.f32 %v1387, 5.0
    %v1396 = vmin.f32 %v1388, 5.0
    %v1397 = vmin.f32 %v1389, 5.0
    %v1398 = vmin.f32 %v1390, 5.0
    %v1399 = vmin.f32 %v1391, 5.0
    %v1400 = vmin.f32 %v1392, 5.0
    %v1401 = vmin.f32 %v1393, 5.0
    %v1402 = vmul.f32 %v1394, 1.442695
    %v1403 = vpow.pop %v1402
    %v1404 = vmul.f32 %v1395, 1.442695
    %v1405 = vpow.pop %v1404
    %v1406 = vmul.f32 %v1396, 1.442695
    %v1407 = vpow.pop %v1406
    %v1408 = vmul.f32 %v1397, 1.442695
    %v1409 = vpow.pop %v1408
    %v1410 = vmul.f32 %v1398, 1.442695
    %v1411 = vpow.pop %v1410
    %v1412 = vmul.f32 %v1399, 1.442695
    %v1413 = vpow.pop %v1412
    %v1414 = vmul.f32 %v1400, 1.442695
    %v1415 = vpow.pop %v1414
    %v1416 = vmul.f32 %v1401, 1.442695
    %v1417 = vpow.pop %v1416
    %v1418 = vmul.f32 %v1403, %v232
    %v1419 = vmul.f32 %v1405, %v233
    %v1420 = vmul.f32 %v1407, %v232
    %v1421 = vmul.f32 %v1409, %v233
    %v1422 = vmul.f32 %v1411, %v232
    %v1423 = vmul.f32 %v1413, %v233
    %v1424 = vmul.f32 %v1415, %v232
    %v1425 = vmul.f32 %v1417, %v233
    %1426 = vrot.lane.b32.xlu0 %v1137, 112
    %v1427 = vpop.permute.xlu0 %1426
    %1428 = vrot.lane.b32.xlu0 %v1140, 112
    %v1429 = vpop.permute.xlu0 %1428
    %v1433 = vsel %vm578, %v1418, 0
    %v1436 = vsel %vm578, %v1419, 0
    %1438 = vmatpush.msra.mxu0 0.0
    %1439 = vmatpush.msra.mxu0 0.0
    %1440 = vmatpush.msra.mxu0 0.0
    %1441 = vmatpush.msra.mxu0 0.0
    %1442 = vmatpush.msra.mxu0 0.0
    %1443 = vmatpush.msra.mxu0 0.0
    %1444 = vmatpush.msra.mxu0 0.0
    %1445 = vmatpush.msra.mxu0 0.0
    %1446 = vmatpush.msra.mxu0 0.0
    %1447 = vmatpush.msra.mxu0 0.0
    %1448 = vmatpush.msra.mxu0 0.0
    %1449 = vmatpush.msra.mxu0 0.0
    %1450 = vmatpush.msra.mxu0 0.0
    %1451 = vmatpush.msra.mxu0 0.0
    %1452 = vmatpush.msra.mxu0 %v1429
    %1453 = vmatpush.msra.mxu0 %v1427
    %1454 = vmatmul.f32.gmra.mxu0 %v1433
    %v1455 = vpop.f32.mrf.mxu0
    %v1456 = vadd.f32 0.0, %v1455
    %1457 = vmatmul.f32.gmra.mxu0 %v1436
    %v1458 = vpop.f32.mrf.mxu0
    %v1459 = vadd.f32 0.0, %v1458
    %1460 = vdwg.mxu0
    %1461 = vrot.lane.b32.xlu0 %v1169, 112
    %v1462 = vpop.permute.xlu0 %1461
    %1463 = vrot.lane.b32.xlu0 %v1172, 112
    %v1464 = vpop.permute.xlu0 %1463
    %v1468 = vsel %vm578, %v1420, 0
    %v1471 = vsel %vm578, %v1421, 0
    %1473 = vmatpush.msra.mxu0 0.0
    %1474 = vmatpush.msra.mxu0 0.0
    %1475 = vmatpush.msra.mxu0 0.0
    %1476 = vmatpush.msra.mxu0 0.0
    %1477 = vmatpush.msra.mxu0 0.0
    %1478 = vmatpush.msra.mxu0 0.0
    %1479 = vmatpush.msra.mxu0 0.0
    %1480 = vmatpush.msra.mxu0 0.0
    %1481 = vmatpush.msra.mxu0 0.0
    %1482 = vmatpush.msra.mxu0 0.0
    %1483 = vmatpush.msra.mxu0 0.0
    %1484 = vmatpush.msra.mxu0 0.0
    %1485 = vmatpush.msra.mxu0 0.0
    %1486 = vmatpush.msra.mxu0 0.0
    %1487 = vmatpush.msra.mxu0 %v1464
    %1488 = vmatpush.msra.mxu0 %v1462
    %1489 = vmatmul.f32.gmra.mxu0 %v1468
    %v1490 = vpop.f32.mrf.mxu0
    %v1491 = vadd.f32 0.0, %v1490
    %1492 = vmatmul.f32.gmra.mxu0 %v1471
    %v1493 = vpop.f32.mrf.mxu0
    %v1494 = vadd.f32 0.0, %v1493
    %1495 = vdwg.mxu0
    %1496 = vrot.lane.b32.xlu0 %v1201, 112
    %v1497 = vpop.permute.xlu0 %1496
    %1498 = vrot.lane.b32.xlu0 %v1204, 112
    %v1499 = vpop.permute.xlu0 %1498
    %v1503 = vsel %vm578, %v1422, 0
    %v1506 = vsel %vm578, %v1423, 0
    %1508 = vmatpush.msra.mxu0 0.0
    %1509 = vmatpush.msra.mxu0 0.0
    %1510 = vmatpush.msra.mxu0 0.0
    %1511 = vmatpush.msra.mxu0 0.0
    %1512 = vmatpush.msra.mxu0 0.0
    %1513 = vmatpush.msra.mxu0 0.0
    %1514 = vmatpush.msra.mxu0 0.0
    %1515 = vmatpush.msra.mxu0 0.0
    %1516 = vmatpush.msra.mxu0 0.0
    %1517 = vmatpush.msra.mxu0 0.0
    %1518 = vmatpush.msra.mxu0 0.0
    %1519 = vmatpush.msra.mxu0 0.0
    %1520 = vmatpush.msra.mxu0 0.0
    %1521 = vmatpush.msra.mxu0 0.0
    %1522 = vmatpush.msra.mxu0 %v1499
    %1523 = vmatpush.msra.mxu0 %v1497
    %1524 = vmatmul.f32.gmra.mxu0 %v1503
    %v1525 = vpop.f32.mrf.mxu0
    %v1526 = vadd.f32 0.0, %v1525
    %1527 = vmatmul.f32.gmra.mxu0 %v1506
    %v1528 = vpop.f32.mrf.mxu0
    %v1529 = vadd.f32 0.0, %v1528
    %1530 = vdwg.mxu0
    %1531 = vrot.lane.b32.xlu0 %v1233, 112
    %v1532 = vpop.permute.xlu0 %1531
    %1533 = vrot.lane.b32.xlu0 %v1236, 112
    %v1534 = vpop.permute.xlu0 %1533
    %v1538 = vsel %vm578, %v1424, 0
    %v1541 = vsel %vm578, %v1425, 0
    %1543 = vmatpush.msra.mxu0 0.0
    %1544 = vmatpush.msra.mxu0 0.0
    %1545 = vmatpush.msra.mxu0 0.0
    %1546 = vmatpush.msra.mxu0 0.0
    %1547 = vmatpush.msra.mxu0 0.0
    %1548 = vmatpush.msra.mxu0 0.0
    %1549 = vmatpush.msra.mxu0 0.0
    %1550 = vmatpush.msra.mxu0 0.0
    %1551 = vmatpush.msra.mxu0 0.0
    %1552 = vmatpush.msra.mxu0 0.0
    %1553 = vmatpush.msra.mxu0 0.0
    %1554 = vmatpush.msra.mxu0 0.0
    %1555 = vmatpush.msra.mxu0 0.0
    %1556 = vmatpush.msra.mxu0 0.0
    %1557 = vmatpush.msra.mxu0 %v1534
    %1558 = vmatpush.msra.mxu0 %v1532
    %1559 = vmatmul.f32.gmra.mxu0 %v1538
    %v1560 = vpop.f32.mrf.mxu0
    %v1561 = vadd.f32 0.0, %v1560
    %1562 = vmatmul.f32.gmra.mxu0 %v1541
    %v1563 = vpop.f32.mrf.mxu0
    %v1564 = vadd.f32 0.0, %v1563
    %1565 = vdwg.mxu0
    %v1566 = vsel %vm578, %v1418, 0.0
    %1567 = vadd.xlane.f32.xlu0 %v1566
    %v1568 = vpop.xlane.xlu0 %1567
    %v1569 = vsel %vm578, %v1419, 0.0
    %1570 = vadd.xlane.f32.xlu0 %v1569
    %v1571 = vpop.xlane.xlu0 %1570
    %v1572 = vsel %vm578, %v1420, 0.0
    %1573 = vadd.xlane.f32.xlu0 %v1572
    %v1574 = vpop.xlane.xlu0 %1573
    %v1575 = vsel %vm578, %v1421, 0.0
    %1576 = vadd.xlane.f32.xlu0 %v1575
    %v1577 = vpop.xlane.xlu0 %1576
    %v1578 = vsel %vm578, %v1422, 0.0
    %1579 = vadd.xlane.f32.xlu0 %v1578
    %v1580 = vpop.xlane.xlu0 %1579
    %v1581 = vsel %vm578, %v1423, 0.0
    %1582 = vadd.xlane.f32.xlu0 %v1581
    %v1583 = vpop.xlane.xlu0 %1582
    %v1584 = vsel %vm578, %v1424, 0.0
    %1585 = vadd.xlane.f32.xlu0 %v1584
    %v1586 = vpop.xlane.xlu0 %1585
    %v1587 = vsel %vm578, %v1425, 0.0
    %1588 = vadd.xlane.f32.xlu0 %v1587
    %v1589 = vpop.xlane.xlu0 %1588
    %v1590 = vadd.f32 %v1568, 1e-06
    %v1591 = vadd.f32 %v1571, 1e-06
    %v1592 = vadd.f32 %v1574, 1e-06
    %v1593 = vadd.f32 %v1577, 1e-06
    %v1594 = vadd.f32 %v1580, 1e-06
    %v1595 = vadd.f32 %v1583, 1e-06
    %v1596 = vadd.f32 %v1586, 1e-06
    %v1597 = vadd.f32 %v1589, 1e-06
    %v1598 = vrcp.pop %v1590
    %v1599 = vrcp.pop %v1591
    %v1600 = vrcp.pop %v1592
    %v1601 = vrcp.pop %v1593
    %v1602 = vrcp.pop %v1594
    %v1603 = vrcp.pop %v1595
    %v1604 = vrcp.pop %v1596
    %v1605 = vrcp.pop %v1597
    %v1606 = vmul.f32 %v1456, %v1598
    %v1607 = vmul.f32 %v1459, %v1599
    %v1608 = vmul.f32 %v1491, %v1600
    %v1609 = vmul.f32 %v1494, %v1601
    %v1610 = vmul.f32 %v1526, %v1602
    %v1611 = vmul.f32 %v1529, %v1603
    %v1612 = vmul.f32 %v1561, %v1604
    %v1613 = vmul.f32 %v1564, %v1605
    %s1614 = scalar_lea.vmem [#allocation4], 32
    %v1615 = vld [vmem:[%s1614] sm:$0xff]
    %v1616 = vld [vmem:[%s1614 + $0x8] sm:$0xff]
    %v1617 = vld [vmem:[%s1614 + $0x10] sm:$0xff]
    %v1618 = vld [vmem:[%s1614 + $0x18] sm:$0xff]
    %v1620 = vsel %vm389, %v1606, 0
    %v1623 = vsel %vm389, %v1607, 0
    %1625 = vmatpush.msra.mxu0 0.0
    %1626 = vmatpush.msra.mxu0 0.0
    %1627 = vmatpush.msra.mxu0 0.0
    %1628 = vmatpush.msra.mxu0 0.0
    %1629 = vmatpush.msra.mxu0 0.0
    %1630 = vmatpush.msra.mxu0 0.0
    %1631 = vmatpush.msra.mxu0 0.0
    %1632 = vmatpush.msra.mxu0 0.0
    %1633 = vmatpush.msra.mxu0 0.0
    %1634 = vmatpush.msra.mxu0 0.0
    %1635 = vmatpush.msra.mxu0 0.0
    %1636 = vmatpush.msra.mxu0 0.0
    %1637 = vmatpush.msra.mxu0 0.0
    %1638 = vmatpush.msra.mxu0 0.0
    %1639 = vmatpush.msra.mxu0 0.0
    %1640 = vmatpush.msra.mxu0 %v1615
    %1641 = vmatmul.f32.gmra.mxu0 %v1620
    %v1642 = vpop.f32.mrf.mxu0
    %v1643 = vadd.f32 0.0, %v1642
    %1644 = vmatmul.f32.gmra.mxu0 %v1623
    %v1645 = vpop.f32.mrf.mxu0
    %v1646 = vadd.f32 0.0, %v1645
    %1647 = vdwg.mxu0
    %v1649 = vsel %vm389, %v1608, 0
    %v1652 = vsel %vm389, %v1609, 0
    %1654 = vmatpush.msra.mxu0 0.0
    %1655 = vmatpush.msra.mxu0 0.0
    %1656 = vmatpush.msra.mxu0 0.0
    %1657 = vmatpush.msra.mxu0 0.0
    %1658 = vmatpush.msra.mxu0 0.0
    %1659 = vmatpush.msra.mxu0 0.0
    %1660 = vmatpush.msra.mxu0 0.0
    %1661 = vmatpush.msra.mxu0 0.0
    %1662 = vmatpush.msra.mxu0 0.0
    %1663 = vmatpush.msra.mxu0 0.0
    %1664 = vmatpush.msra.mxu0 0.0
    %1665 = vmatpush.msra.mxu0 0.0
    %1666 = vmatpush.msra.mxu0 0.0
    %1667 = vmatpush.msra.mxu0 0.0
    %1668 = vmatpush.msra.mxu0 0.0
    %1669 = vmatpush.msra.mxu0 %v1616
    %1670 = vmatmul.f32.gmra.mxu0 %v1649
    %v1671 = vpop.f32.mrf.mxu0
    %v1672 = vadd.f32 0.0, %v1671
    %1673 = vmatmul.f32.gmra.mxu0 %v1652
    %v1674 = vpop.f32.mrf.mxu0
    %v1675 = vadd.f32 0.0, %v1674
    %1676 = vdwg.mxu0
    %v1678 = vsel %vm389, %v1610, 0
    %v1681 = vsel %vm389, %v1611, 0
    %1683 = vmatpush.msra.mxu0 0.0
    %1684 = vmatpush.msra.mxu0 0.0
    %1685 = vmatpush.msra.mxu0 0.0
    %1686 = vmatpush.msra.mxu0 0.0
    %1687 = vmatpush.msra.mxu0 0.0
    %1688 = vmatpush.msra.mxu0 0.0
    %1689 = vmatpush.msra.mxu0 0.0
    %1690 = vmatpush.msra.mxu0 0.0
    %1691 = vmatpush.msra.mxu0 0.0
    %1692 = vmatpush.msra.mxu0 0.0
    %1693 = vmatpush.msra.mxu0 0.0
    %1694 = vmatpush.msra.mxu0 0.0
    %1695 = vmatpush.msra.mxu0 0.0
    %1696 = vmatpush.msra.mxu0 0.0
    %1697 = vmatpush.msra.mxu0 0.0
    %1698 = vmatpush.msra.mxu0 %v1617
    %1699 = vmatmul.f32.gmra.mxu0 %v1678
    %v1700 = vpop.f32.mrf.mxu0
    %v1701 = vadd.f32 0.0, %v1700
    %1702 = vmatmul.f32.gmra.mxu0 %v1681
    %v1703 = vpop.f32.mrf.mxu0
    %v1704 = vadd.f32 0.0, %v1703
    %1705 = vdwg.mxu0
    %v1707 = vsel %vm389, %v1612, 0
    %v1710 = vsel %vm389, %v1613, 0
    %1712 = vmatpush.msra.mxu0 0.0
    %1713 = vmatpush.msra.mxu0 0.0
    %1714 = vmatpush.msra.mxu0 0.0
    %1715 = vmatpush.msra.mxu0 0.0
    %1716 = vmatpush.msra.mxu0 0.0
    %1717 = vmatpush.msra.mxu0 0.0
    %1718 = vmatpush.msra.mxu0 0.0
    %1719 = vmatpush.msra.mxu0 0.0
    %1720 = vmatpush.msra.mxu0 0.0
    %1721 = vmatpush.msra.mxu0 0.0
    %1722 = vmatpush.msra.mxu0 0.0
    %1723 = vmatpush.msra.mxu0 0.0
    %1724 = vmatpush.msra.mxu0 0.0
    %1725 = vmatpush.msra.mxu0 0.0
    %1726 = vmatpush.msra.mxu0 0.0
    %1727 = vmatpush.msra.mxu0 %v1618
    %1728 = vmatmul.f32.gmra.mxu0 %v1707
    %v1729 = vpop.f32.mrf.mxu0
    %v1730 = vadd.f32 0.0, %v1729
    %1731 = vmatmul.f32.gmra.mxu0 %v1710
    %v1732 = vpop.f32.mrf.mxu0
    %v1733 = vadd.f32 0.0, %v1732
    %1734 = vdwg.mxu0
    %v1735 = vsel %vm248, %v1643, 0.0
    %v1736 = vsel %vm248, %v1672, 0.0
    %v1737 = vadd.f32 %v1735, %v1736
    %v1738 = vsel %vm248, %v1701, 0.0
    %v1739 = vadd.f32 %v1737, %v1738
    %v1740 = vsel %vm248, %v1730, 0.0
    %v1741 = vadd.f32 %v1739, %v1740
    %v1742 = vsel %vm248, %v1646, 0.0
    %v1743 = vsel %vm248, %v1675, 0.0
    %v1744 = vadd.f32 %v1742, %v1743
    %v1745 = vsel %vm248, %v1704, 0.0
    %v1746 = vadd.f32 %v1744, %v1745
    %v1747 = vsel %vm248, %v1733, 0.0
    %v1748 = vadd.f32 %v1746, %v1747
    %v1749 = vadd.f32 %v1089, %v1741
    %v1750 = vadd.f32 %v1090, %v1748
    %s1751 = scalar_lea.vmem %s6, 1
    %v1752 = vld [vmem:[%s1751] sm:$0x1]
    %v1754 = vperm.slane %v1752, 0
    %v1756 = vadd.f32 %v1749, %v1754
    %v1757 = vadd.f32 %v1750, %v1754
    %s1758 = scalar_lea.vmem [#allocation6], 1
    %v1759 = vld [vmem:[%s1758] sm:$0x1]
    %s1760 = scalar_lea.vmem [#allocation7], 1
    %v1761 = vld [vmem:[%s1760] sm:$0x1]
    %v1762 = vsel %vm248, %v1756, 0.0
    %v1763 = vsel %vm248, %v1757, 0.0
    %v1764 = vadd.f32 %v1762, %v1763
    %v1765 = vrot.slane %v1764, 4
    %v1766 = vadd.f32 %v1764, %v1765
    %v1767 = vrot.slane %v1766, 2
    %v1768 = vadd.f32 %v1766, %v1767
    %v1769 = vrot.slane %v1768, 1
    %v1770 = vadd.f32 %v1768, %v1769
    %v1771 = vmul.f32 %v1770, %v920
    %v1772 = vsub.f32 %v1756, %v1771
    %v1773 = vsub.f32 %v1757, %v1771
    %v1774 = vmul.f32 %v1772, %v1772
    %v1775 = vmul.f32 %v1773, %v1773
    %v1776 = vsel %vm248, %v1774, 0.0
    %v1777 = vsel %vm248, %v1775, 0.0
    %v1778 = vadd.f32 %v1776, %v1777
    %v1779 = vrot.slane %v1778, 4
    %v1780 = vadd.f32 %v1778, %v1779
    %v1781 = vrot.slane %v1780, 2
    %v1782 = vadd.f32 %v1780, %v1781
    %v1783 = vrot.slane %v1782, 1
    %v1784 = vadd.f32 %v1782, %v1783
    %v1785 = vmul.f32 %v1784, %v920
    %v1786 = vadd.f32 %v1785, 1e-05
    %v1787 = vrsqrt.pop %v1786
    %v1788 = vmul.f32 %v1787, %v1786
    %v1789 = vmul.f32 %v1788, %v1787
    %v1790 = vmul.f32 0.5, %v1789
    %v1791 = vsub.f32 1.5, %v1790
    %v1792 = vmul.f32 %v1787, %v1791
    %vm1793 = vweird.f32 %v1786
    %vm1794 = vweird.f32 %v1787
    %vm1795 = vmor %vm1793, %vm1794
    %v1796 = vsel %vm1795, %v1787, %v1792
    %v1797 = vmul.f32 %v1772, %v1796
    %v1798 = vmul.f32 %v1773, %v1796
    %v1800 = vperm.slane %v1759, 0
    %v1802 = vmul.f32 %v1797, %v1800
    %v1803 = vmul.f32 %v1798, %v1800
    %v1805 = vperm.slane %v1761, 0
    %v1807 = vadd.f32 %v1802, %v1805
    %v1808 = vadd.f32 %v1803, %v1805
    %s1809 = scalar_lea.vmem [#allocation9], 32
    %v1810 = vld [vmem:[%s1809] sm:$0xff]
    %v1811 = vld [vmem:[%s1809 + $0x8] sm:$0xff]
    %v1812 = vld [vmem:[%s1809 + $0x10] sm:$0xff]
    %v1813 = vld [vmem:[%s1809 + $0x18] sm:$0xff]
    %s1814 = scalar_lea.vmem %s10, 1
    %v1815 = vld [vmem:[%s1814] sm:$0x1]
    %v1817 = vperm.slane %v1815, 0
    %v1820 = vsel %vm248, %v1807, 0
    %v1823 = vsel %vm248, %v1808, 0
    %1825 = vmatpush.msra.mxu0 0.0
    %1826 = vmatpush.msra.mxu0 0.0
    %1827 = vmatpush.msra.mxu0 0.0
    %1828 = vmatpush.msra.mxu0 0.0
    %1829 = vmatpush.msra.mxu0 0.0
    %1830 = vmatpush.msra.mxu0 0.0
    %1831 = vmatpush.msra.mxu0 0.0
    %1832 = vmatpush.msra.mxu0 0.0
    %1833 = vmatpush.msra.mxu0 0.0
    %1834 = vmatpush.msra.mxu0 0.0
    %1835 = vmatpush.msra.mxu0 0.0
    %1836 = vmatpush.msra.mxu0 0.0
    %1837 = vmatpush.msra.mxu0 %v1813
    %1838 = vmatpush.msra.mxu0 %v1812
    %1839 = vmatpush.msra.mxu0 %v1811
    %1840 = vmatpush.msra.mxu0 %v1810
    %1841 = vmatmul.f32.gmra.mxu0 %v1820
    %v1842 = vpop.f32.mrf.mxu0
    %v1843 = vadd.f32 %v1817, %v1842
    %1844 = vmatmul.f32.gmra.mxu0 %v1823
    %v1845 = vpop.f32.mrf.mxu0
    %v1846 = vadd.f32 %v1817, %v1845
    %1847 = vdwg.mxu0
    %v1848 = vmax.f32 %v1843, 0.0
    %v1849 = vmax.f32 %v1846, 0.0
    %s1850 = scalar_lea.vmem %s11, 64
    %v1851 = vld [vmem:[%s1850] sm:$0xff]
    %v1852 = vld [vmem:[%s1850 + $0x8] sm:$0xff]
    %v1853 = vld [vmem:[%s1850 + $0x10] sm:$0xff]
    %v1854 = vld [vmem:[%s1850 + $0x18] sm:$0xff]
    %v1855 = vld [vmem:[%s1850 + $0x20] sm:$0xff]
    %v1856 = vld [vmem:[%s1850 + $0x28] sm:$0xff]
    %v1857 = vld [vmem:[%s1850 + $0x30] sm:$0xff]
    %v1858 = vld [vmem:[%s1850 + $0x38] sm:$0xff]
    %s1859 = scalar_lea.vmem [#allocation10], 1
    %v1860 = vld [vmem:[%s1859] sm:$0x1]
    %v1862 = vperm.slane %v1860, 0
    %v1865 = vsel %vm1010, %v1848, 0
    %v1868 = vsel %vm1010, %v1849, 0
    %1870 = vmatpush.msra.mxu0 0.0
    %1871 = vmatpush.msra.mxu0 0.0
    %1872 = vmatpush.msra.mxu0 0.0
    %1873 = vmatpush.msra.mxu0 0.0
    %1874 = vmatpush.msra.mxu0 0.0
    %1875 = vmatpush.msra.mxu0 0.0
    %1876 = vmatpush.msra.mxu0 0.0
    %1877 = vmatpush.msra.mxu0 0.0
    %1878 = vmatpush.msra.mxu0 %v1858
    %1879 = vmatpush.msra.mxu0 %v1857
    %1880 = vmatpush.msra.mxu0 %v1856
    %1881 = vmatpush.msra.mxu0 %v1855
    %1882 = vmatpush.msra.mxu0 %v1854
    %1883 = vmatpush.msra.mxu0 %v1853
    %1884 = vmatpush.msra.mxu0 %v1852
    %1885 = vmatpush.msra.mxu0 %v1851
    %1886 = vmatmul.f32.gmra.mxu0 %v1865
    %v1887 = vpop.f32.mrf.mxu0
    %v1888 = vadd.f32 %v1862, %v1887
    %1889 = vmatmul.f32.gmra.mxu0 %v1868
    %v1890 = vpop.f32.mrf.mxu0
    %v1891 = vadd.f32 %v1862, %v1890
    %1892 = vdwg.mxu0
    %v1893 = vadd.f32 %v1807, %v1888
    %v1894 = vadd.f32 %v1808, %v1891
    %s1895 = scalar_lea.vmem [#allocation12], 1
    %v1896 = vld [vmem:[%s1895] sm:$0x1]
    %s1897 = scalar_lea.vmem [#allocation13], 1
    %v1898 = vld [vmem:[%s1897] sm:$0x1]
    %v1899 = vsel %vm248, %v1893, 0.0
    %v1900 = vsel %vm248, %v1894, 0.0
    %v1901 = vadd.f32 %v1899, %v1900
    %v1902 = vrot.slane %v1901, 4
    %v1903 = vadd.f32 %v1901, %v1902
    %v1904 = vrot.slane %v1903, 2
    %v1905 = vadd.f32 %v1903, %v1904
    %v1906 = vrot.slane %v1905, 1
    %v1907 = vadd.f32 %v1905, %v1906
    %v1908 = vmul.f32 %v1907, %v920
    %v1909 = vsub.f32 %v1893, %v1908
    %v1910 = vsub.f32 %v1894, %v1908
    %v1911 = vmul.f32 %v1909, %v1909
    %v1912 = vmul.f32 %v1910, %v1910
    %v1913 = vsel %vm248, %v1911, 0.0
    %v1914 = vsel %vm248, %v1912, 0.0
    %v1915 = vadd.f32 %v1913, %v1914
    %v1916 = vrot.slane %v1915, 4
    %v1917 = vadd.f32 %v1915, %v1916
    %v1918 = vrot.slane %v1917, 2
    %v1919 = vadd.f32 %v1917, %v1918
    %v1920 = vrot.slane %v1919, 1
    %v1921 = vadd.f32 %v1919, %v1920
    %v1922 = vmul.f32 %v1921, %v920
    %v1923 = vadd.f32 %v1922, 1e-05
    %v1924 = vrsqrt.pop %v1923
    %v1925 = vmul.f32 %v1924, %v1923
    %v1926 = vmul.f32 %v1925, %v1924
    %v1927 = vmul.f32 0.5, %v1926
    %v1928 = vsub.f32 1.5, %v1927
    %v1929 = vmul.f32 %v1924, %v1928
    %vm1930 = vweird.f32 %v1923
    %vm1931 = vweird.f32 %v1924
    %vm1932 = vmor %vm1930, %vm1931
    %v1933 = vsel %vm1932, %v1924, %v1929
    %v1934 = vmul.f32 %v1909, %v1933
    %v1935 = vmul.f32 %v1910, %v1933
    %v1937 = vperm.slane %v1896, 0
    %v1939 = vmul.f32 %v1934, %v1937
    %v1940 = vmul.f32 %v1935, %v1937
    %v1942 = vperm.slane %v1898, 0
    %v1944 = vadd.f32 %v1939, %v1942
    %v1945 = vadd.f32 %v1940, %v1942
    %s1946 = scalar_lea.vmem %s4, 192
    %v1947 = vld [vmem:[%s1946] sm:$0xff]
    %v1948 = vld [vmem:[%s1946 + $0x8] sm:$0xff]
    %v1949 = vld [vmem:[%s1946 + $0x10] sm:$0xff]
    %v1950 = vld [vmem:[%s1946 + $0x18] sm:$0xff]
    %v1951 = vld [vmem:[%s1946 + $0x20] sm:$0xff]
    %v1952 = vld [vmem:[%s1946 + $0x28] sm:$0xff]
    %v1953 = vld [vmem:[%s1946 + $0x30] sm:$0xff]
    %v1954 = vld [vmem:[%s1946 + $0x38] sm:$0xff]
    %v1955 = vld [vmem:[%s1946 + $0x40] sm:$0xff]
    %v1956 = vld [vmem:[%s1946 + $0x48] sm:$0xff]
    %v1957 = vld [vmem:[%s1946 + $0x50] sm:$0xff]
    %v1958 = vld [vmem:[%s1946 + $0x58] sm:$0xff]
    %v1960 = vsel %vm248, %v1944, 0
    %v1963 = vsel %vm248, %v1945, 0
    %v1966 = vsel %vm248, %v1947, 0
    %v1969 = vsel %vm248, %v1948, 0
    %v1972 = vsel %vm248, %v1949, 0
    %1974 = vmatpush.xpose.msra.mxu0 0.0
    %1975 = vmatpush.xpose.msra.mxu0 0.0
    %1976 = vmatpush.xpose.msra.mxu0 0.0
    %1977 = vmatpush.xpose.msra.mxu0 0.0
    %1978 = vmatpush.xpose.msra.mxu0 0.0
    %1979 = vmatpush.xpose.msra.mxu0 0.0
    %1980 = vmatpush.xpose.msra.mxu0 0.0
    %1981 = vmatpush.xpose.msra.mxu0 0.0
    %1982 = vmatpush.xpose.msra.mxu0 0.0
    %1983 = vmatpush.xpose.msra.mxu0 0.0
    %1984 = vmatpush.xpose.msra.mxu0 0.0
    %1985 = vmatpush.xpose.msra.mxu0 0.0
    %1986 = vmatpush.xpose.msra.mxu0 0.0
    %1987 = vmatpush.xpose.msra.mxu0 %v1972
    %1988 = vmatpush.xpose.msra.mxu0 %v1969
    %1989 = vmatpush.xpose.msra.mxu0 %v1966
    %1990 = vmatmul.f32.gmra.mxu0 %v1960
    %v1991 = vpop.f32.mrf.mxu0
    %v1992 = vadd.f32 0.0, %v1991
    %1993 = vmatmul.f32.gmra.mxu0 %v1963
    %v1994 = vpop.f32.mrf.mxu0
    %v1995 = vadd.f32 0.0, %v1994
    %1996 = vdwg.mxu0
    %v1998 = vsel %vm248, %v1950, 0
    %v2001 = vsel %vm248, %v1951, 0
    %v2004 = vsel %vm248, %v1952, 0
    %2006 = vmatpush.xpose.msra.mxu0 0.0
    %2007 = vmatpush.xpose.msra.mxu0 0.0
    %2008 = vmatpush.xpose.msra.mxu0 0.0
    %2009 = vmatpush.xpose.msra.mxu0 0.0
    %2010 = vmatpush.xpose.msra.mxu0 0.0
    %2011 = vmatpush.xpose.msra.mxu0 0.0
    %2012 = vmatpush.xpose.msra.mxu0 0.0
    %2013 = vmatpush.xpose.msra.mxu0 0.0
    %2014 = vmatpush.xpose.msra.mxu0 0.0
    %2015 = vmatpush.xpose.msra.mxu0 0.0
    %2016 = vmatpush.xpose.msra.mxu0 0.0
    %2017 = vmatpush.xpose.msra.mxu0 0.0
    %2018 = vmatpush.xpose.msra.mxu0 0.0
    %2019 = vmatpush.xpose.msra.mxu0 %v2004
    %2020 = vmatpush.xpose.msra.mxu0 %v2001
    %2021 = vmatpush.xpose.msra.mxu0 %v1998
    %2022 = vmatmul.f32.gmra.mxu0 %v1960
    %v2023 = vpop.f32.mrf.mxu0
    %v2024 = vadd.f32 0.0, %v2023
    %2025 = vmatmul.f32.gmra.mxu0 %v1963
    %v2026 = vpop.f32.mrf.mxu0
    %v2027 = vadd.f32 0.0, %v2026
    %2028 = vdwg.mxu0
    %v2030 = vsel %vm248, %v1953, 0
    %v2033 = vsel %vm248, %v1954, 0
    %v2036 = vsel %vm248, %v1955, 0
    %2038 = vmatpush.xpose.msra.mxu0 0.0
    %2039 = vmatpush.xpose.msra.mxu0 0.0
    %2040 = vmatpush.xpose.msra.mxu0 0.0
    %2041 = vmatpush.xpose.msra.mxu0 0.0
    %2042 = vmatpush.xpose.msra.mxu0 0.0
    %2043 = vmatpush.xpose.msra.mxu0 0.0
    %2044 = vmatpush.xpose.msra.mxu0 0.0
    %2045 = vmatpush.xpose.msra.mxu0 0.0
    %2046 = vmatpush.xpose.msra.mxu0 0.0
    %2047 = vmatpush.xpose.msra.mxu0 0.0
    %2048 = vmatpush.xpose.msra.mxu0 0.0
    %2049 = vmatpush.xpose.msra.mxu0 0.0
    %2050 = vmatpush.xpose.msra.mxu0 0.0
    %2051 = vmatpush.xpose.msra.mxu0 %v2036
    %2052 = vmatpush.xpose.msra.mxu0 %v2033
    %2053 = vmatpush.xpose.msra.mxu0 %v2030
    %2054 = vmatmul.f32.gmra.mxu0 %v1960
    %v2055 = vpop.f32.mrf.mxu0
    %v2056 = vadd.f32 0.0, %v2055
    %2057 = vmatmul.f32.gmra.mxu0 %v1963
    %v2058 = vpop.f32.mrf.mxu0
    %v2059 = vadd.f32 0.0, %v2058
    %2060 = vdwg.mxu0
    %v2062 = vsel %vm248, %v1956, 0
    %v2065 = vsel %vm248, %v1957, 0
    %v2068 = vsel %vm248, %v1958, 0
    %2070 = vmatpush.xpose.msra.mxu0 0.0
    %2071 = vmatpush.xpose.msra.mxu0 0.0
    %2072 = vmatpush.xpose.msra.mxu0 0.0
    %2073 = vmatpush.xpose.msra.mxu0 0.0
    %2074 = vmatpush.xpose.msra.mxu0 0.0
    %2075 = vmatpush.xpose.msra.mxu0 0.0
    %2076 = vmatpush.xpose.msra.mxu0 0.0
    %2077 = vmatpush.xpose.msra.mxu0 0.0
    %2078 = vmatpush.xpose.msra.mxu0 0.0
    %2079 = vmatpush.xpose.msra.mxu0 0.0
    %2080 = vmatpush.xpose.msra.mxu0 0.0
    %2081 = vmatpush.xpose.msra.mxu0 0.0
    %2082 = vmatpush.xpose.msra.mxu0 0.0
    %2083 = vmatpush.xpose.msra.mxu0 %v2068
    %2084 = vmatpush.xpose.msra.mxu0 %v2065
    %2085 = vmatpush.xpose.msra.mxu0 %v2062
    %2086 = vmatmul.f32.gmra.mxu0 %v1960
    %v2087 = vpop.f32.mrf.mxu0
    %v2088 = vadd.f32 0.0, %v2087
    %2089 = vmatmul.f32.gmra.mxu0 %v1963
    %v2090 = vpop.f32.mrf.mxu0
    %v2091 = vadd.f32 0.0, %v2090
    %2092 = vdwg.mxu0
    %2095 = vrot.lane.b32.xlu0 %v1992, 120
    %v2096 = vpop.permute.xlu0 %2095
    %2097 = vrot.lane.b32.xlu0 %v1995, 120
    %v2098 = vpop.permute.xlu0 %2097
    %v2099 = vsel %vm389, %v1992, 0
    %v2101 = vsel %vm389, %v1995, 0
    %v2103 = vsel %vm389, %v2096, 0
    %v2105 = vsel %vm389, %v2098, 0
    %2107 = vmatpush.xpose.msra.mxu0 0.0
    %2108 = vmatpush.xpose.msra.mxu0 0.0
    %2109 = vmatpush.xpose.msra.mxu0 0.0
    %2110 = vmatpush.xpose.msra.mxu0 0.0
    %2111 = vmatpush.xpose.msra.mxu0 0.0
    %2112 = vmatpush.xpose.msra.mxu0 0.0
    %2113 = vmatpush.xpose.msra.mxu0 0.0
    %2114 = vmatpush.xpose.msra.mxu0 0.0
    %2115 = vmatpush.xpose.msra.mxu0 0.0
    %2116 = vmatpush.xpose.msra.mxu0 0.0
    %2117 = vmatpush.xpose.msra.mxu0 0.0
    %2118 = vmatpush.xpose.msra.mxu0 0.0
    %2119 = vmatpush.xpose.msra.mxu0 0.0
    %2120 = vmatpush.xpose.msra.mxu0 0.0
    %2121 = vmatpush.xpose.msra.mxu0 %v2105
    %2122 = vmatpush.xpose.msra.mxu0 %v2103
    %2123 = vmatmul.f32.gmra.mxu0 %v2099
    %v2124 = vpop.f32.mrf.mxu0
    %v2125 = vadd.f32 0.0, %v2124
    %2126 = vmatmul.f32.gmra.mxu0 %v2101
    %v2127 = vpop.f32.mrf.mxu0
    %v2128 = vadd.f32 0.0, %v2127
    %2129 = vdwg.mxu0
    %2132 = vrot.lane.b32.xlu0 %v2024, 120
    %v2133 = vpop.permute.xlu0 %2132
    %2134 = vrot.lane.b32.xlu0 %v2027, 120
    %v2135 = vpop.permute.xlu0 %2134
    %v2136 = vsel %vm389, %v2024, 0
    %v2138 = vsel %vm389, %v2027, 0
    %v2140 = vsel %vm389, %v2133, 0
    %v2142 = vsel %vm389, %v2135, 0
    %2144 = vmatpush.xpose.msra.mxu0 0.0
    %2145 = vmatpush.xpose.msra.mxu0 0.0
    %2146 = vmatpush.xpose.msra.mxu0 0.0
    %2147 = vmatpush.xpose.msra.mxu0 0.0
    %2148 = vmatpush.xpose.msra.mxu0 0.0
    %2149 = vmatpush.xpose.msra.mxu0 0.0
    %2150 = vmatpush.xpose.msra.mxu0 0.0
    %2151 = vmatpush.xpose.msra.mxu0 0.0
    %2152 = vmatpush.xpose.msra.mxu0 0.0
    %2153 = vmatpush.xpose.msra.mxu0 0.0
    %2154 = vmatpush.xpose.msra.mxu0 0.0
    %2155 = vmatpush.xpose.msra.mxu0 0.0
    %2156 = vmatpush.xpose.msra.mxu0 0.0
    %2157 = vmatpush.xpose.msra.mxu0 0.0
    %2158 = vmatpush.xpose.msra.mxu0 %v2142
    %2159 = vmatpush.xpose.msra.mxu0 %v2140
    %2160 = vmatmul.f32.gmra.mxu0 %v2136
    %v2161 = vpop.f32.mrf.mxu0
    %v2162 = vadd.f32 0.0, %v2161
    %2163 = vmatmul.f32.gmra.mxu0 %v2138
    %v2164 = vpop.f32.mrf.mxu0
    %v2165 = vadd.f32 0.0, %v2164
    %2166 = vdwg.mxu0
    %2169 = vrot.lane.b32.xlu0 %v2056, 120
    %v2170 = vpop.permute.xlu0 %2169
    %2171 = vrot.lane.b32.xlu0 %v2059, 120
    %v2172 = vpop.permute.xlu0 %2171
    %v2173 = vsel %vm389, %v2056, 0
    %v2175 = vsel %vm389, %v2059, 0
    %v2177 = vsel %vm389, %v2170, 0
    %v2179 = vsel %vm389, %v2172, 0
    %2181 = vmatpush.xpose.msra.mxu0 0.0
    %2182 = vmatpush.xpose.msra.mxu0 0.0
    %2183 = vmatpush.xpose.msra.mxu0 0.0
    %2184 = vmatpush.xpose.msra.mxu0 0.0
    %2185 = vmatpush.xpose.msra.mxu0 0.0
    %2186 = vmatpush.xpose.msra.mxu0 0.0
    %2187 = vmatpush.xpose.msra.mxu0 0.0
    %2188 = vmatpush.xpose.msra.mxu0 0.0
    %2189 = vmatpush.xpose.msra.mxu0 0.0
    %2190 = vmatpush.xpose.msra.mxu0 0.0
    %2191 = vmatpush.xpose.msra.mxu0 0.0
    %2192 = vmatpush.xpose.msra.mxu0 0.0
    %2193 = vmatpush.xpose.msra.mxu0 0.0
    %2194 = vmatpush.xpose.msra.mxu0 0.0
    %2195 = vmatpush.xpose.msra.mxu0 %v2179
    %2196 = vmatpush.xpose.msra.mxu0 %v2177
    %2197 = vmatmul.f32.gmra.mxu0 %v2173
    %v2198 = vpop.f32.mrf.mxu0
    %v2199 = vadd.f32 0.0, %v2198
    %2200 = vmatmul.f32.gmra.mxu0 %v2175
    %v2201 = vpop.f32.mrf.mxu0
    %v2202 = vadd.f32 0.0, %v2201
    %2203 = vdwg.mxu0
    %2206 = vrot.lane.b32.xlu0 %v2088, 120
    %v2207 = vpop.permute.xlu0 %2206
    %2208 = vrot.lane.b32.xlu0 %v2091, 120
    %v2209 = vpop.permute.xlu0 %2208
    %v2210 = vsel %vm389, %v2088, 0
    %v2212 = vsel %vm389, %v2091, 0
    %v2214 = vsel %vm389, %v2207, 0
    %v2216 = vsel %vm389, %v2209, 0
    %2218 = vmatpush.xpose.msra.mxu0 0.0
    %2219 = vmatpush.xpose.msra.mxu0 0.0
    %2220 = vmatpush.xpose.msra.mxu0 0.0
    %2221 = vmatpush.xpose.msra.mxu0 0.0
    %2222 = vmatpush.xpose.msra.mxu0 0.0
    %2223 = vmatpush.xpose.msra.mxu0 0.0
    %2224 = vmatpush.xpose.msra.mxu0 0.0
    %2225 = vmatpush.xpose.msra.mxu0 0.0
    %2226 = vmatpush.xpose.msra.mxu0 0.0
    %2227 = vmatpush.xpose.msra.mxu0 0.0
    %2228 = vmatpush.xpose.msra.mxu0 0.0
    %2229 = vmatpush.xpose.msra.mxu0 0.0
    %2230 = vmatpush.xpose.msra.mxu0 0.0
    %2231 = vmatpush.xpose.msra.mxu0 0.0
    %2232 = vmatpush.xpose.msra.mxu0 %v2216
    %2233 = vmatpush.xpose.msra.mxu0 %v2214
    %2234 = vmatmul.f32.gmra.mxu0 %v2210
    %v2235 = vpop.f32.mrf.mxu0
    %v2236 = vadd.f32 0.0, %v2235
    %2237 = vmatmul.f32.gmra.mxu0 %v2212
    %v2238 = vpop.f32.mrf.mxu0
    %v2239 = vadd.f32 0.0, %v2238
    %2240 = vdwg.mxu0
    %v2241 = vmax.f32 %v2125, -5.0
    %v2242 = vmax.f32 %v2128, -5.0
    %v2243 = vmax.f32 %v2162, -5.0
    %v2244 = vmax.f32 %v2165, -5.0
    %v2245 = vmax.f32 %v2199, -5.0
    %v2246 = vmax.f32 %v2202, -5.0
    %v2247 = vmax.f32 %v2236, -5.0
    %v2248 = vmax.f32 %v2239, -5.0
    %v2249 = vmin.f32 %v2241, 5.0
    %v2250 = vmin.f32 %v2242, 5.0
    %v2251 = vmin.f32 %v2243, 5.0
    %v2252 = vmin.f32 %v2244, 5.0
    %v2253 = vmin.f32 %v2245, 5.0
    %v2254 = vmin.f32 %v2246, 5.0
    %v2255 = vmin.f32 %v2247, 5.0
    %v2256 = vmin.f32 %v2248, 5.0
    %v2257 = vmul.f32 %v2249, 1.442695
    %v2258 = vpow.pop %v2257
    %v2259 = vmul.f32 %v2250, 1.442695
    %v2260 = vpow.pop %v2259
    %v2261 = vmul.f32 %v2251, 1.442695
    %v2262 = vpow.pop %v2261
    %v2263 = vmul.f32 %v2252, 1.442695
    %v2264 = vpow.pop %v2263
    %v2265 = vmul.f32 %v2253, 1.442695
    %v2266 = vpow.pop %v2265
    %v2267 = vmul.f32 %v2254, 1.442695
    %v2268 = vpow.pop %v2267
    %v2269 = vmul.f32 %v2255, 1.442695
    %v2270 = vpow.pop %v2269
    %v2271 = vmul.f32 %v2256, 1.442695
    %v2272 = vpow.pop %v2271
    %v2273 = vmul.f32 %v2258, %v234
    %v2274 = vmul.f32 %v2260, %v235
    %v2275 = vmul.f32 %v2262, %v234
    %v2276 = vmul.f32 %v2264, %v235
    %v2277 = vmul.f32 %v2266, %v234
    %v2278 = vmul.f32 %v2268, %v235
    %v2279 = vmul.f32 %v2270, %v234
    %v2280 = vmul.f32 %v2272, %v235
    %2281 = vrot.lane.b32.xlu0 %v1992, 112
    %v2282 = vpop.permute.xlu0 %2281
    %2283 = vrot.lane.b32.xlu0 %v1995, 112
    %v2284 = vpop.permute.xlu0 %2283
    %v2288 = vsel %vm578, %v2273, 0
    %v2291 = vsel %vm578, %v2274, 0
    %2293 = vmatpush.msra.mxu0 0.0
    %2294 = vmatpush.msra.mxu0 0.0
    %2295 = vmatpush.msra.mxu0 0.0
    %2296 = vmatpush.msra.mxu0 0.0
    %2297 = vmatpush.msra.mxu0 0.0
    %2298 = vmatpush.msra.mxu0 0.0
    %2299 = vmatpush.msra.mxu0 0.0
    %2300 = vmatpush.msra.mxu0 0.0
    %2301 = vmatpush.msra.mxu0 0.0
    %2302 = vmatpush.msra.mxu0 0.0
    %2303 = vmatpush.msra.mxu0 0.0
    %2304 = vmatpush.msra.mxu0 0.0
    %2305 = vmatpush.msra.mxu0 0.0
    %2306 = vmatpush.msra.mxu0 0.0
    %2307 = vmatpush.msra.mxu0 %v2284
    %2308 = vmatpush.msra.mxu0 %v2282
    %2309 = vmatmul.f32.gmra.mxu0 %v2288
    %v2310 = vpop.f32.mrf.mxu0
    %v2311 = vadd.f32 0.0, %v2310
    %2312 = vmatmul.f32.gmra.mxu0 %v2291
    %v2313 = vpop.f32.mrf.mxu0
    %v2314 = vadd.f32 0.0, %v2313
    %2315 = vdwg.mxu0
    %2316 = vrot.lane.b32.xlu0 %v2024, 112
    %v2317 = vpop.permute.xlu0 %2316
    %2318 = vrot.lane.b32.xlu0 %v2027, 112
    %v2319 = vpop.permute.xlu0 %2318
    %v2323 = vsel %vm578, %v2275, 0
    %v2326 = vsel %vm578, %v2276, 0
    %2328 = vmatpush.msra.mxu0 0.0
    %2329 = vmatpush.msra.mxu0 0.0
    %2330 = vmatpush.msra.mxu0 0.0
    %2331 = vmatpush.msra.mxu0 0.0
    %2332 = vmatpush.msra.mxu0 0.0
    %2333 = vmatpush.msra.mxu0 0.0
    %2334 = vmatpush.msra.mxu0 0.0
    %2335 = vmatpush.msra.mxu0 0.0
    %2336 = vmatpush.msra.mxu0 0.0
    %2337 = vmatpush.msra.mxu0 0.0
    %2338 = vmatpush.msra.mxu0 0.0
    %2339 = vmatpush.msra.mxu0 0.0
    %2340 = vmatpush.msra.mxu0 0.0
    %2341 = vmatpush.msra.mxu0 0.0
    %2342 = vmatpush.msra.mxu0 %v2319
    %2343 = vmatpush.msra.mxu0 %v2317
    %2344 = vmatmul.f32.gmra.mxu0 %v2323
    %v2345 = vpop.f32.mrf.mxu0
    %v2346 = vadd.f32 0.0, %v2345
    %2347 = vmatmul.f32.gmra.mxu0 %v2326
    %v2348 = vpop.f32.mrf.mxu0
    %v2349 = vadd.f32 0.0, %v2348
    %2350 = vdwg.mxu0
    %2351 = vrot.lane.b32.xlu0 %v2056, 112
    %v2352 = vpop.permute.xlu0 %2351
    %2353 = vrot.lane.b32.xlu0 %v2059, 112
    %v2354 = vpop.permute.xlu0 %2353
    %v2358 = vsel %vm578, %v2277, 0
    %v2361 = vsel %vm578, %v2278, 0
    %2363 = vmatpush.msra.mxu0 0.0
    %2364 = vmatpush.msra.mxu0 0.0
    %2365 = vmatpush.msra.mxu0 0.0
    %2366 = vmatpush.msra.mxu0 0.0
    %2367 = vmatpush.msra.mxu0 0.0
    %2368 = vmatpush.msra.mxu0 0.0
    %2369 = vmatpush.msra.mxu0 0.0
    %2370 = vmatpush.msra.mxu0 0.0
    %2371 = vmatpush.msra.mxu0 0.0
    %2372 = vmatpush.msra.mxu0 0.0
    %2373 = vmatpush.msra.mxu0 0.0
    %2374 = vmatpush.msra.mxu0 0.0
    %2375 = vmatpush.msra.mxu0 0.0
    %2376 = vmatpush.msra.mxu0 0.0
    %2377 = vmatpush.msra.mxu0 %v2354
    %2378 = vmatpush.msra.mxu0 %v2352
    %2379 = vmatmul.f32.gmra.mxu0 %v2358
    %v2380 = vpop.f32.mrf.mxu0
    %v2381 = vadd.f32 0.0, %v2380
    %2382 = vmatmul.f32.gmra.mxu0 %v2361
    %v2383 = vpop.f32.mrf.mxu0
    %v2384 = vadd.f32 0.0, %v2383
    %2385 = vdwg.mxu0
    %2386 = vrot.lane.b32.xlu0 %v2088, 112
    %v2387 = vpop.permute.xlu0 %2386
    %2388 = vrot.lane.b32.xlu0 %v2091, 112
    %v2389 = vpop.permute.xlu0 %2388
    %v2393 = vsel %vm578, %v2279, 0
    %v2396 = vsel %vm578, %v2280, 0
    %2398 = vmatpush.msra.mxu0 0.0
    %2399 = vmatpush.msra.mxu0 0.0
    %2400 = vmatpush.msra.mxu0 0.0
    %2401 = vmatpush.msra.mxu0 0.0
    %2402 = vmatpush.msra.mxu0 0.0
    %2403 = vmatpush.msra.mxu0 0.0
    %2404 = vmatpush.msra.mxu0 0.0
    %2405 = vmatpush.msra.mxu0 0.0
    %2406 = vmatpush.msra.mxu0 0.0
    %2407 = vmatpush.msra.mxu0 0.0
    %2408 = vmatpush.msra.mxu0 0.0
    %2409 = vmatpush.msra.mxu0 0.0
    %2410 = vmatpush.msra.mxu0 0.0
    %2411 = vmatpush.msra.mxu0 0.0
    %2412 = vmatpush.msra.mxu0 %v2389
    %2413 = vmatpush.msra.mxu0 %v2387
    %2414 = vmatmul.f32.gmra.mxu0 %v2393
    %v2415 = vpop.f32.mrf.mxu0
    %v2416 = vadd.f32 0.0, %v2415
    %2417 = vmatmul.f32.gmra.mxu0 %v2396
    %v2418 = vpop.f32.mrf.mxu0
    %v2419 = vadd.f32 0.0, %v2418
    %2420 = vdwg.mxu0
    %v2421 = vsel %vm578, %v2273, 0.0
    %2422 = vadd.xlane.f32.xlu0 %v2421
    %v2423 = vpop.xlane.xlu0 %2422
    %v2424 = vsel %vm578, %v2274, 0.0
    %2425 = vadd.xlane.f32.xlu0 %v2424
    %v2426 = vpop.xlane.xlu0 %2425
    %v2427 = vsel %vm578, %v2275, 0.0
    %2428 = vadd.xlane.f32.xlu0 %v2427
    %v2429 = vpop.xlane.xlu0 %2428
    %v2430 = vsel %vm578, %v2276, 0.0
    %2431 = vadd.xlane.f32.xlu0 %v2430
    %v2432 = vpop.xlane.xlu0 %2431
    %v2433 = vsel %vm578, %v2277, 0.0
    %2434 = vadd.xlane.f32.xlu0 %v2433
    %v2435 = vpop.xlane.xlu0 %2434
    %v2436 = vsel %vm578, %v2278, 0.0
    %2437 = vadd.xlane.f32.xlu0 %v2436
    %v2438 = vpop.xlane.xlu0 %2437
    %v2439 = vsel %vm578, %v2279, 0.0
    %2440 = vadd.xlane.f32.xlu0 %v2439
    %v2441 = vpop.xlane.xlu0 %2440
    %v2442 = vsel %vm578, %v2280, 0.0
    %2443 = vadd.xlane.f32.xlu0 %v2442
    %v2444 = vpop.xlane.xlu0 %2443
    %v2445 = vadd.f32 %v2423, 1e-06
    %v2446 = vadd.f32 %v2426, 1e-06
    %v2447 = vadd.f32 %v2429, 1e-06
    %v2448 = vadd.f32 %v2432, 1e-06
    %v2449 = vadd.f32 %v2435, 1e-06
    %v2450 = vadd.f32 %v2438, 1e-06
    %v2451 = vadd.f32 %v2441, 1e-06
    %v2452 = vadd.f32 %v2444, 1e-06
    %v2453 = vrcp.pop %v2445
    %v2454 = vrcp.pop %v2446
    %v2455 = vrcp.pop %v2447
    %v2456 = vrcp.pop %v2448
    %v2457 = vrcp.pop %v2449
    %v2458 = vrcp.pop %v2450
    %v2459 = vrcp.pop %v2451
    %v2460 = vrcp.pop %v2452
    %v2461 = vmul.f32 %v2311, %v2453
    %v2462 = vmul.f32 %v2314, %v2454
    %v2463 = vmul.f32 %v2346, %v2455
    %v2464 = vmul.f32 %v2349, %v2456
    %v2465 = vmul.f32 %v2381, %v2457
    %v2466 = vmul.f32 %v2384, %v2458
    %v2467 = vmul.f32 %v2416, %v2459
    %v2468 = vmul.f32 %v2419, %v2460
    %s2469 = scalar_lea.vmem [#allocation4], 64
    %v2470 = vld [vmem:[%s2469] sm:$0xff]
    %v2471 = vld [vmem:[%s2469 + $0x8] sm:$0xff]
    %v2472 = vld [vmem:[%s2469 + $0x10] sm:$0xff]
    %v2473 = vld [vmem:[%s2469 + $0x18] sm:$0xff]
    %v2475 = vsel %vm389, %v2461, 0
    %v2478 = vsel %vm389, %v2462, 0
    %2480 = vmatpush.msra.mxu0 0.0
    %2481 = vmatpush.msra.mxu0 0.0
    %2482 = vmatpush.msra.mxu0 0.0
    %2483 = vmatpush.msra.mxu0 0.0
    %2484 = vmatpush.msra.mxu0 0.0
    %2485 = vmatpush.msra.mxu0 0.0
    %2486 = vmatpush.msra.mxu0 0.0
    %2487 = vmatpush.msra.mxu0 0.0
    %2488 = vmatpush.msra.mxu0 0.0
    %2489 = vmatpush.msra.mxu0 0.0
    %2490 = vmatpush.msra.mxu0 0.0
    %2491 = vmatpush.msra.mxu0 0.0
    %2492 = vmatpush.msra.mxu0 0.0
    %2493 = vmatpush.msra.mxu0 0.0
    %2494 = vmatpush.msra.mxu0 0.0
    %2495 = vmatpush.msra.mxu0 %v2470
    %2496 = vmatmul.f32.gmra.mxu0 %v2475
    %v2497 = vpop.f32.mrf.mxu0
    %v2498 = vadd.f32 0.0, %v2497
    %2499 = vmatmul.f32.gmra.mxu0 %v2478
    %v2500 = vpop.f32.mrf.mxu0
    %v2501 = vadd.f32 0.0, %v2500
    %2502 = vdwg.mxu0
    %v2504 = vsel %vm389, %v2463, 0
    %v2507 = vsel %vm389, %v2464, 0
    %2509 = vmatpush.msra.mxu0 0.0
    %2510 = vmatpush.msra.mxu0 0.0
    %2511 = vmatpush.msra.mxu0 0.0
    %2512 = vmatpush.msra.mxu0 0.0
    %2513 = vmatpush.msra.mxu0 0.0
    %2514 = vmatpush.msra.mxu0 0.0
    %2515 = vmatpush.msra.mxu0 0.0
    %2516 = vmatpush.msra.mxu0 0.0
    %2517 = vmatpush.msra.mxu0 0.0
    %2518 = vmatpush.msra.mxu0 0.0
    %2519 = vmatpush.msra.mxu0 0.0
    %2520 = vmatpush.msra.mxu0 0.0
    %2521 = vmatpush.msra.mxu0 0.0
    %2522 = vmatpush.msra.mxu0 0.0
    %2523 = vmatpush.msra.mxu0 0.0
    %2524 = vmatpush.msra.mxu0 %v2471
    %2525 = vmatmul.f32.gmra.mxu0 %v2504
    %v2526 = vpop.f32.mrf.mxu0
    %v2527 = vadd.f32 0.0, %v2526
    %2528 = vmatmul.f32.gmra.mxu0 %v2507
    %v2529 = vpop.f32.mrf.mxu0
    %v2530 = vadd.f32 0.0, %v2529
    %2531 = vdwg.mxu0
    %v2533 = vsel %vm389, %v2465, 0
    %v2536 = vsel %vm389, %v2466, 0
    %2538 = vmatpush.msra.mxu0 0.0
    %2539 = vmatpush.msra.mxu0 0.0
    %2540 = vmatpush.msra.mxu0 0.0
    %2541 = vmatpush.msra.mxu0 0.0
    %2542 = vmatpush.msra.mxu0 0.0
    %2543 = vmatpush.msra.mxu0 0.0
    %2544 = vmatpush.msra.mxu0 0.0
    %2545 = vmatpush.msra.mxu0 0.0
    %2546 = vmatpush.msra.mxu0 0.0
    %2547 = vmatpush.msra.mxu0 0.0
    %2548 = vmatpush.msra.mxu0 0.0
    %2549 = vmatpush.msra.mxu0 0.0
    %2550 = vmatpush.msra.mxu0 0.0
    %2551 = vmatpush.msra.mxu0 0.0
    %2552 = vmatpush.msra.mxu0 0.0
    %2553 = vmatpush.msra.mxu0 %v2472
    %2554 = vmatmul.f32.gmra.mxu0 %v2533
    %v2555 = vpop.f32.mrf.mxu0
    %v2556 = vadd.f32 0.0, %v2555
    %2557 = vmatmul.f32.gmra.mxu0 %v2536
    %v2558 = vpop.f32.mrf.mxu0
    %v2559 = vadd.f32 0.0, %v2558
    %2560 = vdwg.mxu0
    %v2562 = vsel %vm389, %v2467, 0
    %v2565 = vsel %vm389, %v2468, 0
    %2567 = vmatpush.msra.mxu0 0.0
    %2568 = vmatpush.msra.mxu0 0.0
    %2569 = vmatpush.msra.mxu0 0.0
    %2570 = vmatpush.msra.mxu0 0.0
    %2571 = vmatpush.msra.mxu0 0.0
    %2572 = vmatpush.msra.mxu0 0.0
    %2573 = vmatpush.msra.mxu0 0.0
    %2574 = vmatpush.msra.mxu0 0.0
    %2575 = vmatpush.msra.mxu0 0.0
    %2576 = vmatpush.msra.mxu0 0.0
    %2577 = vmatpush.msra.mxu0 0.0
    %2578 = vmatpush.msra.mxu0 0.0
    %2579 = vmatpush.msra.mxu0 0.0
    %2580 = vmatpush.msra.mxu0 0.0
    %2581 = vmatpush.msra.mxu0 0.0
    %2582 = vmatpush.msra.mxu0 %v2473
    %2583 = vmatmul.f32.gmra.mxu0 %v2562
    %v2584 = vpop.f32.mrf.mxu0
    %v2585 = vadd.f32 0.0, %v2584
    %2586 = vmatmul.f32.gmra.mxu0 %v2565
    %v2587 = vpop.f32.mrf.mxu0
    %v2588 = vadd.f32 0.0, %v2587
    %2589 = vdwg.mxu0
    %v2590 = vsel %vm248, %v2498, 0.0
    %v2591 = vsel %vm248, %v2527, 0.0
    %v2592 = vadd.f32 %v2590, %v2591
    %v2593 = vsel %vm248, %v2556, 0.0
    %v2594 = vadd.f32 %v2592, %v2593
    %v2595 = vsel %vm248, %v2585, 0.0
    %v2596 = vadd.f32 %v2594, %v2595
    %v2597 = vsel %vm248, %v2501, 0.0
    %v2598 = vsel %vm248, %v2530, 0.0
    %v2599 = vadd.f32 %v2597, %v2598
    %v2600 = vsel %vm248, %v2559, 0.0
    %v2601 = vadd.f32 %v2599, %v2600
    %v2602 = vsel %vm248, %v2588, 0.0
    %v2603 = vadd.f32 %v2601, %v2602
    %v2604 = vadd.f32 %v1944, %v2596
    %v2605 = vadd.f32 %v1945, %v2603
    %s2606 = scalar_lea.vmem %s6, 2
    %v2607 = vld [vmem:[%s2606] sm:$0x1]
    %v2609 = vperm.slane %v2607, 0
    %v2611 = vadd.f32 %v2604, %v2609
    %v2612 = vadd.f32 %v2605, %v2609
    %s2613 = scalar_lea.vmem [#allocation6], 2
    %v2614 = vld [vmem:[%s2613] sm:$0x1]
    %s2615 = scalar_lea.vmem [#allocation7], 2
    %v2616 = vld [vmem:[%s2615] sm:$0x1]
    %v2617 = vsel %vm248, %v2611, 0.0
    %v2618 = vsel %vm248, %v2612, 0.0
    %v2619 = vadd.f32 %v2617, %v2618
    %v2620 = vrot.slane %v2619, 4
    %v2621 = vadd.f32 %v2619, %v2620
    %v2622 = vrot.slane %v2621, 2
    %v2623 = vadd.f32 %v2621, %v2622
    %v2624 = vrot.slane %v2623, 1
    %v2625 = vadd.f32 %v2623, %v2624
    %v2626 = vmul.f32 %v2625, %v920
    %v2627 = vsub.f32 %v2611, %v2626
    %v2628 = vsub.f32 %v2612, %v2626
    %v2629 = vmul.f32 %v2627, %v2627
    %v2630 = vmul.f32 %v2628, %v2628
    %v2631 = vsel %vm248, %v2629, 0.0
    %v2632 = vsel %vm248, %v2630, 0.0
    %v2633 = vadd.f32 %v2631, %v2632
    %v2634 = vrot.slane %v2633, 4
    %v2635 = vadd.f32 %v2633, %v2634
    %v2636 = vrot.slane %v2635, 2
    %v2637 = vadd.f32 %v2635, %v2636
    %v2638 = vrot.slane %v2637, 1
    %v2639 = vadd.f32 %v2637, %v2638
    %v2640 = vmul.f32 %v2639, %v920
    %v2641 = vadd.f32 %v2640, 1e-05
    %v2642 = vrsqrt.pop %v2641
    %v2643 = vmul.f32 %v2642, %v2641
    %v2644 = vmul.f32 %v2643, %v2642
    %v2645 = vmul.f32 0.5, %v2644
    %v2646 = vsub.f32 1.5, %v2645
    %v2647 = vmul.f32 %v2642, %v2646
    %vm2648 = vweird.f32 %v2641
    %vm2649 = vweird.f32 %v2642
    %vm2650 = vmor %vm2648, %vm2649
    %v2651 = vsel %vm2650, %v2642, %v2647
    %v2652 = vmul.f32 %v2627, %v2651
    %v2653 = vmul.f32 %v2628, %v2651
    %v2655 = vperm.slane %v2614, 0
    %v2657 = vmul.f32 %v2652, %v2655
    %v2658 = vmul.f32 %v2653, %v2655
    %v2660 = vperm.slane %v2616, 0
    %v2662 = vadd.f32 %v2657, %v2660
    %v2663 = vadd.f32 %v2658, %v2660
    %s2664 = scalar_lea.vmem [#allocation9], 64
    %v2665 = vld [vmem:[%s2664] sm:$0xff]
    %v2666 = vld [vmem:[%s2664 + $0x8] sm:$0xff]
    %v2667 = vld [vmem:[%s2664 + $0x10] sm:$0xff]
    %v2668 = vld [vmem:[%s2664 + $0x18] sm:$0xff]
    %s2669 = scalar_lea.vmem %s10, 2
    %v2670 = vld [vmem:[%s2669] sm:$0x1]
    %v2672 = vperm.slane %v2670, 0
    %v2675 = vsel %vm248, %v2662, 0
    %v2678 = vsel %vm248, %v2663, 0
    %2680 = vmatpush.msra.mxu0 0.0
    %2681 = vmatpush.msra.mxu0 0.0
    %2682 = vmatpush.msra.mxu0 0.0
    %2683 = vmatpush.msra.mxu0 0.0
    %2684 = vmatpush.msra.mxu0 0.0
    %2685 = vmatpush.msra.mxu0 0.0
    %2686 = vmatpush.msra.mxu0 0.0
    %2687 = vmatpush.msra.mxu0 0.0
    %2688 = vmatpush.msra.mxu0 0.0
    %2689 = vmatpush.msra.mxu0 0.0
    %2690 = vmatpush.msra.mxu0 0.0
    %2691 = vmatpush.msra.mxu0 0.0
    %2692 = vmatpush.msra.mxu0 %v2668
    %2693 = vmatpush.msra.mxu0 %v2667
    %2694 = vmatpush.msra.mxu0 %v2666
    %2695 = vmatpush.msra.mxu0 %v2665
    %2696 = vmatmul.f32.gmra.mxu0 %v2675
    %v2697 = vpop.f32.mrf.mxu0
    %v2698 = vadd.f32 %v2672, %v2697
    %2699 = vmatmul.f32.gmra.mxu0 %v2678
    %v2700 = vpop.f32.mrf.mxu0
    %v2701 = vadd.f32 %v2672, %v2700
    %2702 = vdwg.mxu0
    %v2703 = vmax.f32 %v2698, 0.0
    %v2704 = vmax.f32 %v2701, 0.0
    %s2705 = scalar_lea.vmem %s11, 128
    %v2706 = vld [vmem:[%s2705] sm:$0xff]
    %v2707 = vld [vmem:[%s2705 + $0x8] sm:$0xff]
    %v2708 = vld [vmem:[%s2705 + $0x10] sm:$0xff]
    %v2709 = vld [vmem:[%s2705 + $0x18] sm:$0xff]
    %v2710 = vld [vmem:[%s2705 + $0x20] sm:$0xff]
    %v2711 = vld [vmem:[%s2705 + $0x28] sm:$0xff]
    %v2712 = vld [vmem:[%s2705 + $0x30] sm:$0xff]
    %v2713 = vld [vmem:[%s2705 + $0x38] sm:$0xff]
    %s2714 = scalar_lea.vmem [#allocation10], 2
    %v2715 = vld [vmem:[%s2714] sm:$0x1]
    %v2717 = vperm.slane %v2715, 0
    %v2720 = vsel %vm1010, %v2703, 0
    %v2723 = vsel %vm1010, %v2704, 0
    %2725 = vmatpush.msra.mxu0 0.0
    %2726 = vmatpush.msra.mxu0 0.0
    %2727 = vmatpush.msra.mxu0 0.0
    %2728 = vmatpush.msra.mxu0 0.0
    %2729 = vmatpush.msra.mxu0 0.0
    %2730 = vmatpush.msra.mxu0 0.0
    %2731 = vmatpush.msra.mxu0 0.0
    %2732 = vmatpush.msra.mxu0 0.0
    %2733 = vmatpush.msra.mxu0 %v2713
    %2734 = vmatpush.msra.mxu0 %v2712
    %2735 = vmatpush.msra.mxu0 %v2711
    %2736 = vmatpush.msra.mxu0 %v2710
    %2737 = vmatpush.msra.mxu0 %v2709
    %2738 = vmatpush.msra.mxu0 %v2708
    %2739 = vmatpush.msra.mxu0 %v2707
    %2740 = vmatpush.msra.mxu0 %v2706
    %2741 = vmatmul.f32.gmra.mxu0 %v2720
    %v2742 = vpop.f32.mrf.mxu0
    %v2743 = vadd.f32 %v2717, %v2742
    %2744 = vmatmul.f32.gmra.mxu0 %v2723
    %v2745 = vpop.f32.mrf.mxu0
    %v2746 = vadd.f32 %v2717, %v2745
    %2747 = vdwg.mxu0
    %v2748 = vadd.f32 %v2662, %v2743
    %v2749 = vadd.f32 %v2663, %v2746
    %s2750 = scalar_lea.vmem [#allocation12], 2
    %v2751 = vld [vmem:[%s2750] sm:$0x1]
    %s2752 = scalar_lea.vmem [#allocation13], 2
    %v2753 = vld [vmem:[%s2752] sm:$0x1]
    %v2754 = vsel %vm248, %v2748, 0.0
    %v2755 = vsel %vm248, %v2749, 0.0
    %v2756 = vadd.f32 %v2754, %v2755
    %v2757 = vrot.slane %v2756, 4
    %v2758 = vadd.f32 %v2756, %v2757
    %v2759 = vrot.slane %v2758, 2
    %v2760 = vadd.f32 %v2758, %v2759
    %v2761 = vrot.slane %v2760, 1
    %v2762 = vadd.f32 %v2760, %v2761
    %v2763 = vmul.f32 %v2762, %v920
    %v2764 = vsub.f32 %v2748, %v2763
    %v2765 = vsub.f32 %v2749, %v2763
    %v2766 = vmul.f32 %v2764, %v2764
    %v2767 = vmul.f32 %v2765, %v2765
    %v2768 = vsel %vm248, %v2766, 0.0
    %v2769 = vsel %vm248, %v2767, 0.0
    %v2770 = vadd.f32 %v2768, %v2769
    %v2771 = vrot.slane %v2770, 4
    %v2772 = vadd.f32 %v2770, %v2771
    %v2773 = vrot.slane %v2772, 2
    %v2774 = vadd.f32 %v2772, %v2773
    %v2775 = vrot.slane %v2774, 1
    %v2776 = vadd.f32 %v2774, %v2775
    %v2777 = vmul.f32 %v2776, %v920
    %v2778 = vadd.f32 %v2777, 1e-05
    %v2779 = vrsqrt.pop %v2778
    %v2780 = vmul.f32 %v2779, %v2778
    %v2781 = vmul.f32 %v2780, %v2779
    %v2782 = vmul.f32 0.5, %v2781
    %v2783 = vsub.f32 1.5, %v2782
    %v2784 = vmul.f32 %v2779, %v2783
    %vm2785 = vweird.f32 %v2778
    %vm2786 = vweird.f32 %v2779
    %vm2787 = vmor %vm2785, %vm2786
    %v2788 = vsel %vm2787, %v2779, %v2784
    %v2789 = vmul.f32 %v2764, %v2788
    %v2790 = vmul.f32 %v2765, %v2788
    %v2792 = vperm.slane %v2751, 0
    %v2794 = vmul.f32 %v2789, %v2792
    %v2795 = vmul.f32 %v2790, %v2792
    %v2797 = vperm.slane %v2753, 0
    %v2799 = vadd.f32 %v2794, %v2797
    %v2800 = vadd.f32 %v2795, %v2797
    %s2801 = scalar_lea.vmem %s4, 288
    %v2802 = vld [vmem:[%s2801] sm:$0xff]
    %v2803 = vld [vmem:[%s2801 + $0x8] sm:$0xff]
    %v2804 = vld [vmem:[%s2801 + $0x10] sm:$0xff]
    %v2805 = vld [vmem:[%s2801 + $0x18] sm:$0xff]
    %v2806 = vld [vmem:[%s2801 + $0x20] sm:$0xff]
    %v2807 = vld [vmem:[%s2801 + $0x28] sm:$0xff]
    %v2808 = vld [vmem:[%s2801 + $0x30] sm:$0xff]
    %v2809 = vld [vmem:[%s2801 + $0x38] sm:$0xff]
    %v2810 = vld [vmem:[%s2801 + $0x40] sm:$0xff]
    %v2811 = vld [vmem:[%s2801 + $0x48] sm:$0xff]
    %v2812 = vld [vmem:[%s2801 + $0x50] sm:$0xff]
    %v2813 = vld [vmem:[%s2801 + $0x58] sm:$0xff]
    %v2815 = vsel %vm248, %v2799, 0
    %v2818 = vsel %vm248, %v2800, 0
    %v2821 = vsel %vm248, %v2802, 0
    %v2824 = vsel %vm248, %v2803, 0
    %v2827 = vsel %vm248, %v2804, 0
    %2829 = vmatpush.xpose.msra.mxu0 0.0
    %2830 = vmatpush.xpose.msra.mxu0 0.0
    %2831 = vmatpush.xpose.msra.mxu0 0.0
    %2832 = vmatpush.xpose.msra.mxu0 0.0
    %2833 = vmatpush.xpose.msra.mxu0 0.0
    %2834 = vmatpush.xpose.msra.mxu0 0.0
    %2835 = vmatpush.xpose.msra.mxu0 0.0
    %2836 = vmatpush.xpose.msra.mxu0 0.0
    %2837 = vmatpush.xpose.msra.mxu0 0.0
    %2838 = vmatpush.xpose.msra.mxu0 0.0
    %2839 = vmatpush.xpose.msra.mxu0 0.0
    %2840 = vmatpush.xpose.msra.mxu0 0.0
    %2841 = vmatpush.xpose.msra.mxu0 0.0
    %2842 = vmatpush.xpose.msra.mxu0 %v2827
    %2843 = vmatpush.xpose.msra.mxu0 %v2824
    %2844 = vmatpush.xpose.msra.mxu0 %v2821
    %2845 = vmatmul.f32.gmra.mxu0 %v2815
    %v2846 = vpop.f32.mrf.mxu0
    %v2847 = vadd.f32 0.0, %v2846
    %2848 = vmatmul.f32.gmra.mxu0 %v2818
    %v2849 = vpop.f32.mrf.mxu0
    %v2850 = vadd.f32 0.0, %v2849
    %2851 = vdwg.mxu0
    %v2853 = vsel %vm248, %v2805, 0
    %v2856 = vsel %vm248, %v2806, 0
    %v2859 = vsel %vm248, %v2807, 0
    %2861 = vmatpush.xpose.msra.mxu0 0.0
    %2862 = vmatpush.xpose.msra.mxu0 0.0
    %2863 = vmatpush.xpose.msra.mxu0 0.0
    %2864 = vmatpush.xpose.msra.mxu0 0.0
    %2865 = vmatpush.xpose.msra.mxu0 0.0
    %2866 = vmatpush.xpose.msra.mxu0 0.0
    %2867 = vmatpush.xpose.msra.mxu0 0.0
    %2868 = vmatpush.xpose.msra.mxu0 0.0
    %2869 = vmatpush.xpose.msra.mxu0 0.0
    %2870 = vmatpush.xpose.msra.mxu0 0.0
    %2871 = vmatpush.xpose.msra.mxu0 0.0
    %2872 = vmatpush.xpose.msra.mxu0 0.0
    %2873 = vmatpush.xpose.msra.mxu0 0.0
    %2874 = vmatpush.xpose.msra.mxu0 %v2859
    %2875 = vmatpush.xpose.msra.mxu0 %v2856
    %2876 = vmatpush.xpose.msra.mxu0 %v2853
    %2877 = vmatmul.f32.gmra.mxu0 %v2815
    %v2878 = vpop.f32.mrf.mxu0
    %v2879 = vadd.f32 0.0, %v2878
    %2880 = vmatmul.f32.gmra.mxu0 %v2818
    %v2881 = vpop.f32.mrf.mxu0
    %v2882 = vadd.f32 0.0, %v2881
    %2883 = vdwg.mxu0
    %v2885 = vsel %vm248, %v2808, 0
    %v2888 = vsel %vm248, %v2809, 0
    %v2891 = vsel %vm248, %v2810, 0
    %2893 = vmatpush.xpose.msra.mxu0 0.0
    %2894 = vmatpush.xpose.msra.mxu0 0.0
    %2895 = vmatpush.xpose.msra.mxu0 0.0
    %2896 = vmatpush.xpose.msra.mxu0 0.0
    %2897 = vmatpush.xpose.msra.mxu0 0.0
    %2898 = vmatpush.xpose.msra.mxu0 0.0
    %2899 = vmatpush.xpose.msra.mxu0 0.0
    %2900 = vmatpush.xpose.msra.mxu0 0.0
    %2901 = vmatpush.xpose.msra.mxu0 0.0
    %2902 = vmatpush.xpose.msra.mxu0 0.0
    %2903 = vmatpush.xpose.msra.mxu0 0.0
    %2904 = vmatpush.xpose.msra.mxu0 0.0
    %2905 = vmatpush.xpose.msra.mxu0 0.0
    %2906 = vmatpush.xpose.msra.mxu0 %v2891
    %2907 = vmatpush.xpose.msra.mxu0 %v2888
    %2908 = vmatpush.xpose.msra.mxu0 %v2885
    %2909 = vmatmul.f32.gmra.mxu0 %v2815
    %v2910 = vpop.f32.mrf.mxu0
    %v2911 = vadd.f32 0.0, %v2910
    %2912 = vmatmul.f32.gmra.mxu0 %v2818
    %v2913 = vpop.f32.mrf.mxu0
    %v2914 = vadd.f32 0.0, %v2913
    %2915 = vdwg.mxu0
    %v2917 = vsel %vm248, %v2811, 0
    %v2920 = vsel %vm248, %v2812, 0
    %v2923 = vsel %vm248, %v2813, 0
    %2925 = vmatpush.xpose.msra.mxu0 0.0
    %2926 = vmatpush.xpose.msra.mxu0 0.0
    %2927 = vmatpush.xpose.msra.mxu0 0.0
    %2928 = vmatpush.xpose.msra.mxu0 0.0
    %2929 = vmatpush.xpose.msra.mxu0 0.0
    %2930 = vmatpush.xpose.msra.mxu0 0.0
    %2931 = vmatpush.xpose.msra.mxu0 0.0
    %2932 = vmatpush.xpose.msra.mxu0 0.0
    %2933 = vmatpush.xpose.msra.mxu0 0.0
    %2934 = vmatpush.xpose.msra.mxu0 0.0
    %2935 = vmatpush.xpose.msra.mxu0 0.0
    %2936 = vmatpush.xpose.msra.mxu0 0.0
    %2937 = vmatpush.xpose.msra.mxu0 0.0
    %2938 = vmatpush.xpose.msra.mxu0 %v2923
    %2939 = vmatpush.xpose.msra.mxu0 %v2920
    %2940 = vmatpush.xpose.msra.mxu0 %v2917
    %2941 = vmatmul.f32.gmra.mxu0 %v2815
    %v2942 = vpop.f32.mrf.mxu0
    %v2943 = vadd.f32 0.0, %v2942
    %2944 = vmatmul.f32.gmra.mxu0 %v2818
    %v2945 = vpop.f32.mrf.mxu0
    %v2946 = vadd.f32 0.0, %v2945
    %2947 = vdwg.mxu0
    %2950 = vrot.lane.b32.xlu0 %v2847, 120
    %v2951 = vpop.permute.xlu0 %2950
    %2952 = vrot.lane.b32.xlu0 %v2850, 120
    %v2953 = vpop.permute.xlu0 %2952
    %v2954 = vsel %vm389, %v2847, 0
    %v2956 = vsel %vm389, %v2850, 0
    %v2958 = vsel %vm389, %v2951, 0
    %v2960 = vsel %vm389, %v2953, 0
    %2962 = vmatpush.xpose.msra.mxu0 0.0
    %2963 = vmatpush.xpose.msra.mxu0 0.0
    %2964 = vmatpush.xpose.msra.mxu0 0.0
    %2965 = vmatpush.xpose.msra.mxu0 0.0
    %2966 = vmatpush.xpose.msra.mxu0 0.0
    %2967 = vmatpush.xpose.msra.mxu0 0.0
    %2968 = vmatpush.xpose.msra.mxu0 0.0
    %2969 = vmatpush.xpose.msra.mxu0 0.0
    %2970 = vmatpush.xpose.msra.mxu0 0.0
    %2971 = vmatpush.xpose.msra.mxu0 0.0
    %2972 = vmatpush.xpose.msra.mxu0 0.0
    %2973 = vmatpush.xpose.msra.mxu0 0.0
    %2974 = vmatpush.xpose.msra.mxu0 0.0
    %2975 = vmatpush.xpose.msra.mxu0 0.0
    %2976 = vmatpush.xpose.msra.mxu0 %v2960
    %2977 = vmatpush.xpose.msra.mxu0 %v2958
    %2978 = vmatmul.f32.gmra.mxu0 %v2954
    %v2979 = vpop.f32.mrf.mxu0
    %v2980 = vadd.f32 0.0, %v2979
    %2981 = vmatmul.f32.gmra.mxu0 %v2956
    %v2982 = vpop.f32.mrf.mxu0
    %v2983 = vadd.f32 0.0, %v2982
    %2984 = vdwg.mxu0
    %2987 = vrot.lane.b32.xlu0 %v2879, 120
    %v2988 = vpop.permute.xlu0 %2987
    %2989 = vrot.lane.b32.xlu0 %v2882, 120
    %v2990 = vpop.permute.xlu0 %2989
    %v2991 = vsel %vm389, %v2879, 0
    %v2993 = vsel %vm389, %v2882, 0
    %v2995 = vsel %vm389, %v2988, 0
    %v2997 = vsel %vm389, %v2990, 0
    %2999 = vmatpush.xpose.msra.mxu0 0.0
    %3000 = vmatpush.xpose.msra.mxu0 0.0
    %3001 = vmatpush.xpose.msra.mxu0 0.0
    %3002 = vmatpush.xpose.msra.mxu0 0.0
    %3003 = vmatpush.xpose.msra.mxu0 0.0
    %3004 = vmatpush.xpose.msra.mxu0 0.0
    %3005 = vmatpush.xpose.msra.mxu0 0.0
    %3006 = vmatpush.xpose.msra.mxu0 0.0
    %3007 = vmatpush.xpose.msra.mxu0 0.0
    %3008 = vmatpush.xpose.msra.mxu0 0.0
    %3009 = vmatpush.xpose.msra.mxu0 0.0
    %3010 = vmatpush.xpose.msra.mxu0 0.0
    %3011 = vmatpush.xpose.msra.mxu0 0.0
    %3012 = vmatpush.xpose.msra.mxu0 0.0
    %3013 = vmatpush.xpose.msra.mxu0 %v2997
    %3014 = vmatpush.xpose.msra.mxu0 %v2995
    %3015 = vmatmul.f32.gmra.mxu0 %v2991
    %v3016 = vpop.f32.mrf.mxu0
    %v3017 = vadd.f32 0.0, %v3016
    %3018 = vmatmul.f32.gmra.mxu0 %v2993
    %v3019 = vpop.f32.mrf.mxu0
    %v3020 = vadd.f32 0.0, %v3019
    %3021 = vdwg.mxu0
    %3024 = vrot.lane.b32.xlu0 %v2911, 120
    %v3025 = vpop.permute.xlu0 %3024
    %3026 = vrot.lane.b32.xlu0 %v2914, 120
    %v3027 = vpop.permute.xlu0 %3026
    %v3028 = vsel %vm389, %v2911, 0
    %v3030 = vsel %vm389, %v2914, 0
    %v3032 = vsel %vm389, %v3025, 0
    %v3034 = vsel %vm389, %v3027, 0
    %3036 = vmatpush.xpose.msra.mxu0 0.0
    %3037 = vmatpush.xpose.msra.mxu0 0.0
    %3038 = vmatpush.xpose.msra.mxu0 0.0
    %3039 = vmatpush.xpose.msra.mxu0 0.0
    %3040 = vmatpush.xpose.msra.mxu0 0.0
    %3041 = vmatpush.xpose.msra.mxu0 0.0
    %3042 = vmatpush.xpose.msra.mxu0 0.0
    %3043 = vmatpush.xpose.msra.mxu0 0.0
    %3044 = vmatpush.xpose.msra.mxu0 0.0
    %3045 = vmatpush.xpose.msra.mxu0 0.0
    %3046 = vmatpush.xpose.msra.mxu0 0.0
    %3047 = vmatpush.xpose.msra.mxu0 0.0
    %3048 = vmatpush.xpose.msra.mxu0 0.0
    %3049 = vmatpush.xpose.msra.mxu0 0.0
    %3050 = vmatpush.xpose.msra.mxu0 %v3034
    %3051 = vmatpush.xpose.msra.mxu0 %v3032
    %3052 = vmatmul.f32.gmra.mxu0 %v3028
    %v3053 = vpop.f32.mrf.mxu0
    %v3054 = vadd.f32 0.0, %v3053
    %3055 = vmatmul.f32.gmra.mxu0 %v3030
    %v3056 = vpop.f32.mrf.mxu0
    %v3057 = vadd.f32 0.0, %v3056
    %3058 = vdwg.mxu0
    %3061 = vrot.lane.b32.xlu0 %v2943, 120
    %v3062 = vpop.permute.xlu0 %3061
    %3063 = vrot.lane.b32.xlu0 %v2946, 120
    %v3064 = vpop.permute.xlu0 %3063
    %v3065 = vsel %vm389, %v2943, 0
    %v3067 = vsel %vm389, %v2946, 0
    %v3069 = vsel %vm389, %v3062, 0
    %v3071 = vsel %vm389, %v3064, 0
    %3073 = vmatpush.xpose.msra.mxu0 0.0
    %3074 = vmatpush.xpose.msra.mxu0 0.0
    %3075 = vmatpush.xpose.msra.mxu0 0.0
    %3076 = vmatpush.xpose.msra.mxu0 0.0
    %3077 = vmatpush.xpose.msra.mxu0 0.0
    %3078 = vmatpush.xpose.msra.mxu0 0.0
    %3079 = vmatpush.xpose.msra.mxu0 0.0
    %3080 = vmatpush.xpose.msra.mxu0 0.0
    %3081 = vmatpush.xpose.msra.mxu0 0.0
    %3082 = vmatpush.xpose.msra.mxu0 0.0
    %3083 = vmatpush.xpose.msra.mxu0 0.0
    %3084 = vmatpush.xpose.msra.mxu0 0.0
    %3085 = vmatpush.xpose.msra.mxu0 0.0
    %3086 = vmatpush.xpose.msra.mxu0 0.0
    %3087 = vmatpush.xpose.msra.mxu0 %v3071
    %3088 = vmatpush.xpose.msra.mxu0 %v3069
    %3089 = vmatmul.f32.gmra.mxu0 %v3065
    %v3090 = vpop.f32.mrf.mxu0
    %v3091 = vadd.f32 0.0, %v3090
    %3092 = vmatmul.f32.gmra.mxu0 %v3067
    %v3093 = vpop.f32.mrf.mxu0
    %v3094 = vadd.f32 0.0, %v3093
    %3095 = vdwg.mxu0
    %v3096 = vmax.f32 %v2980, -5.0
    %v3097 = vmax.f32 %v2983, -5.0
    %v3098 = vmax.f32 %v3017, -5.0
    %v3099 = vmax.f32 %v3020, -5.0
    %v3100 = vmax.f32 %v3054, -5.0
    %v3101 = vmax.f32 %v3057, -5.0
    %v3102 = vmax.f32 %v3091, -5.0
    %v3103 = vmax.f32 %v3094, -5.0
    %v3104 = vmin.f32 %v3096, 5.0
    %v3105 = vmin.f32 %v3097, 5.0
    %v3106 = vmin.f32 %v3098, 5.0
    %v3107 = vmin.f32 %v3099, 5.0
    %v3108 = vmin.f32 %v3100, 5.0
    %v3109 = vmin.f32 %v3101, 5.0
    %v3110 = vmin.f32 %v3102, 5.0
    %v3111 = vmin.f32 %v3103, 5.0
    %v3112 = vmul.f32 %v3104, 1.442695
    %v3113 = vpow.pop %v3112
    %v3114 = vmul.f32 %v3105, 1.442695
    %v3115 = vpow.pop %v3114
    %v3116 = vmul.f32 %v3106, 1.442695
    %v3117 = vpow.pop %v3116
    %v3118 = vmul.f32 %v3107, 1.442695
    %v3119 = vpow.pop %v3118
    %v3120 = vmul.f32 %v3108, 1.442695
    %v3121 = vpow.pop %v3120
    %v3122 = vmul.f32 %v3109, 1.442695
    %v3123 = vpow.pop %v3122
    %v3124 = vmul.f32 %v3110, 1.442695
    %v3125 = vpow.pop %v3124
    %v3126 = vmul.f32 %v3111, 1.442695
    %v3127 = vpow.pop %v3126
    %v3128 = vmul.f32 %v3113, %v234
    %v3129 = vmul.f32 %v3115, %v235
    %v3130 = vmul.f32 %v3117, %v234
    %v3131 = vmul.f32 %v3119, %v235
    %v3132 = vmul.f32 %v3121, %v234
    %v3133 = vmul.f32 %v3123, %v235
    %v3134 = vmul.f32 %v3125, %v234
    %v3135 = vmul.f32 %v3127, %v235
    %3136 = vrot.lane.b32.xlu0 %v2847, 112
    %v3137 = vpop.permute.xlu0 %3136
    %3138 = vrot.lane.b32.xlu0 %v2850, 112
    %v3139 = vpop.permute.xlu0 %3138
    %v3143 = vsel %vm578, %v3128, 0
    %v3146 = vsel %vm578, %v3129, 0
    %3148 = vmatpush.msra.mxu0 0.0
    %3149 = vmatpush.msra.mxu0 0.0
    %3150 = vmatpush.msra.mxu0 0.0
    %3151 = vmatpush.msra.mxu0 0.0
    %3152 = vmatpush.msra.mxu0 0.0
    %3153 = vmatpush.msra.mxu0 0.0
    %3154 = vmatpush.msra.mxu0 0.0
    %3155 = vmatpush.msra.mxu0 0.0
    %3156 = vmatpush.msra.mxu0 0.0
    %3157 = vmatpush.msra.mxu0 0.0
    %3158 = vmatpush.msra.mxu0 0.0
    %3159 = vmatpush.msra.mxu0 0.0
    %3160 = vmatpush.msra.mxu0 0.0
    %3161 = vmatpush.msra.mxu0 0.0
    %3162 = vmatpush.msra.mxu0 %v3139
    %3163 = vmatpush.msra.mxu0 %v3137
    %3164 = vmatmul.f32.gmra.mxu0 %v3143
    %v3165 = vpop.f32.mrf.mxu0
    %v3166 = vadd.f32 0.0, %v3165
    %3167 = vmatmul.f32.gmra.mxu0 %v3146
    %v3168 = vpop.f32.mrf.mxu0
    %v3169 = vadd.f32 0.0, %v3168
    %3170 = vdwg.mxu0
    %3171 = vrot.lane.b32.xlu0 %v2879, 112
    %v3172 = vpop.permute.xlu0 %3171
    %3173 = vrot.lane.b32.xlu0 %v2882, 112
    %v3174 = vpop.permute.xlu0 %3173
    %v3178 = vsel %vm578, %v3130, 0
    %v3181 = vsel %vm578, %v3131, 0
    %3183 = vmatpush.msra.mxu0 0.0
    %3184 = vmatpush.msra.mxu0 0.0
    %3185 = vmatpush.msra.mxu0 0.0
    %3186 = vmatpush.msra.mxu0 0.0
    %3187 = vmatpush.msra.mxu0 0.0
    %3188 = vmatpush.msra.mxu0 0.0
    %3189 = vmatpush.msra.mxu0 0.0
    %3190 = vmatpush.msra.mxu0 0.0
    %3191 = vmatpush.msra.mxu0 0.0
    %3192 = vmatpush.msra.mxu0 0.0
    %3193 = vmatpush.msra.mxu0 0.0
    %3194 = vmatpush.msra.mxu0 0.0
    %3195 = vmatpush.msra.mxu0 0.0
    %3196 = vmatpush.msra.mxu0 0.0
    %3197 = vmatpush.msra.mxu0 %v3174
    %3198 = vmatpush.msra.mxu0 %v3172
    %3199 = vmatmul.f32.gmra.mxu0 %v3178
    %v3200 = vpop.f32.mrf.mxu0
    %v3201 = vadd.f32 0.0, %v3200
    %3202 = vmatmul.f32.gmra.mxu0 %v3181
    %v3203 = vpop.f32.mrf.mxu0
    %v3204 = vadd.f32 0.0, %v3203
    %3205 = vdwg.mxu0
    %3206 = vrot.lane.b32.xlu0 %v2911, 112
    %v3207 = vpop.permute.xlu0 %3206
    %3208 = vrot.lane.b32.xlu0 %v2914, 112
    %v3209 = vpop.permute.xlu0 %3208
    %v3213 = vsel %vm578, %v3132, 0
    %v3216 = vsel %vm578, %v3133, 0
    %3218 = vmatpush.msra.mxu0 0.0
    %3219 = vmatpush.msra.mxu0 0.0
    %3220 = vmatpush.msra.mxu0 0.0
    %3221 = vmatpush.msra.mxu0 0.0
    %3222 = vmatpush.msra.mxu0 0.0
    %3223 = vmatpush.msra.mxu0 0.0
    %3224 = vmatpush.msra.mxu0 0.0
    %3225 = vmatpush.msra.mxu0 0.0
    %3226 = vmatpush.msra.mxu0 0.0
    %3227 = vmatpush.msra.mxu0 0.0
    %3228 = vmatpush.msra.mxu0 0.0
    %3229 = vmatpush.msra.mxu0 0.0
    %3230 = vmatpush.msra.mxu0 0.0
    %3231 = vmatpush.msra.mxu0 0.0
    %3232 = vmatpush.msra.mxu0 %v3209
    %3233 = vmatpush.msra.mxu0 %v3207
    %3234 = vmatmul.f32.gmra.mxu0 %v3213
    %v3235 = vpop.f32.mrf.mxu0
    %v3236 = vadd.f32 0.0, %v3235
    %3237 = vmatmul.f32.gmra.mxu0 %v3216
    %v3238 = vpop.f32.mrf.mxu0
    %v3239 = vadd.f32 0.0, %v3238
    %3240 = vdwg.mxu0
    %3241 = vrot.lane.b32.xlu0 %v2943, 112
    %v3242 = vpop.permute.xlu0 %3241
    %3243 = vrot.lane.b32.xlu0 %v2946, 112
    %v3244 = vpop.permute.xlu0 %3243
    %v3248 = vsel %vm578, %v3134, 0
    %v3251 = vsel %vm578, %v3135, 0
    %3253 = vmatpush.msra.mxu0 0.0
    %3254 = vmatpush.msra.mxu0 0.0
    %3255 = vmatpush.msra.mxu0 0.0
    %3256 = vmatpush.msra.mxu0 0.0
    %3257 = vmatpush.msra.mxu0 0.0
    %3258 = vmatpush.msra.mxu0 0.0
    %3259 = vmatpush.msra.mxu0 0.0
    %3260 = vmatpush.msra.mxu0 0.0
    %3261 = vmatpush.msra.mxu0 0.0
    %3262 = vmatpush.msra.mxu0 0.0
    %3263 = vmatpush.msra.mxu0 0.0
    %3264 = vmatpush.msra.mxu0 0.0
    %3265 = vmatpush.msra.mxu0 0.0
    %3266 = vmatpush.msra.mxu0 0.0
    %3267 = vmatpush.msra.mxu0 %v3244
    %3268 = vmatpush.msra.mxu0 %v3242
    %3269 = vmatmul.f32.gmra.mxu0 %v3248
    %v3270 = vpop.f32.mrf.mxu0
    %v3271 = vadd.f32 0.0, %v3270
    %3272 = vmatmul.f32.gmra.mxu0 %v3251
    %v3273 = vpop.f32.mrf.mxu0
    %v3274 = vadd.f32 0.0, %v3273
    %3275 = vdwg.mxu0
    %v3276 = vsel %vm578, %v3128, 0.0
    %3277 = vadd.xlane.f32.xlu0 %v3276
    %v3278 = vpop.xlane.xlu0 %3277
    %v3279 = vsel %vm578, %v3129, 0.0
    %3280 = vadd.xlane.f32.xlu0 %v3279
    %v3281 = vpop.xlane.xlu0 %3280
    %v3282 = vsel %vm578, %v3130, 0.0
    %3283 = vadd.xlane.f32.xlu0 %v3282
    %v3284 = vpop.xlane.xlu0 %3283
    %v3285 = vsel %vm578, %v3131, 0.0
    %3286 = vadd.xlane.f32.xlu0 %v3285
    %v3287 = vpop.xlane.xlu0 %3286
    %v3288 = vsel %vm578, %v3132, 0.0
    %3289 = vadd.xlane.f32.xlu0 %v3288
    %v3290 = vpop.xlane.xlu0 %3289
    %v3291 = vsel %vm578, %v3133, 0.0
    %3292 = vadd.xlane.f32.xlu0 %v3291
    %v3293 = vpop.xlane.xlu0 %3292
    %v3294 = vsel %vm578, %v3134, 0.0
    %3295 = vadd.xlane.f32.xlu0 %v3294
    %v3296 = vpop.xlane.xlu0 %3295
    %v3297 = vsel %vm578, %v3135, 0.0
    %3298 = vadd.xlane.f32.xlu0 %v3297
    %v3299 = vpop.xlane.xlu0 %3298
    %v3300 = vadd.f32 %v3278, 1e-06
    %v3301 = vadd.f32 %v3281, 1e-06
    %v3302 = vadd.f32 %v3284, 1e-06
    %v3303 = vadd.f32 %v3287, 1e-06
    %v3304 = vadd.f32 %v3290, 1e-06
    %v3305 = vadd.f32 %v3293, 1e-06
    %v3306 = vadd.f32 %v3296, 1e-06
    %v3307 = vadd.f32 %v3299, 1e-06
    %v3308 = vrcp.pop %v3300
    %v3309 = vrcp.pop %v3301
    %v3310 = vrcp.pop %v3302
    %v3311 = vrcp.pop %v3303
    %v3312 = vrcp.pop %v3304
    %v3313 = vrcp.pop %v3305
    %v3314 = vrcp.pop %v3306
    %v3315 = vrcp.pop %v3307
    %v3316 = vmul.f32 %v3166, %v3308
    %v3317 = vmul.f32 %v3169, %v3309
    %v3318 = vmul.f32 %v3201, %v3310
    %v3319 = vmul.f32 %v3204, %v3311
    %v3320 = vmul.f32 %v3236, %v3312
    %v3321 = vmul.f32 %v3239, %v3313
    %v3322 = vmul.f32 %v3271, %v3314
    %v3323 = vmul.f32 %v3274, %v3315
    %s3324 = scalar_lea.vmem [#allocation4], 96
    %v3325 = vld [vmem:[%s3324] sm:$0xff]
    %v3326 = vld [vmem:[%s3324 + $0x8] sm:$0xff]
    %v3327 = vld [vmem:[%s3324 + $0x10] sm:$0xff]
    %v3328 = vld [vmem:[%s3324 + $0x18] sm:$0xff]
    %v3330 = vsel %vm389, %v3316, 0
    %v3333 = vsel %vm389, %v3317, 0
    %3335 = vmatpush.msra.mxu0 0.0
    %3336 = vmatpush.msra.mxu0 0.0
    %3337 = vmatpush.msra.mxu0 0.0
    %3338 = vmatpush.msra.mxu0 0.0
    %3339 = vmatpush.msra.mxu0 0.0
    %3340 = vmatpush.msra.mxu0 0.0
    %3341 = vmatpush.msra.mxu0 0.0
    %3342 = vmatpush.msra.mxu0 0.0
    %3343 = vmatpush.msra.mxu0 0.0
    %3344 = vmatpush.msra.mxu0 0.0
    %3345 = vmatpush.msra.mxu0 0.0
    %3346 = vmatpush.msra.mxu0 0.0
    %3347 = vmatpush.msra.mxu0 0.0
    %3348 = vmatpush.msra.mxu0 0.0
    %3349 = vmatpush.msra.mxu0 0.0
    %3350 = vmatpush.msra.mxu0 %v3325
    %3351 = vmatmul.f32.gmra.mxu0 %v3330
    %v3352 = vpop.f32.mrf.mxu0
    %v3353 = vadd.f32 0.0, %v3352
    %3354 = vmatmul.f32.gmra.mxu0 %v3333
    %v3355 = vpop.f32.mrf.mxu0
    %v3356 = vadd.f32 0.0, %v3355
    %3357 = vdwg.mxu0
    %v3359 = vsel %vm389, %v3318, 0
    %v3362 = vsel %vm389, %v3319, 0
    %3364 = vmatpush.msra.mxu0 0.0
    %3365 = vmatpush.msra.mxu0 0.0
    %3366 = vmatpush.msra.mxu0 0.0
    %3367 = vmatpush.msra.mxu0 0.0
    %3368 = vmatpush.msra.mxu0 0.0
    %3369 = vmatpush.msra.mxu0 0.0
    %3370 = vmatpush.msra.mxu0 0.0
    %3371 = vmatpush.msra.mxu0 0.0
    %3372 = vmatpush.msra.mxu0 0.0
    %3373 = vmatpush.msra.mxu0 0.0
    %3374 = vmatpush.msra.mxu0 0.0
    %3375 = vmatpush.msra.mxu0 0.0
    %3376 = vmatpush.msra.mxu0 0.0
    %3377 = vmatpush.msra.mxu0 0.0
    %3378 = vmatpush.msra.mxu0 0.0
    %3379 = vmatpush.msra.mxu0 %v3326
    %3380 = vmatmul.f32.gmra.mxu0 %v3359
    %v3381 = vpop.f32.mrf.mxu0
    %v3382 = vadd.f32 0.0, %v3381
    %3383 = vmatmul.f32.gmra.mxu0 %v3362
    %v3384 = vpop.f32.mrf.mxu0
    %v3385 = vadd.f32 0.0, %v3384
    %3386 = vdwg.mxu0
    %v3388 = vsel %vm389, %v3320, 0
    %v3391 = vsel %vm389, %v3321, 0
    %3393 = vmatpush.msra.mxu0 0.0
    %3394 = vmatpush.msra.mxu0 0.0
    %3395 = vmatpush.msra.mxu0 0.0
    %3396 = vmatpush.msra.mxu0 0.0
    %3397 = vmatpush.msra.mxu0 0.0
    %3398 = vmatpush.msra.mxu0 0.0
    %3399 = vmatpush.msra.mxu0 0.0
    %3400 = vmatpush.msra.mxu0 0.0
    %3401 = vmatpush.msra.mxu0 0.0
    %3402 = vmatpush.msra.mxu0 0.0
    %3403 = vmatpush.msra.mxu0 0.0
    %3404 = vmatpush.msra.mxu0 0.0
    %3405 = vmatpush.msra.mxu0 0.0
    %3406 = vmatpush.msra.mxu0 0.0
    %3407 = vmatpush.msra.mxu0 0.0
    %3408 = vmatpush.msra.mxu0 %v3327
    %3409 = vmatmul.f32.gmra.mxu0 %v3388
    %v3410 = vpop.f32.mrf.mxu0
    %v3411 = vadd.f32 0.0, %v3410
    %3412 = vmatmul.f32.gmra.mxu0 %v3391
    %v3413 = vpop.f32.mrf.mxu0
    %v3414 = vadd.f32 0.0, %v3413
    %3415 = vdwg.mxu0
    %v3417 = vsel %vm389, %v3322, 0
    %v3420 = vsel %vm389, %v3323, 0
    %3422 = vmatpush.msra.mxu0 0.0
    %3423 = vmatpush.msra.mxu0 0.0
    %3424 = vmatpush.msra.mxu0 0.0
    %3425 = vmatpush.msra.mxu0 0.0
    %3426 = vmatpush.msra.mxu0 0.0
    %3427 = vmatpush.msra.mxu0 0.0
    %3428 = vmatpush.msra.mxu0 0.0
    %3429 = vmatpush.msra.mxu0 0.0
    %3430 = vmatpush.msra.mxu0 0.0
    %3431 = vmatpush.msra.mxu0 0.0
    %3432 = vmatpush.msra.mxu0 0.0
    %3433 = vmatpush.msra.mxu0 0.0
    %3434 = vmatpush.msra.mxu0 0.0
    %3435 = vmatpush.msra.mxu0 0.0
    %3436 = vmatpush.msra.mxu0 0.0
    %3437 = vmatpush.msra.mxu0 %v3328
    %3438 = vmatmul.f32.gmra.mxu0 %v3417
    %v3439 = vpop.f32.mrf.mxu0
    %v3440 = vadd.f32 0.0, %v3439
    %3441 = vmatmul.f32.gmra.mxu0 %v3420
    %v3442 = vpop.f32.mrf.mxu0
    %v3443 = vadd.f32 0.0, %v3442
    %3444 = vdwg.mxu0
    %v3445 = vsel %vm248, %v3353, 0.0
    %v3446 = vsel %vm248, %v3382, 0.0
    %v3447 = vadd.f32 %v3445, %v3446
    %v3448 = vsel %vm248, %v3411, 0.0
    %v3449 = vadd.f32 %v3447, %v3448
    %v3450 = vsel %vm248, %v3440, 0.0
    %v3451 = vadd.f32 %v3449, %v3450
    %v3452 = vsel %vm248, %v3356, 0.0
    %v3453 = vsel %vm248, %v3385, 0.0
    %v3454 = vadd.f32 %v3452, %v3453
    %v3455 = vsel %vm248, %v3414, 0.0
    %v3456 = vadd.f32 %v3454, %v3455
    %v3457 = vsel %vm248, %v3443, 0.0
    %v3458 = vadd.f32 %v3456, %v3457
    %v3459 = vadd.f32 %v2799, %v3451
    %v3460 = vadd.f32 %v2800, %v3458
    %s3461 = scalar_lea.vmem %s6, 3
    %v3462 = vld [vmem:[%s3461] sm:$0x1]
    %v3464 = vperm.slane %v3462, 0
    %v3466 = vadd.f32 %v3459, %v3464
    %v3467 = vadd.f32 %v3460, %v3464
    %s3468 = scalar_lea.vmem [#allocation6], 3
    %v3469 = vld [vmem:[%s3468] sm:$0x1]
    %s3470 = scalar_lea.vmem [#allocation7], 3
    %v3471 = vld [vmem:[%s3470] sm:$0x1]
    %v3472 = vsel %vm248, %v3466, 0.0
    %v3473 = vsel %vm248, %v3467, 0.0
    %v3474 = vadd.f32 %v3472, %v3473
    %v3475 = vrot.slane %v3474, 4
    %v3476 = vadd.f32 %v3474, %v3475
    %v3477 = vrot.slane %v3476, 2
    %v3478 = vadd.f32 %v3476, %v3477
    %v3479 = vrot.slane %v3478, 1
    %v3480 = vadd.f32 %v3478, %v3479
    %v3481 = vmul.f32 %v3480, %v920
    %v3482 = vsub.f32 %v3466, %v3481
    %v3483 = vsub.f32 %v3467, %v3481
    %v3484 = vmul.f32 %v3482, %v3482
    %v3485 = vmul.f32 %v3483, %v3483
    %v3486 = vsel %vm248, %v3484, 0.0
    %v3487 = vsel %vm248, %v3485, 0.0
    %v3488 = vadd.f32 %v3486, %v3487
    %v3489 = vrot.slane %v3488, 4
    %v3490 = vadd.f32 %v3488, %v3489
    %v3491 = vrot.slane %v3490, 2
    %v3492 = vadd.f32 %v3490, %v3491
    %v3493 = vrot.slane %v3492, 1
    %v3494 = vadd.f32 %v3492, %v3493
    %v3495 = vmul.f32 %v3494, %v920
    %v3496 = vadd.f32 %v3495, 1e-05
    %v3497 = vrsqrt.pop %v3496
    %v3498 = vmul.f32 %v3497, %v3496
    %v3499 = vmul.f32 %v3498, %v3497
    %v3500 = vmul.f32 0.5, %v3499
    %v3501 = vsub.f32 1.5, %v3500
    %v3502 = vmul.f32 %v3497, %v3501
    %vm3503 = vweird.f32 %v3496
    %vm3504 = vweird.f32 %v3497
    %vm3505 = vmor %vm3503, %vm3504
    %v3506 = vsel %vm3505, %v3497, %v3502
    %v3507 = vmul.f32 %v3482, %v3506
    %v3508 = vmul.f32 %v3483, %v3506
    %v3510 = vperm.slane %v3469, 0
    %v3512 = vmul.f32 %v3507, %v3510
    %v3513 = vmul.f32 %v3508, %v3510
    %v3515 = vperm.slane %v3471, 0
    %v3517 = vadd.f32 %v3512, %v3515
    %v3518 = vadd.f32 %v3513, %v3515
    %s3519 = scalar_lea.vmem [#allocation9], 96
    %v3520 = vld [vmem:[%s3519] sm:$0xff]
    %v3521 = vld [vmem:[%s3519 + $0x8] sm:$0xff]
    %v3522 = vld [vmem:[%s3519 + $0x10] sm:$0xff]
    %v3523 = vld [vmem:[%s3519 + $0x18] sm:$0xff]
    %s3524 = scalar_lea.vmem %s10, 3
    %v3525 = vld [vmem:[%s3524] sm:$0x1]
    %v3527 = vperm.slane %v3525, 0
    %v3530 = vsel %vm248, %v3517, 0
    %v3533 = vsel %vm248, %v3518, 0
    %3535 = vmatpush.msra.mxu0 0.0
    %3536 = vmatpush.msra.mxu0 0.0
    %3537 = vmatpush.msra.mxu0 0.0
    %3538 = vmatpush.msra.mxu0 0.0
    %3539 = vmatpush.msra.mxu0 0.0
    %3540 = vmatpush.msra.mxu0 0.0
    %3541 = vmatpush.msra.mxu0 0.0
    %3542 = vmatpush.msra.mxu0 0.0
    %3543 = vmatpush.msra.mxu0 0.0
    %3544 = vmatpush.msra.mxu0 0.0
    %3545 = vmatpush.msra.mxu0 0.0
    %3546 = vmatpush.msra.mxu0 0.0
    %3547 = vmatpush.msra.mxu0 %v3523
    %3548 = vmatpush.msra.mxu0 %v3522
    %3549 = vmatpush.msra.mxu0 %v3521
    %3550 = vmatpush.msra.mxu0 %v3520
    %3551 = vmatmul.f32.gmra.mxu0 %v3530
    %v3552 = vpop.f32.mrf.mxu0
    %v3553 = vadd.f32 %v3527, %v3552
    %3554 = vmatmul.f32.gmra.mxu0 %v3533
    %v3555 = vpop.f32.mrf.mxu0
    %v3556 = vadd.f32 %v3527, %v3555
    %3557 = vdwg.mxu0
    %v3558 = vmax.f32 %v3553, 0.0
    %v3559 = vmax.f32 %v3556, 0.0
    %s3560 = scalar_lea.vmem %s11, 192
    %v3561 = vld [vmem:[%s3560] sm:$0xff]
    %v3562 = vld [vmem:[%s3560 + $0x8] sm:$0xff]
    %v3563 = vld [vmem:[%s3560 + $0x10] sm:$0xff]
    %v3564 = vld [vmem:[%s3560 + $0x18] sm:$0xff]
    %v3565 = vld [vmem:[%s3560 + $0x20] sm:$0xff]
    %v3566 = vld [vmem:[%s3560 + $0x28] sm:$0xff]
    %v3567 = vld [vmem:[%s3560 + $0x30] sm:$0xff]
    %v3568 = vld [vmem:[%s3560 + $0x38] sm:$0xff]
    %s3569 = scalar_lea.vmem [#allocation10], 3
    %v3570 = vld [vmem:[%s3569] sm:$0x1]
    %v3572 = vperm.slane %v3570, 0
    %v3575 = vsel %vm1010, %v3558, 0
    %v3578 = vsel %vm1010, %v3559, 0
    %3580 = vmatpush.msra.mxu0 0.0
    %3581 = vmatpush.msra.mxu0 0.0
    %3582 = vmatpush.msra.mxu0 0.0
    %3583 = vmatpush.msra.mxu0 0.0
    %3584 = vmatpush.msra.mxu0 0.0
    %3585 = vmatpush.msra.mxu0 0.0
    %3586 = vmatpush.msra.mxu0 0.0
    %3587 = vmatpush.msra.mxu0 0.0
    %3588 = vmatpush.msra.mxu0 %v3568
    %3589 = vmatpush.msra.mxu0 %v3567
    %3590 = vmatpush.msra.mxu0 %v3566
    %3591 = vmatpush.msra.mxu0 %v3565
    %3592 = vmatpush.msra.mxu0 %v3564
    %3593 = vmatpush.msra.mxu0 %v3563
    %3594 = vmatpush.msra.mxu0 %v3562
    %3595 = vmatpush.msra.mxu0 %v3561
    %3596 = vmatmul.f32.gmra.mxu0 %v3575
    %v3597 = vpop.f32.mrf.mxu0
    %v3598 = vadd.f32 %v3572, %v3597
    %3599 = vmatmul.f32.gmra.mxu0 %v3578
    %v3600 = vpop.f32.mrf.mxu0
    %v3601 = vadd.f32 %v3572, %v3600
    %3602 = vdwg.mxu0
    %v3603 = vadd.f32 %v3517, %v3598
    %v3604 = vadd.f32 %v3518, %v3601
    %s3605 = scalar_lea.vmem [#allocation12], 3
    %v3606 = vld [vmem:[%s3605] sm:$0x1]
    %s3607 = scalar_lea.vmem [#allocation13], 3
    %v3608 = vld [vmem:[%s3607] sm:$0x1]
    %v3609 = vsel %vm248, %v3603, 0.0
    %v3610 = vsel %vm248, %v3604, 0.0
    %v3611 = vadd.f32 %v3609, %v3610
    %v3612 = vrot.slane %v3611, 4
    %v3613 = vadd.f32 %v3611, %v3612
    %v3614 = vrot.slane %v3613, 2
    %v3615 = vadd.f32 %v3613, %v3614
    %v3616 = vrot.slane %v3615, 1
    %v3617 = vadd.f32 %v3615, %v3616
    %v3618 = vmul.f32 %v3617, %v920
    %v3619 = vsub.f32 %v3603, %v3618
    %v3620 = vsub.f32 %v3604, %v3618
    %v3621 = vmul.f32 %v3619, %v3619
    %v3622 = vmul.f32 %v3620, %v3620
    %v3623 = vsel %vm248, %v3621, 0.0
    %v3624 = vsel %vm248, %v3622, 0.0
    %v3625 = vadd.f32 %v3623, %v3624
    %v3626 = vrot.slane %v3625, 4
    %v3627 = vadd.f32 %v3625, %v3626
    %v3628 = vrot.slane %v3627, 2
    %v3629 = vadd.f32 %v3627, %v3628
    %v3630 = vrot.slane %v3629, 1
    %v3631 = vadd.f32 %v3629, %v3630
    %v3632 = vmul.f32 %v3631, %v920
    %v3633 = vadd.f32 %v3632, 1e-05
    %v3634 = vrsqrt.pop %v3633
    %v3635 = vmul.f32 %v3634, %v3633
    %v3636 = vmul.f32 %v3635, %v3634
    %v3637 = vmul.f32 0.5, %v3636
    %v3638 = vsub.f32 1.5, %v3637
    %v3639 = vmul.f32 %v3634, %v3638
    %vm3640 = vweird.f32 %v3633
    %vm3641 = vweird.f32 %v3634
    %vm3642 = vmor %vm3640, %vm3641
    %v3643 = vsel %vm3642, %v3634, %v3639
    %v3644 = vmul.f32 %v3619, %v3643
    %v3645 = vmul.f32 %v3620, %v3643
    %v3647 = vperm.slane %v3606, 0
    %v3649 = vmul.f32 %v3644, %v3647
    %v3650 = vmul.f32 %v3645, %v3647
    %v3652 = vperm.slane %v3608, 0
    %v3654 = vadd.f32 %v3649, %v3652
    %v3655 = vadd.f32 %v3650, %v3652
    %v3656 = vld [vmem:[%s15] sm:$0xff]
    %v3657 = vld [vmem:[%s15 + $0x8] sm:$0xff]
    %v3658 = vld [vmem:[%s15 + $0x10] sm:$0xff]
    %v3659 = vld [vmem:[%s15 + $0x18] sm:$0xff]
    %v3660 = vld [vmem:[%s16] sm:$0x1]
    %v3662 = vperm.slane %v3660, 0
    %v3665 = vsel %vm248, %v3654, 0
    %v3668 = vsel %vm248, %v3655, 0
    %3670 = vmatpush.msra.mxu0 0.0
    %3671 = vmatpush.msra.mxu0 0.0
    %3672 = vmatpush.msra.mxu0 0.0
    %3673 = vmatpush.msra.mxu0 0.0
    %3674 = vmatpush.msra.mxu0 0.0
    %3675 = vmatpush.msra.mxu0 0.0
    %3676 = vmatpush.msra.mxu0 0.0
    %3677 = vmatpush.msra.mxu0 0.0
    %3678 = vmatpush.msra.mxu0 0.0
    %3679 = vmatpush.msra.mxu0 0.0
    %3680 = vmatpush.msra.mxu0 0.0
    %3681 = vmatpush.msra.mxu0 0.0
    %3682 = vmatpush.msra.mxu0 %v3659
    %3683 = vmatpush.msra.mxu0 %v3658
    %3684 = vmatpush.msra.mxu0 %v3657
    %3685 = vmatpush.msra.mxu0 %v3656
    %3686 = vmatmul.f32.gmra.mxu0 %v3665
    %v3687 = vpop.f32.mrf.mxu0
    %v3688 = vadd.f32 %v3662, %v3687
    %3689 = vmatmul.f32.gmra.mxu0 %v3668
    %v3690 = vpop.f32.mrf.mxu0
    %v3691 = vadd.f32 %v3662, %v3690
    %3692 = vdwg.mxu0
    %vm3693 = vcmask 23552
    %3694 = vst.msk [vmem:[%s17] sm:$0xff] %vm3693, %v3688
    %3695 = vst.msk [vmem:[%s17 + $0x8] sm:$0xff] %vm3693, %v3691
    // Predicated region
    $region102: #{tpu_custom_call.1} parent=1 // pred_check
      _
    $region103: #{tpu_custom_call.1} parent=1 // pred_check_branch
      %3697 = sbr.rel (0) target = $region105
    $region104: #{tpu_custom_call.1} parent=1 // pred_region
      _
    $region105: #{tpu_custom_call.1} parent=1 // pred_fallthru
      _
    // Predicated region
    $region106: #{tpu_custom_call.1} parent=1 // pred_check
      _
    $region107: #{tpu_custom_call.1} parent=1 // pred_check_branch
      %3699 = sbr.rel (0) target = $region109
    $region108: #{tpu_custom_call.1} parent=1 // pred_region
      _
    $region109: #{tpu_custom_call.1} parent=1 // pred_fallthru
      _
    %3700 = vsyncpa [#allocation3], 1
    %3701 = vsyncpa [#allocation5], 1
    %3702 = vsyncpa [#allocation8], 1
    %3703 = vsyncpa [#allocation11], 1
    %3704 = vsyncpa [#allocation14], 1

</llo_original>
